<compile_context>
chip_gen: v7x
topology: tpu7x:2x2x1
jax: 0.10.0
libtpu: 0.0.40
codegen_flags: <defaults>
</compile_context>

<pallas_src>
import functools

import jax
import jax.numpy as jnp
from jax.experimental import pallas as pl
from jax.experimental.pallas import tpu as pltpu


# ----------------------------------------------------------------------------
# Single fused kernel: BiLSTM recurrence + attention heads + output projections.
# ----------------------------------------------------------------------------
def fused_bilstm_kernel(
    emb_ref, m_ref, valid_ref, vnorm_ref,
    wih_ref, bias_ref, whh_ref,
    wqu_ref, va_ref, w1_ref, w23_ref, w4_ref,
    ws_ref, bs_ref, wi_ref, bi_ref,
    slot_out_ref, intent_out_ref,
    hf_s):

    B, T = valid_ref.shape
    TB, H = hf_s.shape            # H = 2 * Hd (fwd ++ bwd hidden)
    Hd = H // 2
    f32 = jnp.float32

    # ---- Hoisted, blended input projection for BOTH directions and ALL steps.
    # emb row s*B+b = [emb(t=s, b) | emb(t=T-1-s, b)]; wih maps the first half to
    # the fwd-gate columns and the second half to the bwd-gate columns, so row
    # block s of xg is exactly the per-step gate input (no per-step blend needed).
    xg = (jnp.dot(emb_ref[...], wih_ref[...], preferred_element_type=f32)
          + bias_ref[...])                                    # (T*B, 4*H)
    m_all = m_ref[...]                                        # (T*B, H) per-step state mask
    whh = whh_ref[...]                                        # (H, 4*H) block-diag recurrent W

    hf_s[...] = jnp.zeros_like(hf_s)

    h = jnp.zeros((B, H), f32)
    c = jnp.zeros((B, H), f32)

    # ---- Fused fwd/bwd masked LSTM recurrence, fully unrolled (T small & static).
    # Gate column layout of z: [i_f i_b | f_f f_b | o_f o_b | g_f g_b].
    for s in range(T):
        tf, tb = s, T - 1 - s
        z = xg[s * B:(s + 1) * B, :] + jnp.dot(h, whh, preferred_element_type=f32)
        sig = jax.nn.sigmoid(z[:, 0:3 * H])                   # i | f | o lanes only
        g_g = jnp.tanh(z[:, 3 * H:4 * H])                     # g lanes only
        i_g = sig[:, 0:H]
        f_g = sig[:, H:2 * H]
        o_g = sig[:, 2 * H:3 * H]
        c_new = f_g * c + i_g * g_g
        h_new = o_g * jnp.tanh(c_new)
        m = m_all[s * B:(s + 1) * B, :]                       # precomputed mask row block
        h = m * h_new + (1.0 - m) * h
        c = m * c_new + (1.0 - m) * c
        h_keep = m * h_new                                    # zeros at padded positions
        # Batch-major scatter of the two direction halves.  These stores are not on
        # the h/c dependency chain, so they do not lengthen the serial recurrence.
        for b in range(B):
            hf_s[b * T + tf: b * T + tf + 1, 0:Hd] = h_keep[b:b + 1, 0:Hd]
            hf_s[b * T + tb: b * T + tb + 1, Hd:H] = h_keep[b:b + 1, Hd:H]

    # ---- Heads: per-token projection for all tokens (merged q / intent-att RHS).
    hf = hf_s[...]                                            # (B*T, H), row = b*T + t
    qu = jnp.dot(hf, wqu_ref[...], preferred_element_type=f32)  # (B*T, 2H) = [q | u_pre]
    u_all = jnp.tanh(qu[:, H:2 * H])

    inv_sqrt = 1.0 / float(H) ** 0.5
    BIG = jnp.float32(1e30)

    # ---- Per-sequence attention + SF-ID iteration (O(B*T^2), no (TB,TB) tensors).
    for b in range(B):
        r0, r1 = b * T, (b + 1) * T
        hf_b = hf[r0:r1, :]                                   # (T, H)
        kbias = (valid_ref[b:b + 1, :] - 1.0) * BIG           # (1, T): 0 valid / -1e30 pad

        # IntentAttention: additive attention pooling over valid timesteps.
        e = jax.lax.dot_general(va_ref[...], u_all[r0:r1, :],
                                (((1,), (1,)), ((), ())),
                                preferred_element_type=f32)    # (1, T)
        e = e + kbias
        e = e - jnp.max(e, axis=-1, keepdims=True)
        ew = jnp.exp(e)
        pw = ew * pl.reciprocal(jnp.sum(ew, axis=-1, keepdims=True), approx=True)
        ictx = jnp.dot(pw, hf_b, preferred_element_type=f32)   # (1, H)

        # SlotAttention: scaled-dot self-attention over this sequence's valid keys.
        sc = jax.lax.dot_general(qu[r0:r1, 0:H], hf_b,
                                 (((1,), (1,)), ((), ())),
                                 preferred_element_type=f32) * inv_sqrt   # (T, T)
        sc = sc + kbias
        sc = sc - jnp.max(sc, axis=-1, keepdims=True)
        p = jnp.exp(sc)
        attn = p * pl.reciprocal(jnp.sum(p, axis=-1, keepdims=True), approx=True)
        sctx = jnp.dot(attn, hf_b, preferred_element_type=f32)  # (T, H)

        # IterModel (SF-ID): slot branch, conditioned on the intent context.
        iproj = jnp.dot(ictx, w23_ref[...], preferred_element_type=f32)   # (1,2H)=[@w2|@w3]
        f_feat = jax.nn.relu(
            jnp.dot(sctx, w1_ref[...], preferred_element_type=f32) + iproj[:, 0:H])
        slot_out_ref[r0:r1, :] = (
            jnp.dot(f_feat, ws_ref[...], preferred_element_type=f32) + bs_ref[...])

        # IterModel: intent branch, conditioned on the (masked-mean) slot context.
        smean = jnp.dot(vnorm_ref[b:b + 1, :], sctx, preferred_element_type=f32)  # (1, H)
        g_feat = jax.nn.relu(
            iproj[:, H:2 * H] + jnp.dot(smean, w4_ref[...], preferred_element_type=f32))
        intent_out_ref[b:b + 1, :] = (
            jnp.dot(g_feat, wi_ref[...], preferred_element_type=f32) + bi_ref[...])


# ----------------------------------------------------------------------------
# Wrapper
# ----------------------------------------------------------------------------
def _round_up(x, m):
    return ((x + m - 1) // m) * m


def bilstm_model_forward(params, x, lengths):
    B, T = x.shape
    E = params["embedding"].shape[1]
    Hd = params["whh_f"].shape[0]
    H = 2 * Hd
    S = params["w_slot"].shape[1]
    I = params["w_intent"].shape[1]
    TB = T * B
    E_pad = _round_up(E, 128)
    S_pad = _round_up(S, 128)
    I_pad = _round_up(I, 128)
    f32 = jnp.float32

    # ---- Embedding: blended rows [emb(t) | emb(T-1-t)] in time-major order.
    emb = jnp.take(params["embedding"], x, axis=0)               # (B, T, E)
    emb_tm = jnp.transpose(emb, (1, 0, 2))                        # (T, B, E)
    emb_f = jnp.pad(emb_tm, ((0, 0), (0, 0), (0, E_pad - E)))
    emb_r = emb_f[::-1]
    emb_blend = jnp.concatenate([emb_f, emb_r], axis=2).reshape(TB, 2 * E_pad).astype(f32)

    # ---- Gate reorder [i f g o] -> [i f o g] and fwd/bwd interleave per gate.
    def _reorder(w):
        k = w.shape[0]
        return w.reshape(k, 4, Hd)[:, jnp.array([0, 1, 3, 2]), :]

    def _interleave(wf4, wb4):
        return jnp.concatenate([wf4, wb4], axis=-1).reshape(wf4.shape[0], 8 * Hd)

    zeros_e = jnp.zeros((E, 4, Hd), f32)
    wih_fwd = _interleave(_reorder(params["wih_f"]), zeros_e)     # fwd-gate columns only
    wih_bwd = _interleave(zeros_e, _reorder(params["wih_b"]))     # bwd-gate columns only
    wih_big = jnp.zeros((2 * E_pad, 8 * Hd), f32)
    wih_big = wih_big.at[0:E, :].set(wih_fwd).at[E_pad:E_pad + E, :].set(wih_bwd)

    b_cat = _interleave(_reorder(params["b_f"]), _reorder(params["b_b"]))   # (1, 8*Hd)

    zeros_h = jnp.zeros((Hd, 4, Hd), f32)
    whh_blk = jnp.concatenate([
        _interleave(_reorder(params["whh_f"]), zeros_h),
        _interleave(zeros_h, _reorder(params["whh_b"]))], axis=0)  # (H, 8*Hd) block-diag

    # ---- Length masks (precomputed -> one row-block load per recurrence step).
    lengths = lengths.astype(jnp.int32)
    valid_tb = (jnp.arange(T)[:, None] < lengths[None, :]).astype(f32)      # (T, B)
    m_all = jnp.concatenate([
        jnp.broadcast_to(valid_tb[:, :, None], (T, B, Hd)),
        jnp.broadcast_to(valid_tb[::-1, :, None], (T, B, Hd))], axis=2
    ).reshape(TB, H).astype(f32)
    valid_b = jnp.transpose(valid_tb)                                       # (B, T)
    vnorm = valid_b / jnp.maximum(lengths[:, None].astype(f32), 1.0)        # (B, T)

    # ---- Head weights: merged same-LHS projections; lane-dense padded outputs.
    wqu = jnp.concatenate([params["wq"], params["w_int_att"]], axis=1)      # (H, 2H)
    w23 = jnp.concatenate([params["w2"], params["w3"]], axis=1)             # (H, 2H)
    va_row = params["v_att"].reshape(1, H)
    ws_pad = jnp.pad(params["w_slot"], ((0, 0), (0, S_pad - S)))
    bs_pad = jnp.pad(params["b_slot"], ((0, 0), (0, S_pad - S)))
    wi_pad = jnp.pad(params["w_intent"], ((0, 0), (0, I_pad - I)))
    bi_pad = jnp.pad(params["b_intent"], ((0, 0), (0, I_pad - I)))

    vmem = pl.BlockSpec(memory_space=pltpu.MemorySpace.VMEM)
    slot_flat, intent_pad = pl.pallas_call(
        fused_bilstm_kernel,
        out_shape=(jax.ShapeDtypeStruct((TB, S_pad), f32),
                   jax.ShapeDtypeStruct((B, I_pad), f32)),
        in_specs=[vmem] * 16,
        out_specs=(vmem, vmem),
        scratch_shapes=[pltpu.VMEM((TB, H), f32)],    # hf, batch-major (row = b*T + t)
        compiler_params=pltpu.CompilerParams(vmem_limit_bytes=32 * 1024 * 1024),
    )(emb_blend, m_all, valid_b, vnorm,
      wih_big, b_cat, whh_blk,
      wqu, va_row, params["w1"], w23, params["w4"],
      ws_pad, bs_pad, wi_pad, bi_pad)

    # Un-pad + rearrange to the reference output layout.
    slot = jnp.transpose(slot_flat.reshape(B, T, S_pad)[:, :, :S], (0, 2, 1))  # (B, S, T)
    intent = intent_pad[:, :I]                                                 # (B, I)
    return slot, intent


def init_params(key, vocab_size, embedding_dim=100, hidden_dim=64,
                n_slots=129, n_intents=29):
    # Gate chunk convention for LSTM weights/biases: [i, f, g, o] along the output dim.
    Hd = hidden_dim // 2
    E, H = embedding_dim, hidden_dim
    keys = jax.random.split(key, 18)

    def u(k, shape, scale):
        return jax.random.uniform(k, shape, jnp.float32, -scale, scale)

    s_lstm = 1.0 / (Hd ** 0.5)
    s_h = 1.0 / (H ** 0.5)
    return dict(
        embedding=jax.random.normal(keys[0], (vocab_size, E), jnp.float32) * 0.1,
        wih_f=u(keys[1], (E, 4 * Hd), s_lstm),
        whh_f=u(keys[2], (Hd, 4 * Hd), s_lstm),
        b_f=u(keys[3], (1, 4 * Hd), s_lstm),
        wih_b=u(keys[4], (E, 4 * Hd), s_lstm),
        whh_b=u(keys[5], (Hd, 4 * Hd), s_lstm),
        b_b=u(keys[6], (1, 4 * Hd), s_lstm),
        wq=u(keys[7], (H, H), s_h),
        w_int_att=u(keys[8], (H, H), s_h),
        v_att=u(keys[9], (H, 1), s_h),
        w1=u(keys[10], (H, H), s_h),
        w2=u(keys[11], (H, H), s_h),
        w_slot=u(keys[12], (H, n_slots), s_h),
        b_slot=u(keys[13], (1, n_slots), s_h),
        w3=u(keys[14], (H, H), s_h),
        w4=u(keys[15], (H, H), s_h),
        w_intent=u(keys[16], (H, n_intents), s_h),
        b_intent=u(keys[17], (1, n_intents), s_h),
    )


if __name__ == "__main__":
    key = jax.random.PRNGKey(0)
    k_param, k_x = jax.random.split(key)

    vocab_size = 50
    B, T = 2, 8
    n_slots, n_intents = 129, 29

    params = init_params(k_param, vocab_size, embedding_dim=100, hidden_dim=64,
                         n_slots=n_slots, n_intents=n_intents)
    x = jax.random.randint(k_x, (B, T), 0, vocab_size, dtype=jnp.int32)
    lengths = jnp.array([8, 5], dtype=jnp.int32)

    fwd = jax.jit(functools.partial(bilstm_model_forward, params))
    slot, intent = fwd(x, lengths)
    jax.block_until_ready((slot, intent))

    assert slot.shape == (B, n_slots, T), slot.shape
    assert intent.shape == (B, n_intents), intent.shape
    assert bool(jnp.all(jnp.isfinite(slot))), "non-finite slot logits"
    assert bool(jnp.all(jnp.isfinite(intent))), "non-finite intent logits"
    print("KERNEL_OK")
</pallas_src>

<mosaic_0001>
module attributes {stable_mosaic.version = 11 : i64} {
  func.func @fused_bilstm_kernel(%arg0: memref<16x256xf32, #tpu.memory_space<vmem>>, %arg1: memref<16x64xf32, #tpu.memory_space<vmem>>, %arg2: memref<2x8xf32, #tpu.memory_space<vmem>>, %arg3: memref<2x8xf32, #tpu.memory_space<vmem>>, %arg4: memref<256x256xf32, #tpu.memory_space<vmem>>, %arg5: memref<1x256xf32, #tpu.memory_space<vmem>>, %arg6: memref<64x256xf32, #tpu.memory_space<vmem>>, %arg7: memref<64x128xf32, #tpu.memory_space<vmem>>, %arg8: memref<1x64xf32, #tpu.memory_space<vmem>>, %arg9: memref<64x64xf32, #tpu.memory_space<vmem>>, %arg10: memref<64x128xf32, #tpu.memory_space<vmem>>, %arg11: memref<64x64xf32, #tpu.memory_space<vmem>>, %arg12: memref<64x256xf32, #tpu.memory_space<vmem>>, %arg13: memref<1x256xf32, #tpu.memory_space<vmem>>, %arg14: memref<64x128xf32, #tpu.memory_space<vmem>>, %arg15: memref<1x128xf32, #tpu.memory_space<vmem>>, %arg16: memref<16x256xf32, #tpu.memory_space<vmem>>, %arg17: memref<2x128xf32, #tpu.memory_space<vmem>>, %arg18: memref<16x64xf32, #tpu.memory_space<vmem>>) attributes {dimension_semantics = [], scalar_prefetch = 0 : i64, scratch_operands = 1 : i64, tpu.core_type = #tpu.core_type<tc>} {
    %c0 = arith.constant 0 : index
    %c0_0 = arith.constant 0 : index
    %0 = vector.load %arg0[%c0, %c0_0] : memref<16x256xf32, #tpu.memory_space<vmem>>, vector<16x256xf32>
    %c0_1 = arith.constant 0 : index
    %c0_2 = arith.constant 0 : index
    %1 = vector.load %arg4[%c0_1, %c0_2] : memref<256x256xf32, #tpu.memory_space<vmem>>, vector<256x256xf32>
    %cst = arith.constant dense<0.000000e+00> : vector<16x256xf32>
    %2 = tpu.matmul %0, %1, %cst {dimension_numbers = #tpu.dot_dimension_numbers<[1], [0], [0], [1], [0, 0, 1, 1], [], []>} : vector<16x256xf32>, vector<256x256xf32>, vector<16x256xf32> -> vector<16x256xf32>
    %c0_3 = arith.constant 0 : index
    %c0_4 = arith.constant 0 : index
    %3 = vector.load %arg5[%c0_3, %c0_4] : memref<1x256xf32, #tpu.memory_space<vmem>>, vector<1x256xf32>
    %4 = vector.broadcast %3 : vector<1x256xf32> to vector<16x256xf32>
    %5 = arith.addf %2, %4 : vector<16x256xf32>
    %c0_5 = arith.constant 0 : index
    %c0_6 = arith.constant 0 : index
    %6 = vector.load %arg1[%c0_5, %c0_6] : memref<16x64xf32, #tpu.memory_space<vmem>>, vector<16x64xf32>
    %c0_7 = arith.constant 0 : index
    %c0_8 = arith.constant 0 : index
    %7 = vector.load %arg6[%c0_7, %c0_8] : memref<64x256xf32, #tpu.memory_space<vmem>>, vector<64x256xf32>
    %cst_9 = arith.constant 0.000000e+00 : f32
    %8 = vector.broadcast %cst_9 : f32 to vector<16x64xf32>
    %c0_10 = arith.constant 0 : index
    %c0_11 = arith.constant 0 : index
    %9 = vector.load %arg18[%c0_10, %c0_11] : memref<16x64xf32, #tpu.memory_space<vmem>>, vector<16x64xf32>
    tpu.vector_store %arg18[%c0_10, %c0_11], %8 {strides = array<i32>} : memref<16x64xf32, #tpu.memory_space<vmem>>, vector<16x64xf32>,
    %cst_12 = arith.constant 0.000000e+00 : f32
    %10 = vector.broadcast %cst_12 : f32 to vector<2x64xf32>
    %cst_13 = arith.constant 0.000000e+00 : f32
    %11 = vector.broadcast %cst_13 : f32 to vector<2x64xf32>
    %12 = vector.extract_strided_slice %5 {offsets = [0, 0], sizes = [2, 256], strides = [1, 1]} : vector<16x256xf32> to vector<2x256xf32>
    %cst_14 = arith.constant dense<0.000000e+00> : vector<2x256xf32>
    %13 = tpu.matmul %10, %7, %cst_14 {dimension_numbers = #tpu.dot_dimension_numbers<[1], [0], [0], [1], [0, 0, 1, 1], [], []>} : vector<2x64xf32>, vector<64x256xf32>, vector<2x256xf32> -> vector<2x256xf32>
    %14 = arith.addf %12, %13 : vector<2x256xf32>
    %15 = vector.extract_strided_slice %14 {offsets = [0, 0], sizes = [2, 192], strides = [1, 1]} : vector<2x256xf32> to vector<2x192xf32>
    %16 = arith.negf %15 : vector<2x192xf32>
    %17 = math.exp %16 : vector<2x192xf32>
    %cst_15 = arith.constant 1.000000e+00 : f32
    %18 = vector.broadcast %cst_15 : f32 to vector<2x192xf32>
    %19 = arith.addf %18, %17 : vector<2x192xf32>
    %20 = arith.divf %18, %19 : vector<2x192xf32>
    %21 = vector.extract_strided_slice %14 {offsets = [0, 192], sizes = [2, 64], strides = [1, 1]} : vector<2x256xf32> to vector<2x64xf32>
    %22 = math.tanh %21 : vector<2x64xf32>
    %23 = vector.extract_strided_slice %20 {offsets = [0, 0], sizes = [2, 64], strides = [1, 1]} : vector<2x192xf32> to vector<2x64xf32>
    %24 = vector.extract_strided_slice %20 {offsets = [0, 64], sizes = [2, 64], strides = [1, 1]} : vector<2x192xf32> to vector<2x64xf32>
    %25 = vector.extract_strided_slice %20 {offsets = [0, 128], sizes = [2, 64], strides = [1, 1]} : vector<2x192xf32> to vector<2x64xf32>
    %26 = arith.mulf %24, %11 : vector<2x64xf32>
    %27 = arith.mulf %23, %22 : vector<2x64xf32>
    %28 = arith.addf %26, %27 : vector<2x64xf32>
    %29 = math.tanh %28 : vector<2x64xf32>
    %30 = arith.mulf %25, %29 : vector<2x64xf32>
    %31 = vector.extract_strided_slice %6 {offsets = [0, 0], sizes = [2, 64], strides = [1, 1]} : vector<16x64xf32> to vector<2x64xf32>
    %32 = arith.mulf %31, %30 : vector<2x64xf32>
    %cst_16 = arith.constant 1.000000e+00 : f32
    %33 = vector.broadcast %cst_16 : f32 to vector<2x64xf32>
    %34 = arith.subf %33, %31 : vector<2x64xf32>
    %35 = arith.mulf %34, %10 : vector<2x64xf32>
    %36 = arith.addf %32, %35 : vector<2x64xf32>
    %37 = arith.mulf %31, %28 : vector<2x64xf32>
    %cst_17 = arith.constant 1.000000e+00 : f32
    %38 = vector.broadcast %cst_17 : f32 to vector<2x64xf32>
    %39 = arith.subf %38, %31 : vector<2x64xf32>
    %40 = arith.mulf %39, %11 : vector<2x64xf32>
    %41 = arith.addf %37, %40 : vector<2x64xf32>
    %42 = arith.mulf %31, %30 : vector<2x64xf32>
    %43 = vector.extract_strided_slice %42 {offsets = [0, 0], sizes = [1, 32], strides = [1, 1]} : vector<2x64xf32> to vector<1x32xf32>
    %c0_18 = arith.constant 0 : index
    %c0_19 = arith.constant 0 : index
    %44 = vector.load %arg18[%c0_18, %c0_19] : memref<16x64xf32, #tpu.memory_space<vmem>>, vector<1x32xf32>
    tpu.vector_store %arg18[%c0_18, %c0_19], %43 {strides = array<i32>} : memref<16x64xf32, #tpu.memory_space<vmem>>, vector<1x32xf32>,
    %45 = vector.extract_strided_slice %42 {offsets = [0, 32], sizes = [1, 32], strides = [1, 1]} : vector<2x64xf32> to vector<1x32xf32>
    %c7 = arith.constant 7 : index
    %c32 = arith.constant 32 : index
    %46 = vector.load %arg18[%c7, %c32] : memref<16x64xf32, #tpu.memory_space<vmem>>, vector<1x32xf32>
    tpu.vector_store %arg18[%c7, %c32], %45 {strides = array<i32>} : memref<16x64xf32, #tpu.memory_space<vmem>>, vector<1x32xf32>,
    %47 = vector.extract_strided_slice %42 {offsets = [1, 0], sizes = [1, 32], strides = [1, 1]} : vector<2x64xf32> to vector<1x32xf32>
    %c8 = arith.constant 8 : index
    %c0_20 = arith.constant 0 : index
    %48 = vector.load %arg18[%c8, %c0_20] : memref<16x64xf32, #tpu.memory_space<vmem>>, vector<1x32xf32>
    tpu.vector_store %arg18[%c8, %c0_20], %47 {strides = array<i32>} : memref<16x64xf32, #tpu.memory_space<vmem>>, vector<1x32xf32>,
    %49 = vector.extract_strided_slice %42 {offsets = [1, 32], sizes = [1, 32], strides = [1, 1]} : vector<2x64xf32> to vector<1x32xf32>
    %c15 = arith.constant 15 : index
    %c32_21 = arith.constant 32 : index
    %50 = vector.load %arg18[%c15, %c32_21] : memref<16x64xf32, #tpu.memory_space<vmem>>, vector<1x32xf32>
    tpu.vector_store %arg18[%c15, %c32_21], %49 {strides = array<i32>} : memref<16x64xf32, #tpu.memory_space<vmem>>, vector<1x32xf32>,
    %51 = vector.extract_strided_slice %5 {offsets = [2, 0], sizes = [2, 256], strides = [1, 1]} : vector<16x256xf32> to vector<2x256xf32>
    %cst_22 = arith.constant dense<0.000000e+00> : vector<2x256xf32>
    %52 = tpu.matmul %36, %7, %cst_22 {dimension_numbers = #tpu.dot_dimension_numbers<[1], [0], [0], [1], [0, 0, 1, 1], [], []>} : vector<2x64xf32>, vector<64x256xf32>, vector<2x256xf32> -> vector<2x256xf32>
    %53 = arith.addf %51, %52 : vector<2x256xf32>
    %54 = vector.extract_strided_slice %53 {offsets = [0, 0], sizes = [2, 192], strides = [1, 1]} : vector<2x256xf32> to vector<2x192xf32>
    %55 = arith.negf %54 : vector<2x192xf32>
    %56 = math.exp %55 : vector<2x192xf32>
    %cst_23 = arith.constant 1.000000e+00 : f32
    %57 = vector.broadcast %cst_23 : f32 to vector<2x192xf32>
    %58 = arith.addf %57, %56 : vector<2x192xf32>
    %59 = arith.divf %57, %58 : vector<2x192xf32>
    %60 = vector.extract_strided_slice %53 {offsets = [0, 192], sizes = [2, 64], strides = [1, 1]} : vector<2x256xf32> to vector<2x64xf32>
    %61 = math.tanh %60 : vector<2x64xf32>
    %62 = vector.extract_strided_slice %59 {offsets = [0, 0], sizes = [2, 64], strides = [1, 1]} : vector<2x192xf32> to vector<2x64xf32>
    %63 = vector.extract_strided_slice %59 {offsets = [0, 64], sizes = [2, 64], strides = [1, 1]} : vector<2x192xf32> to vector<2x64xf32>
    %64 = vector.extract_strided_slice %59 {offsets = [0, 128], sizes = [2, 64], strides = [1, 1]} : vector<2x192xf32> to vector<2x64xf32>
    %65 = arith.mulf %63, %41 : vector<2x64xf32>
    %66 = arith.mulf %62, %61 : vector<2x64xf32>
    %67 = arith.addf %65, %66 : vector<2x64xf32>
    %68 = math.tanh %67 : vector<2x64xf32>
    %69 = arith.mulf %64, %68 : vector<2x64xf32>
    %70 = vector.extract_strided_slice %6 {offsets = [2, 0], sizes = [2, 64], strides = [1, 1]} : vector<16x64xf32> to vector<2x64xf32>
    %71 = arith.mulf %70, %69 : vector<2x64xf32>
    %cst_24 = arith.constant 1.000000e+00 : f32
    %72 = vector.broadcast %cst_24 : f32 to vector<2x64xf32>
    %73 = arith.subf %72, %70 : vector<2x64xf32>
    %74 = arith.mulf %73, %36 : vector<2x64xf32>
    %75 = arith.addf %71, %74 : vector<2x64xf32>
    %76 = arith.mulf %70, %67 : vector<2x64xf32>
    %cst_25 = arith.constant 1.000000e+00 : f32
    %77 = vector.broadcast %cst_25 : f32 to vector<2x64xf32>
    %78 = arith.subf %77, %70 : vector<2x64xf32>
    %79 = arith.mulf %78, %41 : vector<2x64xf32>
    %80 = arith.addf %76, %79 : vector<2x64xf32>
    %81 = arith.mulf %70, %69 : vector<2x64xf32>
    %82 = vector.extract_strided_slice %81 {offsets = [0, 0], sizes = [1, 32], strides = [1, 1]} : vector<2x64xf32> to vector<1x32xf32>
    %c1 = arith.constant 1 : index
    %c0_26 = arith.constant 0 : index
    %83 = vector.load %arg18[%c1, %c0_26] : memref<16x64xf32, #tpu.memory_space<vmem>>, vector<1x32xf32>
    tpu.vector_store %arg18[%c1, %c0_26], %82 {strides = array<i32>} : memref<16x64xf32, #tpu.memory_space<vmem>>, vector<1x32xf32>,
    %84 = vector.extract_strided_slice %81 {offsets = [0, 32], sizes = [1, 32], strides = [1, 1]} : vector<2x64xf32> to vector<1x32xf32>
    %c6 = arith.constant 6 : index
    %c32_27 = arith.constant 32 : index
    %85 = vector.load %arg18[%c6, %c32_27] : memref<16x64xf32, #tpu.memory_space<vmem>>, vector<1x32xf32>
    tpu.vector_store %arg18[%c6, %c32_27], %84 {strides = array<i32>} : memref<16x64xf32, #tpu.memory_space<vmem>>, vector<1x32xf32>,
    %86 = vector.extract_strided_slice %81 {offsets = [1, 0], sizes = [1, 32], strides = [1, 1]} : vector<2x64xf32> to vector<1x32xf32>
    %c9 = arith.constant 9 : index
    %c0_28 = arith.constant 0 : index
    %87 = vector.load %arg18[%c9, %c0_28] : memref<16x64xf32, #tpu.memory_space<vmem>>, vector<1x32xf32>
    tpu.vector_store %arg18[%c9, %c0_28], %86 {strides = array<i32>} : memref<16x64xf32, #tpu.memory_space<vmem>>, vector<1x32xf32>,
    %88 = vector.extract_strided_slice %81 {offsets = [1, 32], sizes = [1, 32], strides = [1, 1]} : vector<2x64xf32> to vector<1x32xf32>
    %c14 = arith.constant 14 : index
    %c32_29 = arith.constant 32 : index
    %89 = vector.load %arg18[%c14, %c32_29] : memref<16x64xf32, #tpu.memory_space<vmem>>, vector<1x32xf32>
    tpu.vector_store %arg18[%c14, %c32_29], %88 {strides = array<i32>} : memref<16x64xf32, #tpu.memory_space<vmem>>, vector<1x32xf32>,
    %90 = vector.extract_strided_slice %5 {offsets = [4, 0], sizes = [2, 256], strides = [1, 1]} : vector<16x256xf32> to vector<2x256xf32>
    %cst_30 = arith.constant dense<0.000000e+00> : vector<2x256xf32>
    %91 = tpu.matmul %75, %7, %cst_30 {dimension_numbers = #tpu.dot_dimension_numbers<[1], [0], [0], [1], [0, 0, 1, 1], [], []>} : vector<2x64xf32>, vector<64x256xf32>, vector<2x256xf32> -> vector<2x256xf32>
    %92 = arith.addf %90, %91 : vector<2x256xf32>
    %93 = vector.extract_strided_slice %92 {offsets = [0, 0], sizes = [2, 192], strides = [1, 1]} : vector<2x256xf32> to vector<2x192xf32>
    %94 = arith.negf %93 : vector<2x192xf32>
    %95 = math.exp %94 : vector<2x192xf32>
    %cst_31 = arith.constant 1.000000e+00 : f32
    %96 = vector.broadcast %cst_31 : f32 to vector<2x192xf32>
    %97 = arith.addf %96, %95 : vector<2x192xf32>
    %98 = arith.divf %96, %97 : vector<2x192xf32>
    %99 = vector.extract_strided_slice %92 {offsets = [0, 192], sizes = [2, 64], strides = [1, 1]} : vector<2x256xf32> to vector<2x64xf32>
    %100 = math.tanh %99 : vector<2x64xf32>
    %101 = vector.extract_strided_slice %98 {offsets = [0, 0], sizes = [2, 64], strides = [1, 1]} : vector<2x192xf32> to vector<2x64xf32>
    %102 = vector.extract_strided_slice %98 {offsets = [0, 64], sizes = [2, 64], strides = [1, 1]} : vector<2x192xf32> to vector<2x64xf32>
    %103 = vector.extract_strided_slice %98 {offsets = [0, 128], sizes = [2, 64], strides = [1, 1]} : vector<2x192xf32> to vector<2x64xf32>
    %104 = arith.mulf %102, %80 : vector<2x64xf32>
    %105 = arith.mulf %101, %100 : vector<2x64xf32>
    %106 = arith.addf %104, %105 : vector<2x64xf32>
    %107 = math.tanh %106 : vector<2x64xf32>
    %108 = arith.mulf %103, %107 : vector<2x64xf32>
    %109 = vector.extract_strided_slice %6 {offsets = [4, 0], sizes = [2, 64], strides = [1, 1]} : vector<16x64xf32> to vector<2x64xf32>
    %110 = arith.mulf %109, %108 : vector<2x64xf32>
    %cst_32 = arith.constant 1.000000e+00 : f32
    %111 = vector.broadcast %cst_32 : f32 to vector<2x64xf32>
    %112 = arith.subf %111, %109 : vector<2x64xf32>
    %113 = arith.mulf %112, %75 : vector<2x64xf32>
    %114 = arith.addf %110, %113 : vector<2x64xf32>
    %115 = arith.mulf %109, %106 : vector<2x64xf32>
    %cst_33 = arith.constant 1.000000e+00 : f32
    %116 = vector.broadcast %cst_33 : f32 to vector<2x64xf32>
    %117 = arith.subf %116, %109 : vector<2x64xf32>
    %118 = arith.mulf %117, %80 : vector<2x64xf32>
    %119 = arith.addf %115, %118 : vector<2x64xf32>
    %120 = arith.mulf %109, %108 : vector<2x64xf32>
    %121 = vector.extract_strided_slice %120 {offsets = [0, 0], sizes = [1, 32], strides = [1, 1]} : vector<2x64xf32> to vector<1x32xf32>
    %c2 = arith.constant 2 : index
    %c0_34 = arith.constant 0 : index
    %122 = vector.load %arg18[%c2, %c0_34] : memref<16x64xf32, #tpu.memory_space<vmem>>, vector<1x32xf32>
    tpu.vector_store %arg18[%c2, %c0_34], %121 {strides = array<i32>} : memref<16x64xf32, #tpu.memory_space<vmem>>, vector<1x32xf32>,
    %123 = vector.extract_strided_slice %120 {offsets = [0, 32], sizes = [1, 32], strides = [1, 1]} : vector<2x64xf32> to vector<1x32xf32>
    %c5 = arith.constant 5 : index
    %c32_35 = arith.constant 32 : index
    %124 = vector.load %arg18[%c5, %c32_35] : memref<16x64xf32, #tpu.memory_space<vmem>>, vector<1x32xf32>
    tpu.vector_store %arg18[%c5, %c32_35], %123 {strides = array<i32>} : memref<16x64xf32, #tpu.memory_space<vmem>>, vector<1x32xf32>,
    %125 = vector.extract_strided_slice %120 {offsets = [1, 0], sizes = [1, 32], strides = [1, 1]} : vector<2x64xf32> to vector<1x32xf32>
    %c10 = arith.constant 10 : index
    %c0_36 = arith.constant 0 : index
    %126 = vector.load %arg18[%c10, %c0_36] : memref<16x64xf32, #tpu.memory_space<vmem>>, vector<1x32xf32>
    tpu.vector_store %arg18[%c10, %c0_36], %125 {strides = array<i32>} : memref<16x64xf32, #tpu.memory_space<vmem>>, vector<1x32xf32>,
    %127 = vector.extract_strided_slice %120 {offsets = [1, 32], sizes = [1, 32], strides = [1, 1]} : vector<2x64xf32> to vector<1x32xf32>
    %c13 = arith.constant 13 : index
    %c32_37 = arith.constant 32 : index
    %128 = vector.load %arg18[%c13, %c32_37] : memref<16x64xf32, #tpu.memory_space<vmem>>, vector<1x32xf32>
    tpu.vector_store %arg18[%c13, %c32_37], %127 {strides = array<i32>} : memref<16x64xf32, #tpu.memory_space<vmem>>, vector<1x32xf32>,
    %129 = vector.extract_strided_slice %5 {offsets = [6, 0], sizes = [2, 256], strides = [1, 1]} : vector<16x256xf32> to vector<2x256xf32>
    %cst_38 = arith.constant dense<0.000000e+00> : vector<2x256xf32>
    %130 = tpu.matmul %114, %7, %cst_38 {dimension_numbers = #tpu.dot_dimension_numbers<[1], [0], [0], [1], [0, 0, 1, 1], [], []>} : vector<2x64xf32>, vector<64x256xf32>, vector<2x256xf32> -> vector<2x256xf32>
    %131 = arith.addf %129, %130 : vector<2x256xf32>
    %132 = vector.extract_strided_slice %131 {offsets = [0, 0], sizes = [2, 192], strides = [1, 1]} : vector<2x256xf32> to vector<2x192xf32>
    %133 = arith.negf %132 : vector<2x192xf32>
    %134 = math.exp %133 : vector<2x192xf32>
    %cst_39 = arith.constant 1.000000e+00 : f32
    %135 = vector.broadcast %cst_39 : f32 to vector<2x192xf32>
    %136 = arith.addf %135, %134 : vector<2x192xf32>
    %137 = arith.divf %135, %136 : vector<2x192xf32>
    %138 = vector.extract_strided_slice %131 {offsets = [0, 192], sizes = [2, 64], strides = [1, 1]} : vector<2x256xf32> to vector<2x64xf32>
    %139 = math.tanh %138 : vector<2x64xf32>
    %140 = vector.extract_strided_slice %137 {offsets = [0, 0], sizes = [2, 64], strides = [1, 1]} : vector<2x192xf32> to vector<2x64xf32>
    %141 = vector.extract_strided_slice %137 {offsets = [0, 64], sizes = [2, 64], strides = [1, 1]} : vector<2x192xf32> to vector<2x64xf32>
    %142 = vector.extract_strided_slice %137 {offsets = [0, 128], sizes = [2, 64], strides = [1, 1]} : vector<2x192xf32> to vector<2x64xf32>
    %143 = arith.mulf %141, %119 : vector<2x64xf32>
    %144 = arith.mulf %140, %139 : vector<2x64xf32>
    %145 = arith.addf %143, %144 : vector<2x64xf32>
    %146 = math.tanh %145 : vector<2x64xf32>
    %147 = arith.mulf %142, %146 : vector<2x64xf32>
    %148 = vector.extract_strided_slice %6 {offsets = [6, 0], sizes = [2, 64], strides = [1, 1]} : vector<16x64xf32> to vector<2x64xf32>
    %149 = arith.mulf %148, %147 : vector<2x64xf32>
    %cst_40 = arith.constant 1.000000e+00 : f32
    %150 = vector.broadcast %cst_40 : f32 to vector<2x64xf32>
    %151 = arith.subf %150, %148 : vector<2x64xf32>
    %152 = arith.mulf %151, %114 : vector<2x64xf32>
    %153 = arith.addf %149, %152 : vector<2x64xf32>
    %154 = arith.mulf %148, %145 : vector<2x64xf32>
    %cst_41 = arith.constant 1.000000e+00 : f32
    %155 = vector.broadcast %cst_41 : f32 to vector<2x64xf32>
    %156 = arith.subf %155, %148 : vector<2x64xf32>
    %157 = arith.mulf %156, %119 : vector<2x64xf32>
    %158 = arith.addf %154, %157 : vector<2x64xf32>
    %159 = arith.mulf %148, %147 : vector<2x64xf32>
    %160 = vector.extract_strided_slice %159 {offsets = [0, 0], sizes = [1, 32], strides = [1, 1]} : vector<2x64xf32> to vector<1x32xf32>
    %c3 = arith.constant 3 : index
    %c0_42 = arith.constant 0 : index
    %161 = vector.load %arg18[%c3, %c0_42] : memref<16x64xf32, #tpu.memory_space<vmem>>, vector<1x32xf32>
    tpu.vector_store %arg18[%c3, %c0_42], %160 {strides = array<i32>} : memref<16x64xf32, #tpu.memory_space<vmem>>, vector<1x32xf32>,
    %162 = vector.extract_strided_slice %159 {offsets = [0, 32], sizes = [1, 32], strides = [1, 1]} : vector<2x64xf32> to vector<1x32xf32>
    %c4 = arith.constant 4 : index
    %c32_43 = arith.constant 32 : index
    %163 = vector.load %arg18[%c4, %c32_43] : memref<16x64xf32, #tpu.memory_space<vmem>>, vector<1x32xf32>
    tpu.vector_store %arg18[%c4, %c32_43], %162 {strides = array<i32>} : memref<16x64xf32, #tpu.memory_space<vmem>>, vector<1x32xf32>,
    %164 = vector.extract_strided_slice %159 {offsets = [1, 0], sizes = [1, 32], strides = [1, 1]} : vector<2x64xf32> to vector<1x32xf32>
    %c11 = arith.constant 11 : index
    %c0_44 = arith.constant 0 : index
    %165 = vector.load %arg18[%c11, %c0_44] : memref<16x64xf32, #tpu.memory_space<vmem>>, vector<1x32xf32>
    tpu.vector_store %arg18[%c11, %c0_44], %164 {strides = array<i32>} : memref<16x64xf32, #tpu.memory_space<vmem>>, vector<1x32xf32>,
    %166 = vector.extract_strided_slice %159 {offsets = [1, 32], sizes = [1, 32], strides = [1, 1]} : vector<2x64xf32> to vector<1x32xf32>
    %c12 = arith.constant 12 : index
    %c32_45 = arith.constant 32 : index
    %167 = vector.load %arg18[%c12, %c32_45] : memref<16x64xf32, #tpu.memory_space<vmem>>, vector<1x32xf32>
    tpu.vector_store %arg18[%c12, %c32_45], %166 {strides = array<i32>} : memref<16x64xf32, #tpu.memory_space<vmem>>, vector<1x32xf32>,
    %168 = vector.extract_strided_slice %5 {offsets = [8, 0], sizes = [2, 256], strides = [1, 1]} : vector<16x256xf32> to vector<2x256xf32>
    %cst_46 = arith.constant dense<0.000000e+00> : vector<2x256xf32>
    %169 = tpu.matmul %153, %7, %cst_46 {dimension_numbers = #tpu.dot_dimension_numbers<[1], [0], [0], [1], [0, 0, 1, 1], [], []>} : vector<2x64xf32>, vector<64x256xf32>, vector<2x256xf32> -> vector<2x256xf32>
    %170 = arith.addf %168, %169 : vector<2x256xf32>
    %171 = vector.extract_strided_slice %170 {offsets = [0, 0], sizes = [2, 192], strides = [1, 1]} : vector<2x256xf32> to vector<2x192xf32>
    %172 = arith.negf %171 : vector<2x192xf32>
    %173 = math.exp %172 : vector<2x192xf32>
    %cst_47 = arith.constant 1.000000e+00 : f32
    %174 = vector.broadcast %cst_47 : f32 to vector<2x192xf32>
    %175 = arith.addf %174, %173 : vector<2x192xf32>
    %176 = arith.divf %174, %175 : vector<2x192xf32>
    %177 = vector.extract_strided_slice %170 {offsets = [0, 192], sizes = [2, 64], strides = [1, 1]} : vector<2x256xf32> to vector<2x64xf32>
    %178 = math.tanh %177 : vector<2x64xf32>
    %179 = vector.extract_strided_slice %176 {offsets = [0, 0], sizes = [2, 64], strides = [1, 1]} : vector<2x192xf32> to vector<2x64xf32>
    %180 = vector.extract_strided_slice %176 {offsets = [0, 64], sizes = [2, 64], strides = [1, 1]} : vector<2x192xf32> to vector<2x64xf32>
    %181 = vector.extract_strided_slice %176 {offsets = [0, 128], sizes = [2, 64], strides = [1, 1]} : vector<2x192xf32> to vector<2x64xf32>
    %182 = arith.mulf %180, %158 : vector<2x64xf32>
    %183 = arith.mulf %179, %178 : vector<2x64xf32>
    %184 = arith.addf %182, %183 : vector<2x64xf32>
    %185 = math.tanh %184 : vector<2x64xf32>
    %186 = arith.mulf %181, %185 : vector<2x64xf32>
    %187 = vector.extract_strided_slice %6 {offsets = [8, 0], sizes = [2, 64], strides = [1, 1]} : vector<16x64xf32> to vector<2x64xf32>
    %188 = arith.mulf %187, %186 : vector<2x64xf32>
    %cst_48 = arith.constant 1.000000e+00 : f32
    %189 = vector.broadcast %cst_48 : f32 to vector<2x64xf32>
    %190 = arith.subf %189, %187 : vector<2x64xf32>
    %191 = arith.mulf %190, %153 : vector<2x64xf32>
    %192 = arith.addf %188, %191 : vector<2x64xf32>
    %193 = arith.mulf %187, %184 : vector<2x64xf32>
    %cst_49 = arith.constant 1.000000e+00 : f32
    %194 = vector.broadcast %cst_49 : f32 to vector<2x64xf32>
    %195 = arith.subf %194, %187 : vector<2x64xf32>
    %196 = arith.mulf %195, %158 : vector<2x64xf32>
    %197 = arith.addf %193, %196 : vector<2x64xf32>
    %198 = arith.mulf %187, %186 : vector<2x64xf32>
    %199 = vector.extract_strided_slice %198 {offsets = [0, 0], sizes = [1, 32], strides = [1, 1]} : vector<2x64xf32> to vector<1x32xf32>
    %c4_50 = arith.constant 4 : index
    %c0_51 = arith.constant 0 : index
    %200 = vector.load %arg18[%c4_50, %c0_51] : memref<16x64xf32, #tpu.memory_space<vmem>>, vector<1x32xf32>
    tpu.vector_store %arg18[%c4_50, %c0_51], %199 {strides = array<i32>} : memref<16x64xf32, #tpu.memory_space<vmem>>, vector<1x32xf32>,
    %201 = vector.extract_strided_slice %198 {offsets = [0, 32], sizes = [1, 32], strides = [1, 1]} : vector<2x64xf32> to vector<1x32xf32>
    %c3_52 = arith.constant 3 : index
    %c32_53 = arith.constant 32 : index
    %202 = vector.load %arg18[%c3_52, %c32_53] : memref<16x64xf32, #tpu.memory_space<vmem>>, vector<1x32xf32>
    tpu.vector_store %arg18[%c3_52, %c32_53], %201 {strides = array<i32>} : memref<16x64xf32, #tpu.memory_space<vmem>>, vector<1x32xf32>,
    %203 = vector.extract_strided_slice %198 {offsets = [1, 0], sizes = [1, 32], strides = [1, 1]} : vector<2x64xf32> to vector<1x32xf32>
    %c12_54 = arith.constant 12 : index
    %c0_55 = arith.constant 0 : index
    %204 = vector.load %arg18[%c12_54, %c0_55] : memref<16x64xf32, #tpu.memory_space<vmem>>, vector<1x32xf32>
    tpu.vector_store %arg18[%c12_54, %c0_55], %203 {strides = array<i32>} : memref<16x64xf32, #tpu.memory_space<vmem>>, vector<1x32xf32>,
    %205 = vector.extract_strided_slice %198 {offsets = [1, 32], sizes = [1, 32], strides = [1, 1]} : vector<2x64xf32> to vector<1x32xf32>
    %c11_56 = arith.constant 11 : index
    %c32_57 = arith.constant 32 : index
    %206 = vector.load %arg18[%c11_56, %c32_57] : memref<16x64xf32, #tpu.memory_space<vmem>>, vector<1x32xf32>
    tpu.vector_store %arg18[%c11_56, %c32_57], %205 {strides = array<i32>} : memref<16x64xf32, #tpu.memory_space<vmem>>, vector<1x32xf32>,
    %207 = vector.extract_strided_slice %5 {offsets = [10, 0], sizes = [2, 256], strides = [1, 1]} : vector<16x256xf32> to vector<2x256xf32>
    %cst_58 = arith.constant dense<0.000000e+00> : vector<2x256xf32>
    %208 = tpu.matmul %192, %7, %cst_58 {dimension_numbers = #tpu.dot_dimension_numbers<[1], [0], [0], [1], [0, 0, 1, 1], [], []>} : vector<2x64xf32>, vector<64x256xf32>, vector<2x256xf32> -> vector<2x256xf32>
    %209 = arith.addf %207, %208 : vector<2x256xf32>
    %210 = vector.extract_strided_slice %209 {offsets = [0, 0], sizes = [2, 192], strides = [1, 1]} : vector<2x256xf32> to vector<2x192xf32>
    %211 = arith.negf %210 : vector<2x192xf32>
    %212 = math.exp %211 : vector<2x192xf32>
    %cst_59 = arith.constant 1.000000e+00 : f32
    %213 = vector.broadcast %cst_59 : f32 to vector<2x192xf32>
    %214 = arith.addf %213, %212 : vector<2x192xf32>
    %215 = arith.divf %213, %214 : vector<2x192xf32>
    %216 = vector.extract_strided_slice %209 {offsets = [0, 192], sizes = [2, 64], strides = [1, 1]} : vector<2x256xf32> to vector<2x64xf32>
    %217 = math.tanh %216 : vector<2x64xf32>
    %218 = vector.extract_strided_slice %215 {offsets = [0, 0], sizes = [2, 64], strides = [1, 1]} : vector<2x192xf32> to vector<2x64xf32>
    %219 = vector.extract_strided_slice %215 {offsets = [0, 64], sizes = [2, 64], strides = [1, 1]} : vector<2x192xf32> to vector<2x64xf32>
    %220 = vector.extract_strided_slice %215 {offsets = [0, 128], sizes = [2, 64], strides = [1, 1]} : vector<2x192xf32> to vector<2x64xf32>
    %221 = arith.mulf %219, %197 : vector<2x64xf32>
    %222 = arith.mulf %218, %217 : vector<2x64xf32>
    %223 = arith.addf %221, %222 : vector<2x64xf32>
    %224 = math.tanh %223 : vector<2x64xf32>
    %225 = arith.mulf %220, %224 : vector<2x64xf32>
    %226 = vector.extract_strided_slice %6 {offsets = [10, 0], sizes = [2, 64], strides = [1, 1]} : vector<16x64xf32> to vector<2x64xf32>
    %227 = arith.mulf %226, %225 : vector<2x64xf32>
    %cst_60 = arith.constant 1.000000e+00 : f32
    %228 = vector.broadcast %cst_60 : f32 to vector<2x64xf32>
    %229 = arith.subf %228, %226 : vector<2x64xf32>
    %230 = arith.mulf %229, %192 : vector<2x64xf32>
    %231 = arith.addf %227, %230 : vector<2x64xf32>
    %232 = arith.mulf %226, %223 : vector<2x64xf32>
    %cst_61 = arith.constant 1.000000e+00 : f32
    %233 = vector.broadcast %cst_61 : f32 to vector<2x64xf32>
    %234 = arith.subf %233, %226 : vector<2x64xf32>
    %235 = arith.mulf %234, %197 : vector<2x64xf32>
    %236 = arith.addf %232, %235 : vector<2x64xf32>
    %237 = arith.mulf %226, %225 : vector<2x64xf32>
    %238 = vector.extract_strided_slice %237 {offsets = [0, 0], sizes = [1, 32], strides = [1, 1]} : vector<2x64xf32> to vector<1x32xf32>
    %c5_62 = arith.constant 5 : index
    %c0_63 = arith.constant 0 : index
    %239 = vector.load %arg18[%c5_62, %c0_63] : memref<16x64xf32, #tpu.memory_space<vmem>>, vector<1x32xf32>
    tpu.vector_store %arg18[%c5_62, %c0_63], %238 {strides = array<i32>} : memref<16x64xf32, #tpu.memory_space<vmem>>, vector<1x32xf32>,
    %240 = vector.extract_strided_slice %237 {offsets = [0, 32], sizes = [1, 32], strides = [1, 1]} : vector<2x64xf32> to vector<1x32xf32>
    %c2_64 = arith.constant 2 : index
    %c32_65 = arith.constant 32 : index
    %241 = vector.load %arg18[%c2_64, %c32_65] : memref<16x64xf32, #tpu.memory_space<vmem>>, vector<1x32xf32>
    tpu.vector_store %arg18[%c2_64, %c32_65], %240 {strides = array<i32>} : memref<16x64xf32, #tpu.memory_space<vmem>>, vector<1x32xf32>,
    %242 = vector.extract_strided_slice %237 {offsets = [1, 0], sizes = [1, 32], strides = [1, 1]} : vector<2x64xf32> to vector<1x32xf32>
    %c13_66 = arith.constant 13 : index
    %c0_67 = arith.constant 0 : index
    %243 = vector.load %arg18[%c13_66, %c0_67] : memref<16x64xf32, #tpu.memory_space<vmem>>, vector<1x32xf32>
    tpu.vector_store %arg18[%c13_66, %c0_67], %242 {strides = array<i32>} : memref<16x64xf32, #tpu.memory_space<vmem>>, vector<1x32xf32>,
    %244 = vector.extract_strided_slice %237 {offsets = [1, 32], sizes = [1, 32], strides = [1, 1]} : vector<2x64xf32> to vector<1x32xf32>
    %c10_68 = arith.constant 10 : index
    %c32_69 = arith.constant 32 : index
    %245 = vector.load %arg18[%c10_68, %c32_69] : memref<16x64xf32, #tpu.memory_space<vmem>>, vector<1x32xf32>
    tpu.vector_store %arg18[%c10_68, %c32_69], %244 {strides = array<i32>} : memref<16x64xf32, #tpu.memory_space<vmem>>, vector<1x32xf32>,
    %246 = vector.extract_strided_slice %5 {offsets = [12, 0], sizes = [2, 256], strides = [1, 1]} : vector<16x256xf32> to vector<2x256xf32>
    %cst_70 = arith.constant dense<0.000000e+00> : vector<2x256xf32>
    %247 = tpu.matmul %231, %7, %cst_70 {dimension_numbers = #tpu.dot_dimension_numbers<[1], [0], [0], [1], [0, 0, 1, 1], [], []>} : vector<2x64xf32>, vector<64x256xf32>, vector<2x256xf32> -> vector<2x256xf32>
    %248 = arith.addf %246, %247 : vector<2x256xf32>
    %249 = vector.extract_strided_slice %248 {offsets = [0, 0], sizes = [2, 192], strides = [1, 1]} : vector<2x256xf32> to vector<2x192xf32>
    %250 = arith.negf %249 : vector<2x192xf32>
    %251 = math.exp %250 : vector<2x192xf32>
    %cst_71 = arith.constant 1.000000e+00 : f32
    %252 = vector.broadcast %cst_71 : f32 to vector<2x192xf32>
    %253 = arith.addf %252, %251 : vector<2x192xf32>
    %254 = arith.divf %252, %253 : vector<2x192xf32>
    %255 = vector.extract_strided_slice %248 {offsets = [0, 192], sizes = [2, 64], strides = [1, 1]} : vector<2x256xf32> to vector<2x64xf32>
    %256 = math.tanh %255 : vector<2x64xf32>
    %257 = vector.extract_strided_slice %254 {offsets = [0, 0], sizes = [2, 64], strides = [1, 1]} : vector<2x192xf32> to vector<2x64xf32>
    %258 = vector.extract_strided_slice %254 {offsets = [0, 64], sizes = [2, 64], strides = [1, 1]} : vector<2x192xf32> to vector<2x64xf32>
    %259 = vector.extract_strided_slice %254 {offsets = [0, 128], sizes = [2, 64], strides = [1, 1]} : vector<2x192xf32> to vector<2x64xf32>
    %260 = arith.mulf %258, %236 : vector<2x64xf32>
    %261 = arith.mulf %257, %256 : vector<2x64xf32>
    %262 = arith.addf %260, %261 : vector<2x64xf32>
    %263 = math.tanh %262 : vector<2x64xf32>
    %264 = arith.mulf %259, %263 : vector<2x64xf32>
    %265 = vector.extract_strided_slice %6 {offsets = [12, 0], sizes = [2, 64], strides = [1, 1]} : vector<16x64xf32> to vector<2x64xf32>
    %266 = arith.mulf %265, %264 : vector<2x64xf32>
    %cst_72 = arith.constant 1.000000e+00 : f32
    %267 = vector.broadcast %cst_72 : f32 to vector<2x64xf32>
    %268 = arith.subf %267, %265 : vector<2x64xf32>
    %269 = arith.mulf %268, %231 : vector<2x64xf32>
    %270 = arith.addf %266, %269 : vector<2x64xf32>
    %271 = arith.mulf %265, %262 : vector<2x64xf32>
    %cst_73 = arith.constant 1.000000e+00 : f32
    %272 = vector.broadcast %cst_73 : f32 to vector<2x64xf32>
    %273 = arith.subf %272, %265 : vector<2x64xf32>
    %274 = arith.mulf %273, %236 : vector<2x64xf32>
    %275 = arith.addf %271, %274 : vector<2x64xf32>
    %276 = arith.mulf %265, %264 : vector<2x64xf32>
    %277 = vector.extract_strided_slice %276 {offsets = [0, 0], sizes = [1, 32], strides = [1, 1]} : vector<2x64xf32> to vector<1x32xf32>
    %c6_74 = arith.constant 6 : index
    %c0_75 = arith.constant 0 : index
    %278 = vector.load %arg18[%c6_74, %c0_75] : memref<16x64xf32, #tpu.memory_space<vmem>>, vector<1x32xf32>
    tpu.vector_store %arg18[%c6_74, %c0_75], %277 {strides = array<i32>} : memref<16x64xf32, #tpu.memory_space<vmem>>, vector<1x32xf32>,
    %279 = vector.extract_strided_slice %276 {offsets = [0, 32], sizes = [1, 32], strides = [1, 1]} : vector<2x64xf32> to vector<1x32xf32>
    %c1_76 = arith.constant 1 : index
    %c32_77 = arith.constant 32 : index
    %280 = vector.load %arg18[%c1_76, %c32_77] : memref<16x64xf32, #tpu.memory_space<vmem>>, vector<1x32xf32>
    tpu.vector_store %arg18[%c1_76, %c32_77], %279 {strides = array<i32>} : memref<16x64xf32, #tpu.memory_space<vmem>>, vector<1x32xf32>,
    %281 = vector.extract_strided_slice %276 {offsets = [1, 0], sizes = [1, 32], strides = [1, 1]} : vector<2x64xf32> to vector<1x32xf32>
    %c14_78 = arith.constant 14 : index
    %c0_79 = arith.constant 0 : index
    %282 = vector.load %arg18[%c14_78, %c0_79] : memref<16x64xf32, #tpu.memory_space<vmem>>, vector<1x32xf32>
    tpu.vector_store %arg18[%c14_78, %c0_79], %281 {strides = array<i32>} : memref<16x64xf32, #tpu.memory_space<vmem>>, vector<1x32xf32>,
    %283 = vector.extract_strided_slice %276 {offsets = [1, 32], sizes = [1, 32], strides = [1, 1]} : vector<2x64xf32> to vector<1x32xf32>
    %c9_80 = arith.constant 9 : index
    %c32_81 = arith.constant 32 : index
    %284 = vector.load %arg18[%c9_80, %c32_81] : memref<16x64xf32, #tpu.memory_space<vmem>>, vector<1x32xf32>
    tpu.vector_store %arg18[%c9_80, %c32_81], %283 {strides = array<i32>} : memref<16x64xf32, #tpu.memory_space<vmem>>, vector<1x32xf32>,
    %285 = vector.extract_strided_slice %5 {offsets = [14, 0], sizes = [2, 256], strides = [1, 1]} : vector<16x256xf32> to vector<2x256xf32>
    %cst_82 = arith.constant dense<0.000000e+00> : vector<2x256xf32>
    %286 = tpu.matmul %270, %7, %cst_82 {dimension_numbers = #tpu.dot_dimension_numbers<[1], [0], [0], [1], [0, 0, 1, 1], [], []>} : vector<2x64xf32>, vector<64x256xf32>, vector<2x256xf32> -> vector<2x256xf32>
    %287 = arith.addf %285, %286 : vector<2x256xf32>
    %288 = vector.extract_strided_slice %287 {offsets = [0, 0], sizes = [2, 192], strides = [1, 1]} : vector<2x256xf32> to vector<2x192xf32>
    %289 = arith.negf %288 : vector<2x192xf32>
    %290 = math.exp %289 : vector<2x192xf32>
    %cst_83 = arith.constant 1.000000e+00 : f32
    %291 = vector.broadcast %cst_83 : f32 to vector<2x192xf32>
    %292 = arith.addf %291, %290 : vector<2x192xf32>
    %293 = arith.divf %291, %292 : vector<2x192xf32>
    %294 = vector.extract_strided_slice %287 {offsets = [0, 192], sizes = [2, 64], strides = [1, 1]} : vector<2x256xf32> to vector<2x64xf32>
    %295 = math.tanh %294 : vector<2x64xf32>
    %296 = vector.extract_strided_slice %293 {offsets = [0, 0], sizes = [2, 64], strides = [1, 1]} : vector<2x192xf32> to vector<2x64xf32>
    %297 = vector.extract_strided_slice %293 {offsets = [0, 64], sizes = [2, 64], strides = [1, 1]} : vector<2x192xf32> to vector<2x64xf32>
    %298 = vector.extract_strided_slice %293 {offsets = [0, 128], sizes = [2, 64], strides = [1, 1]} : vector<2x192xf32> to vector<2x64xf32>
    %299 = arith.mulf %297, %275 : vector<2x64xf32>
    %300 = arith.mulf %296, %295 : vector<2x64xf32>
    %301 = arith.addf %299, %300 : vector<2x64xf32>
    %302 = math.tanh %301 : vector<2x64xf32>
    %303 = arith.mulf %298, %302 : vector<2x64xf32>
    %304 = vector.extract_strided_slice %6 {offsets = [14, 0], sizes = [2, 64], strides = [1, 1]} : vector<16x64xf32> to vector<2x64xf32>
    %305 = arith.mulf %304, %303 : vector<2x64xf32>
    %306 = vector.extract_strided_slice %305 {offsets = [0, 0], sizes = [1, 32], strides = [1, 1]} : vector<2x64xf32> to vector<1x32xf32>
    %c7_84 = arith.constant 7 : index
    %c0_85 = arith.constant 0 : index
    %307 = vector.load %arg18[%c7_84, %c0_85] : memref<16x64xf32, #tpu.memory_space<vmem>>, vector<1x32xf32>
    tpu.vector_store %arg18[%c7_84, %c0_85], %306 {strides = array<i32>} : memref<16x64xf32, #tpu.memory_space<vmem>>, vector<1x32xf32>,
    %308 = vector.extract_strided_slice %305 {offsets = [0, 32], sizes = [1, 32], strides = [1, 1]} : vector<2x64xf32> to vector<1x32xf32>
    %c0_86 = arith.constant 0 : index
    %c32_87 = arith.constant 32 : index
    %309 = vector.load %arg18[%c0_86, %c32_87] : memref<16x64xf32, #tpu.memory_space<vmem>>, vector<1x32xf32>
    tpu.vector_store %arg18[%c0_86, %c32_87], %308 {strides = array<i32>} : memref<16x64xf32, #tpu.memory_space<vmem>>, vector<1x32xf32>,
    %310 = vector.extract_strided_slice %305 {offsets = [1, 0], sizes = [1, 32], strides = [1, 1]} : vector<2x64xf32> to vector<1x32xf32>
    %c15_88 = arith.constant 15 : index
    %c0_89 = arith.constant 0 : index
    %311 = vector.load %arg18[%c15_88, %c0_89] : memref<16x64xf32, #tpu.memory_space<vmem>>, vector<1x32xf32>
    tpu.vector_store %arg18[%c15_88, %c0_89], %310 {strides = array<i32>} : memref<16x64xf32, #tpu.memory_space<vmem>>, vector<1x32xf32>,
    %312 = vector.extract_strided_slice %305 {offsets = [1, 32], sizes = [1, 32], strides = [1, 1]} : vector<2x64xf32> to vector<1x32xf32>
    %c8_90 = arith.constant 8 : index
    %c32_91 = arith.constant 32 : index
    %313 = vector.load %arg18[%c8_90, %c32_91] : memref<16x64xf32, #tpu.memory_space<vmem>>, vector<1x32xf32>
    tpu.vector_store %arg18[%c8_90, %c32_91], %312 {strides = array<i32>} : memref<16x64xf32, #tpu.memory_space<vmem>>, vector<1x32xf32>,
    %c0_92 = arith.constant 0 : index
    %c0_93 = arith.constant 0 : index
    %314 = vector.load %arg18[%c0_92, %c0_93] : memref<16x64xf32, #tpu.memory_space<vmem>>, vector<16x64xf32>
    %c0_94 = arith.constant 0 : index
    %c0_95 = arith.constant 0 : index
    %315 = vector.load %arg7[%c0_94, %c0_95] : memref<64x128xf32, #tpu.memory_space<vmem>>, vector<64x128xf32>
    %cst_96 = arith.constant dense<0.000000e+00> : vector<16x128xf32>
    %316 = tpu.matmul %314, %315, %cst_96 {dimension_numbers = #tpu.dot_dimension_numbers<[1], [0], [0], [1], [0, 0, 1, 1], [], []>} : vector<16x64xf32>, vector<64x128xf32>, vector<16x128xf32> -> vector<16x128xf32>
    %317 = vector.extract_strided_slice %316 {offsets = [0, 64], sizes = [16, 64], strides = [1, 1]} : vector<16x128xf32> to vector<16x64xf32>
    %318 = math.tanh %317 : vector<16x64xf32>
    %319 = vector.extract_strided_slice %314 {offsets = [0, 0], sizes = [8, 64], strides = [1, 1]} : vector<16x64xf32> to vector<8x64xf32>
    %c0_97 = arith.constant 0 : index
    %c0_98 = arith.constant 0 : index
    %320 = vector.load %arg2[%c0_97, %c0_98] : memref<2x8xf32, #tpu.memory_space<vmem>>, vector<1x8xf32>
    %cst_99 = arith.constant 1.000000e+00 : f32
    %321 = vector.broadcast %cst_99 : f32 to vector<1x8xf32>
    %322 = arith.subf %320, %321 : vector<1x8xf32>
    %cst_100 = arith.constant 1.000000e+30 : f32
    %323 = vector.broadcast %cst_100 : f32 to vector<1x8xf32>
    %324 = arith.mulf %322, %323 : vector<1x8xf32>
    %c0_101 = arith.constant 0 : index
    %c0_102 = arith.constant 0 : index
    %325 = vector.load %arg8[%c0_101, %c0_102] : memref<1x64xf32, #tpu.memory_space<vmem>>, vector<1x64xf32>
    %326 = vector.extract_strided_slice %318 {offsets = [0, 0], sizes = [8, 64], strides = [1, 1]} : vector<16x64xf32> to vector<8x64xf32>
    %cst_103 = arith.constant dense<0.000000e+00> : vector<1x8xf32>
    %327 = tpu.matmul %325, %326, %cst_103 {dimension_numbers = #tpu.dot_dimension_numbers<[1], [1], [0], [0], [0, 0, 1, 0], [], []>} : vector<1x64xf32>, vector<8x64xf32>, vector<1x8xf32> -> vector<1x8xf32>
    %328 = arith.addf %327, %324 : vector<1x8xf32>
    %cst_104 = arith.constant dense<0xFF800000> : vector<1xf32>
    %329 = vector.multi_reduction <maximumf>, %328, %cst_104 [1] : vector<1x8xf32> to vector<1xf32>
    %330 = vector.shape_cast %329 : vector<1xf32> to vector<1x1xf32>
    %331 = vector.broadcast %330 : vector<1x1xf32> to vector<1x8xf32>
    %332 = arith.subf %328, %331 : vector<1x8xf32>
    %333 = math.exp %332 : vector<1x8xf32>
    %cst_105 = arith.constant dense<0.000000e+00> : vector<1xf32>
    %334 = vector.multi_reduction <add>, %333, %cst_105 [1] : vector<1x8xf32> to vector<1xf32>
    %335 = vector.shape_cast %334 : vector<1xf32> to vector<1x1xf32>
    %336 = tpu.reciprocal %335 {approx = true} : vector<1x1xf32> -> vector<1x1xf32>
    %337 = vector.broadcast %336 : vector<1x1xf32> to vector<1x8xf32>
    %338 = arith.mulf %333, %337 : vector<1x8xf32>
    %cst_106 = arith.constant dense<0.000000e+00> : vector<1x64xf32>
    %339 = tpu.matmul %338, %319, %cst_106 {dimension_numbers = #tpu.dot_dimension_numbers<[1], [0], [0], [1], [0, 0, 1, 1], [], []>} : vector<1x8xf32>, vector<8x64xf32>, vector<1x64xf32> -> vector<1x64xf32>
    %340 = vector.extract_strided_slice %316 {offsets = [0, 0], sizes = [8, 64], strides = [1, 1]} : vector<16x128xf32> to vector<8x64xf32>
    %cst_107 = arith.constant dense<0.000000e+00> : vector<8x8xf32>
    %341 = tpu.matmul %340, %319, %cst_107 {dimension_numbers = #tpu.dot_dimension_numbers<[1], [1], [0], [0], [0, 0, 1, 0], [], []>} : vector<8x64xf32>, vector<8x64xf32>, vector<8x8xf32> -> vector<8x8xf32>
    %cst_108 = arith.constant 1.250000e-01 : f32
    %342 = vector.broadcast %cst_108 : f32 to vector<8x8xf32>
    %343 = arith.mulf %341, %342 : vector<8x8xf32>
    %344 = vector.broadcast %324 : vector<1x8xf32> to vector<8x8xf32>
    %345 = arith.addf %343, %344 : vector<8x8xf32>
    %cst_109 = arith.constant dense<0xFF800000> : vector<8xf32>
    %346 = vector.multi_reduction <maximumf>, %345, %cst_109 [1] : vector<8x8xf32> to vector<8xf32>
    %347 = vector.shape_cast %346 : vector<8xf32> to vector<8x1xf32>
    %348 = vector.broadcast %347 : vector<8x1xf32> to vector<8x8xf32>
    %349 = arith.subf %345, %348 : vector<8x8xf32>
    %350 = math.exp %349 : vector<8x8xf32>
    %cst_110 = arith.constant dense<0.000000e+00> : vector<8xf32>
    %351 = vector.multi_reduction <add>, %350, %cst_110 [1] : vector<8x8xf32> to vector<8xf32>
    %352 = vector.shape_cast %351 : vector<8xf32> to vector<8x1xf32>
    %353 = tpu.reciprocal %352 {approx = true} : vector<8x1xf32> -> vector<8x1xf32>
    %354 = vector.broadcast %353 : vector<8x1xf32> to vector<8x8xf32>
    %355 = arith.mulf %350, %354 : vector<8x8xf32>
    %cst_111 = arith.constant dense<0.000000e+00> : vector<8x64xf32>
    %356 = tpu.matmul %355, %319, %cst_111 {dimension_numbers = #tpu.dot_dimension_numbers<[1], [0], [0], [1], [0, 0, 1, 1], [], []>} : vector<8x8xf32>, vector<8x64xf32>, vector<8x64xf32> -> vector<8x64xf32>
    %c0_112 = arith.constant 0 : index
    %c0_113 = arith.constant 0 : index
    %357 = vector.load %arg10[%c0_112, %c0_113] : memref<64x128xf32, #tpu.memory_space<vmem>>, vector<64x128xf32>
    %cst_114 = arith.constant dense<0.000000e+00> : vector<1x128xf32>
    %358 = tpu.matmul %339, %357, %cst_114 {dimension_numbers = #tpu.dot_dimension_numbers<[1], [0], [0], [1], [0, 0, 1, 1], [], []>} : vector<1x64xf32>, vector<64x128xf32>, vector<1x128xf32> -> vector<1x128xf32>
    %c0_115 = arith.constant 0 : index
    %c0_116 = arith.constant 0 : index
    %359 = vector.load %arg9[%c0_115, %c0_116] : memref<64x64xf32, #tpu.memory_space<vmem>>, vector<64x64xf32>
    %cst_117 = arith.constant dense<0.000000e+00> : vector<8x64xf32>
    %360 = tpu.matmul %356, %359, %cst_117 {dimension_numbers = #tpu.dot_dimension_numbers<[1], [0], [0], [1], [0, 0, 1, 1], [], []>} : vector<8x64xf32>, vector<64x64xf32>, vector<8x64xf32> -> vector<8x64xf32>
    %361 = vector.extract_strided_slice %358 {offsets = [0, 0], sizes = [1, 64], strides = [1, 1]} : vector<1x128xf32> to vector<1x64xf32>
    %362 = vector.broadcast %361 : vector<1x64xf32> to vector<8x64xf32>
    %363 = arith.addf %360, %362 : vector<8x64xf32>
    %cst_118 = arith.constant 0.000000e+00 : f32
    %364 = vector.broadcast %cst_118 : f32 to vector<8x64xf32>
    %365 = arith.maximumf %363, %364 : vector<8x64xf32>
    %c0_119 = arith.constant 0 : index
    %c0_120 = arith.constant 0 : index
    %366 = vector.load %arg12[%c0_119, %c0_120] : memref<64x256xf32, #tpu.memory_space<vmem>>, vector<64x256xf32>
    %cst_121 = arith.constant dense<0.000000e+00> : vector<8x256xf32>
    %367 = tpu.matmul %365, %366, %cst_121 {dimension_numbers = #tpu.dot_dimension_numbers<[1], [0], [0], [1], [0, 0, 1, 1], [], []>} : vector<8x64xf32>, vector<64x256xf32>, vector<8x256xf32> -> vector<8x256xf32>
    %c0_122 = arith.constant 0 : index
    %c0_123 = arith.constant 0 : index
    %368 = vector.load %arg13[%c0_122, %c0_123] : memref<1x256xf32, #tpu.memory_space<vmem>>, vector<1x256xf32>
    %369 = vector.broadcast %368 : vector<1x256xf32> to vector<8x256xf32>
    %370 = arith.addf %367, %369 : vector<8x256xf32>
    %c0_124 = arith.constant 0 : index
    %c0_125 = arith.constant 0 : index
    %371 = vector.load %arg16[%c0_124, %c0_125] : memref<16x256xf32, #tpu.memory_space<vmem>>, vector<8x256xf32>
    tpu.vector_store %arg16[%c0_124, %c0_125], %370 {strides = array<i32>} : memref<16x256xf32, #tpu.memory_space<vmem>>, vector<8x256xf32>,
    %c0_126 = arith.constant 0 : index
    %c0_127 = arith.constant 0 : index
    %372 = vector.load %arg3[%c0_126, %c0_127] : memref<2x8xf32, #tpu.memory_space<vmem>>, vector<1x8xf32>
    %cst_128 = arith.constant dense<0.000000e+00> : vector<1x64xf32>
    %373 = tpu.matmul %372, %356, %cst_128 {dimension_numbers = #tpu.dot_dimension_numbers<[1], [0], [0], [1], [0, 0, 1, 1], [], []>} : vector<1x8xf32>, vector<8x64xf32>, vector<1x64xf32> -> vector<1x64xf32>
    %374 = vector.extract_strided_slice %358 {offsets = [0, 64], sizes = [1, 64], strides = [1, 1]} : vector<1x128xf32> to vector<1x64xf32>
    %c0_129 = arith.constant 0 : index
    %c0_130 = arith.constant 0 : index
    %375 = vector.load %arg11[%c0_129, %c0_130] : memref<64x64xf32, #tpu.memory_space<vmem>>, vector<64x64xf32>
    %cst_131 = arith.constant dense<0.000000e+00> : vector<1x64xf32>
    %376 = tpu.matmul %373, %375, %cst_131 {dimension_numbers = #tpu.dot_dimension_numbers<[1], [0], [0], [1], [0, 0, 1, 1], [], []>} : vector<1x64xf32>, vector<64x64xf32>, vector<1x64xf32> -> vector<1x64xf32>
    %377 = arith.addf %374, %376 : vector<1x64xf32>
    %cst_132 = arith.constant 0.000000e+00 : f32
    %378 = vector.broadcast %cst_132 : f32 to vector<1x64xf32>
    %379 = arith.maximumf %377, %378 : vector<1x64xf32>
    %c0_133 = arith.constant 0 : index
    %c0_134 = arith.constant 0 : index
    %380 = vector.load %arg14[%c0_133, %c0_134] : memref<64x128xf32, #tpu.memory_space<vmem>>, vector<64x128xf32>
    %cst_135 = arith.constant dense<0.000000e+00> : vector<1x128xf32>
    %381 = tpu.matmul %379, %380, %cst_135 {dimension_numbers = #tpu.dot_dimension_numbers<[1], [0], [0], [1], [0, 0, 1, 1], [], []>} : vector<1x64xf32>, vector<64x128xf32>, vector<1x128xf32> -> vector<1x128xf32>
    %c0_136 = arith.constant 0 : index
    %c0_137 = arith.constant 0 : index
    %382 = vector.load %arg15[%c0_136, %c0_137] : memref<1x128xf32, #tpu.memory_space<vmem>>, vector<1x128xf32>
    %383 = arith.addf %381, %382 : vector<1x128xf32>
    %c0_138 = arith.constant 0 : index
    %c0_139 = arith.constant 0 : index
    %384 = vector.load %arg17[%c0_138, %c0_139] : memref<2x128xf32, #tpu.memory_space<vmem>>, vector<1x128xf32>
    tpu.vector_store %arg17[%c0_138, %c0_139], %383 {strides = array<i32>} : memref<2x128xf32, #tpu.memory_space<vmem>>, vector<1x128xf32>,
    %385 = vector.extract_strided_slice %314 {offsets = [8, 0], sizes = [8, 64], strides = [1, 1]} : vector<16x64xf32> to vector<8x64xf32>
    %c1_140 = arith.constant 1 : index
    %c0_141 = arith.constant 0 : index
    %386 = vector.load %arg2[%c1_140, %c0_141] : memref<2x8xf32, #tpu.memory_space<vmem>>, vector<1x8xf32>
    %cst_142 = arith.constant 1.000000e+00 : f32
    %387 = vector.broadcast %cst_142 : f32 to vector<1x8xf32>
    %388 = arith.subf %386, %387 : vector<1x8xf32>
    %cst_143 = arith.constant 1.000000e+30 : f32
    %389 = vector.broadcast %cst_143 : f32 to vector<1x8xf32>
    %390 = arith.mulf %388, %389 : vector<1x8xf32>
    %c0_144 = arith.constant 0 : index
    %c0_145 = arith.constant 0 : index
    %391 = vector.load %arg8[%c0_144, %c0_145] : memref<1x64xf32, #tpu.memory_space<vmem>>, vector<1x64xf32>
    %392 = vector.extract_strided_slice %318 {offsets = [8, 0], sizes = [8, 64], strides = [1, 1]} : vector<16x64xf32> to vector<8x64xf32>
    %cst_146 = arith.constant dense<0.000000e+00> : vector<1x8xf32>
    %393 = tpu.matmul %391, %392, %cst_146 {dimension_numbers = #tpu.dot_dimension_numbers<[1], [1], [0], [0], [0, 0, 1, 0], [], []>} : vector<1x64xf32>, vector<8x64xf32>, vector<1x8xf32> -> vector<1x8xf32>
    %394 = arith.addf %393, %390 : vector<1x8xf32>
    %cst_147 = arith.constant dense<0xFF800000> : vector<1xf32>
    %395 = vector.multi_reduction <maximumf>, %394, %cst_147 [1] : vector<1x8xf32> to vector<1xf32>
    %396 = vector.shape_cast %395 : vector<1xf32> to vector<1x1xf32>
    %397 = vector.broadcast %396 : vector<1x1xf32> to vector<1x8xf32>
    %398 = arith.subf %394, %397 : vector<1x8xf32>
    %399 = math.exp %398 : vector<1x8xf32>
    %cst_148 = arith.constant dense<0.000000e+00> : vector<1xf32>
    %400 = vector.multi_reduction <add>, %399, %cst_148 [1] : vector<1x8xf32> to vector<1xf32>
    %401 = vector.shape_cast %400 : vector<1xf32> to vector<1x1xf32>
    %402 = tpu.reciprocal %401 {approx = true} : vector<1x1xf32> -> vector<1x1xf32>
    %403 = vector.broadcast %402 : vector<1x1xf32> to vector<1x8xf32>
    %404 = arith.mulf %399, %403 : vector<1x8xf32>
    %cst_149 = arith.constant dense<0.000000e+00> : vector<1x64xf32>
    %405 = tpu.matmul %404, %385, %cst_149 {dimension_numbers = #tpu.dot_dimension_numbers<[1], [0], [0], [1], [0, 0, 1, 1], [], []>} : vector<1x8xf32>, vector<8x64xf32>, vector<1x64xf32> -> vector<1x64xf32>
    %406 = vector.extract_strided_slice %316 {offsets = [8, 0], sizes = [8, 64], strides = [1, 1]} : vector<16x128xf32> to vector<8x64xf32>
    %cst_150 = arith.constant dense<0.000000e+00> : vector<8x8xf32>
    %407 = tpu.matmul %406, %385, %cst_150 {dimension_numbers = #tpu.dot_dimension_numbers<[1], [1], [0], [0], [0, 0, 1, 0], [], []>} : vector<8x64xf32>, vector<8x64xf32>, vector<8x8xf32> -> vector<8x8xf32>
    %cst_151 = arith.constant 1.250000e-01 : f32
    %408 = vector.broadcast %cst_151 : f32 to vector<8x8xf32>
    %409 = arith.mulf %407, %408 : vector<8x8xf32>
    %410 = vector.broadcast %390 : vector<1x8xf32> to vector<8x8xf32>
    %411 = arith.addf %409, %410 : vector<8x8xf32>
    %cst_152 = arith.constant dense<0xFF800000> : vector<8xf32>
    %412 = vector.multi_reduction <maximumf>, %411, %cst_152 [1] : vector<8x8xf32> to vector<8xf32>
    %413 = vector.shape_cast %412 : vector<8xf32> to vector<8x1xf32>
    %414 = vector.broadcast %413 : vector<8x1xf32> to vector<8x8xf32>
    %415 = arith.subf %411, %414 : vector<8x8xf32>
    %416 = math.exp %415 : vector<8x8xf32>
    %cst_153 = arith.constant dense<0.000000e+00> : vector<8xf32>
    %417 = vector.multi_reduction <add>, %416, %cst_153 [1] : vector<8x8xf32> to vector<8xf32>
    %418 = vector.shape_cast %417 : vector<8xf32> to vector<8x1xf32>
    %419 = tpu.reciprocal %418 {approx = true} : vector<8x1xf32> -> vector<8x1xf32>
    %420 = vector.broadcast %419 : vector<8x1xf32> to vector<8x8xf32>
    %421 = arith.mulf %416, %420 : vector<8x8xf32>
    %cst_154 = arith.constant dense<0.000000e+00> : vector<8x64xf32>
    %422 = tpu.matmul %421, %385, %cst_154 {dimension_numbers = #tpu.dot_dimension_numbers<[1], [0], [0], [1], [0, 0, 1, 1], [], []>} : vector<8x8xf32>, vector<8x64xf32>, vector<8x64xf32> -> vector<8x64xf32>
    %c0_155 = arith.constant 0 : index
    %c0_156 = arith.constant 0 : index
    %423 = vector.load %arg10[%c0_155, %c0_156] : memref<64x128xf32, #tpu.memory_space<vmem>>, vector<64x128xf32>
    %cst_157 = arith.constant dense<0.000000e+00> : vector<1x128xf32>
    %424 = tpu.matmul %405, %423, %cst_157 {dimension_numbers = #tpu.dot_dimension_numbers<[1], [0], [0], [1], [0, 0, 1, 1], [], []>} : vector<1x64xf32>, vector<64x128xf32>, vector<1x128xf32> -> vector<1x128xf32>
    %c0_158 = arith.constant 0 : index
    %c0_159 = arith.constant 0 : index
    %425 = vector.load %arg9[%c0_158, %c0_159] : memref<64x64xf32, #tpu.memory_space<vmem>>, vector<64x64xf32>
    %cst_160 = arith.constant dense<0.000000e+00> : vector<8x64xf32>
    %426 = tpu.matmul %422, %425, %cst_160 {dimension_numbers = #tpu.dot_dimension_numbers<[1], [0], [0], [1], [0, 0, 1, 1], [], []>} : vector<8x64xf32>, vector<64x64xf32>, vector<8x64xf32> -> vector<8x64xf32>
    %427 = vector.extract_strided_slice %424 {offsets = [0, 0], sizes = [1, 64], strides = [1, 1]} : vector<1x128xf32> to vector<1x64xf32>
    %428 = vector.broadcast %427 : vector<1x64xf32> to vector<8x64xf32>
    %429 = arith.addf %426, %428 : vector<8x64xf32>
    %cst_161 = arith.constant 0.000000e+00 : f32
    %430 = vector.broadcast %cst_161 : f32 to vector<8x64xf32>
    %431 = arith.maximumf %429, %430 : vector<8x64xf32>
    %c0_162 = arith.constant 0 : index
    %c0_163 = arith.constant 0 : index
    %432 = vector.load %arg12[%c0_162, %c0_163] : memref<64x256xf32, #tpu.memory_space<vmem>>, vector<64x256xf32>
    %cst_164 = arith.constant dense<0.000000e+00> : vector<8x256xf32>
    %433 = tpu.matmul %431, %432, %cst_164 {dimension_numbers = #tpu.dot_dimension_numbers<[1], [0], [0], [1], [0, 0, 1, 1], [], []>} : vector<8x64xf32>, vector<64x256xf32>, vector<8x256xf32> -> vector<8x256xf32>
    %c0_165 = arith.constant 0 : index
    %c0_166 = arith.constant 0 : index
    %434 = vector.load %arg13[%c0_165, %c0_166] : memref<1x256xf32, #tpu.memory_space<vmem>>, vector<1x256xf32>
    %435 = vector.broadcast %434 : vector<1x256xf32> to vector<8x256xf32>
    %436 = arith.addf %433, %435 : vector<8x256xf32>
    %c8_167 = arith.constant 8 : index
    %c0_168 = arith.constant 0 : index
    %437 = vector.load %arg16[%c8_167, %c0_168] : memref<16x256xf32, #tpu.memory_space<vmem>>, vector<8x256xf32>
    tpu.vector_store %arg16[%c8_167, %c0_168], %436 {strides = array<i32>} : memref<16x256xf32, #tpu.memory_space<vmem>>, vector<8x256xf32>,
    %c1_169 = arith.constant 1 : index
    %c0_170 = arith.constant 0 : index
    %438 = vector.load %arg3[%c1_169, %c0_170] : memref<2x8xf32, #tpu.memory_space<vmem>>, vector<1x8xf32>
    %cst_171 = arith.constant dense<0.000000e+00> : vector<1x64xf32>
    %439 = tpu.matmul %438, %422, %cst_171 {dimension_numbers = #tpu.dot_dimension_numbers<[1], [0], [0], [1], [0, 0, 1, 1], [], []>} : vector<1x8xf32>, vector<8x64xf32>, vector<1x64xf32> -> vector<1x64xf32>
    %440 = vector.extract_strided_slice %424 {offsets = [0, 64], sizes = [1, 64], strides = [1, 1]} : vector<1x128xf32> to vector<1x64xf32>
    %c0_172 = arith.constant 0 : index
    %c0_173 = arith.constant 0 : index
    %441 = vector.load %arg11[%c0_172, %c0_173] : memref<64x64xf32, #tpu.memory_space<vmem>>, vector<64x64xf32>
    %cst_174 = arith.constant dense<0.000000e+00> : vector<1x64xf32>
    %442 = tpu.matmul %439, %441, %cst_174 {dimension_numbers = #tpu.dot_dimension_numbers<[1], [0], [0], [1], [0, 0, 1, 1], [], []>} : vector<1x64xf32>, vector<64x64xf32>, vector<1x64xf32> -> vector<1x64xf32>
    %443 = arith.addf %440, %442 : vector<1x64xf32>
    %cst_175 = arith.constant 0.000000e+00 : f32
    %444 = vector.broadcast %cst_175 : f32 to vector<1x64xf32>
    %445 = arith.maximumf %443, %444 : vector<1x64xf32>
    %c0_176 = arith.constant 0 : index
    %c0_177 = arith.constant 0 : index
    %446 = vector.load %arg14[%c0_176, %c0_177] : memref<64x128xf32, #tpu.memory_space<vmem>>, vector<64x128xf32>
    %cst_178 = arith.constant dense<0.000000e+00> : vector<1x128xf32>
    %447 = tpu.matmul %445, %446, %cst_178 {dimension_numbers = #tpu.dot_dimension_numbers<[1], [0], [0], [1], [0, 0, 1, 1], [], []>} : vector<1x64xf32>, vector<64x128xf32>, vector<1x128xf32> -> vector<1x128xf32>
    %c0_179 = arith.constant 0 : index
    %c0_180 = arith.constant 0 : index
    %448 = vector.load %arg15[%c0_179, %c0_180] : memref<1x128xf32, #tpu.memory_space<vmem>>, vector<1x128xf32>
    %449 = arith.addf %447, %448 : vector<1x128xf32>
    %c1_181 = arith.constant 1 : index
    %c0_182 = arith.constant 0 : index
    %450 = vector.load %arg17[%c1_181, %c0_182] : memref<2x128xf32, #tpu.memory_space<vmem>>, vector<1x128xf32>
    tpu.vector_store %arg17[%c1_181, %c0_182], %449 {strides = array<i32>} : memref<2x128xf32, #tpu.memory_space<vmem>>, vector<1x128xf32>,
    return
  }
}

</mosaic_0001>

<llo_original>
// kernel: bilstm_model_forward.1
$region0: #{bilstm_model_forward.1}
  #allocation0 [shape = 'u32[]', space=smem, size = 0x4, offset = 0x4, fixed_abs, tag = 'smem constant byte address 0x4 - core index']
  #allocation1 [shape = 'u32[144,128]{1,0:T(1,128)}', space=vmem, size = 0x12000, scoped, tag = 'internal scratch']
  #allocation2 [shape = 'f32[16,64]{1,0:T(8,128)}', space=vmem, size = 0x2000, scoped, tag = 'scratch operand']
  %s0 = inlined_call_operand.vmem [shape: f32[16,256], index: 0, kind: input, shape index: {}]
  %s1 = inlined_call_operand.vmem [shape: f32[16,64], index: 1, kind: input, shape index: {}]
  %s2 = inlined_call_operand.vmem [shape: f32[2,8], index: 2, kind: input, shape index: {}]
  %s3 = inlined_call_operand.vmem [shape: f32[2,8], index: 3, kind: input, shape index: {}]
  %s4 = inlined_call_operand.vmem [shape: f32[256,256], index: 4, kind: input, shape index: {}]
  %s5 = inlined_call_operand.hbm [shape: f32[1,256], index: 5, kind: input, shape index: {}]
  %s6 = inlined_call_operand.hbm [shape: f32[64,256], index: 6, kind: input, shape index: {}]
  %s7 = inlined_call_operand.hbm [shape: f32[64,128], index: 7, kind: input, shape index: {}]
  %s8 = inlined_call_operand.hbm [shape: f32[1,64], index: 8, kind: input, shape index: {}]
  %s9 = inlined_call_operand.hbm [shape: f32[64,64], index: 9, kind: input, shape index: {}]
  %s10 = inlined_call_operand.hbm [shape: f32[64,128], index: 10, kind: input, shape index: {}]
  %s11 = inlined_call_operand.hbm [shape: f32[64,64], index: 11, kind: input, shape index: {}]
  %s12 = inlined_call_operand.hbm [shape: f32[64,256], index: 12, kind: input, shape index: {}]
  %s13 = inlined_call_operand.vmem [shape: f32[1,256], index: 13, kind: input, shape index: {}]
  %s14 = inlined_call_operand.hbm [shape: f32[64,128], index: 14, kind: input, shape index: {}]
  %s15 = inlined_call_operand.vmem [shape: f32[1,128], index: 15, kind: input, shape index: {}]
  %s16 = inlined_call_operand.vmem [shape: f32[16,256], index: 16, kind: output, shape index: {0}]
  %s17 = inlined_call_operand.hbm [shape: f32[2,128], index: 17, kind: output, shape index: {1}]
  %18 = xla_tuple %s16, %s17
  %s19 = sld [smem:[#allocation0]]
  $region118: #{bilstm_model_forward.1} parent=0
    _
  %s21 = ssub.s32 1, %s19
  %s22 = scalar_select 0, %s21, %s19
  $region1: #{bilstm_model_forward.1} parent=0
    #allocation3 [shape = 'u8[1024]{0}', space=vmem, size = 0x400, scoped, tag = 'input window, operand 5, single buffered']
    #allocation4 [shape = 's32[1]{0}', space=sflag, size = 0x4, scoped, tag = 'scoped memory for bilstm_model_forward.1']
    #allocation5 [shape = 's32[1]{0}', space=sflag, size = 0x4, scoped, tag = 'scoped memory for bilstm_model_forward.1']
    #allocation6 [shape = 'u8[65536]{0}', space=vmem, size = 0x10000, scoped, tag = 'input window, operand 6, single buffered']
    #allocation7 [shape = 's32[1]{0}', space=sflag, size = 0x4, scoped, tag = 'scoped memory for bilstm_model_forward.1']
    #allocation8 [shape = 'u8[32768]{0}', space=vmem, size = 0x8000, scoped, tag = 'input window, operand 7, single buffered']
    #allocation9 [shape = 'u8[512]{0}', space=vmem, size = 0x400, scoped, tag = 'input window, operand 8, single buffered']
    #allocation10 [shape = 's32[1]{0}', space=sflag, size = 0x4, scoped, tag = 'scoped memory for bilstm_model_forward.1']
    #allocation11 [shape = 'u8[32768]{0}', space=vmem, size = 0x8000, scoped, tag = 'input window, operand 9, single buffered']
    #allocation12 [shape = 'u8[32768]{0}', space=vmem, size = 0x8000, scoped, tag = 'input window, operand 10, single buffered']
    #allocation13 [shape = 's32[1]{0}', space=sflag, size = 0x4, scoped, tag = 'scoped memory for bilstm_model_forward.1']
    #allocation14 [shape = 'u8[32768]{0}', space=vmem, size = 0x8000, scoped, tag = 'input window, operand 11, single buffered']
    #allocation15 [shape = 'u8[65536]{0}', space=vmem, size = 0x10000, scoped, tag = 'input window, operand 12, single buffered']
    #allocation16 [shape = 's32[1]{0}', space=sflag, size = 0x4, scoped, tag = 'scoped memory for bilstm_model_forward.1']
    #allocation17 [shape = 'u8[32768]{0}', space=vmem, size = 0x8000, scoped, tag = 'input window, operand 14, single buffered']
    #allocation18 [shape = 'u8[1024]{0}', space=vmem, size = 0x400, scoped, tag = 'output window, operand 1, single buffered']
    %23 = vsyncpa [#allocation4], 0
    %24 = vsyncpa [#allocation7], 0
    %25 = vsyncpa [#allocation10], 0
    %26 = vsyncpa [#allocation13], 0
    %27 = vsyncpa [#allocation16], 0
    %28 = vsyncpa [#allocation5], 0
    // Predicated region
    $region2: #{bilstm_model_forward.1} parent=1 // pred_check
      _
    $region3: #{bilstm_model_forward.1} parent=1 // pred_check_branch
      %30 = sbr.rel (0) target = $region5
    $region4: #{bilstm_model_forward.1} parent=1 // pred_region
      _
    $region5: #{bilstm_model_forward.1} parent=1 // pred_fallthru
      _
    // Predicated region
    $region6: #{bilstm_model_forward.1} parent=1 // pred_check
      _
    $region7: #{bilstm_model_forward.1} parent=1 // pred_check_branch
      %32 = sbr.rel (0) target = $region9
    $region8: #{bilstm_model_forward.1} parent=1 // pred_region
      _
    $region9: #{bilstm_model_forward.1} parent=1 // pred_fallthru
      _
    // Predicated region
    $region10: #{bilstm_model_forward.1} parent=1 // pred_check
      _
    $region11: #{bilstm_model_forward.1} parent=1 // pred_check_branch
      %34 = sbr.rel (0) target = $region13
    $region12: #{bilstm_model_forward.1} parent=1 // pred_region
      _
    $region13: #{bilstm_model_forward.1} parent=1 // pred_fallthru
      _
    // Predicated region
    $region14: #{bilstm_model_forward.1} parent=1 // pred_check
      _
    $region15: #{bilstm_model_forward.1} parent=1 // pred_check_branch
      %36 = sbr.rel (0) target = $region17
    $region16: #{bilstm_model_forward.1} parent=1 // pred_region
      _
    $region17: #{bilstm_model_forward.1} parent=1 // pred_fallthru
      _
    // Predicated region
    $region18: #{bilstm_model_forward.1} parent=1 // pred_check
      _
    $region19: #{bilstm_model_forward.1} parent=1 // pred_check_branch
      %38 = sbr.rel (0) target = $region21
    $region20: #{bilstm_model_forward.1} parent=1 // pred_region
      _
    $region21: #{bilstm_model_forward.1} parent=1 // pred_fallthru
      _
    // Predicated region
    $region22: #{bilstm_model_forward.1} parent=1 // pred_check
      _
    $region23: #{bilstm_model_forward.1} parent=1 // pred_check_branch
      %40 = sbr.rel (0) target = $region25
    $region24: #{bilstm_model_forward.1} parent=1 // pred_region
      %s42 = ssub.s32 32, 32
      %43 = vsyncadd [#allocation4], %s42
      %s45 = sshll.u32 [#allocation3], 4
      %s46 = int_to_ptr.vmem [resolvable:$true] %s45
      %48 = dma.hbm_to_vmem [thread:$0]  %s5, 32, %s46, [#allocation4]
    $region25: #{bilstm_model_forward.1} parent=1 // pred_fallthru
      _
    // Predicated region
    $region26: #{bilstm_model_forward.1} parent=1 // pred_check
      _
    $region27: #{bilstm_model_forward.1} parent=1 // pred_check_branch
      %50 = sbr.rel (0) target = $region29
    $region28: #{bilstm_model_forward.1} parent=1 // pred_region
      %s52 = ssub.s32 2048, 2048
      %53 = vsyncadd [#allocation7], %s52
      %s54 = sshll.u32 [#allocation6], 4
      %s55 = int_to_ptr.vmem [resolvable:$true] %s54
      %60 = dma.hbm_to_vmem [thread:$0]  %s6, 2048, %s55, [#allocation7], 256, 256, 16
    $region29: #{bilstm_model_forward.1} parent=1 // pred_fallthru
      _
    // Predicated region
    $region30: #{bilstm_model_forward.1} parent=1 // pred_check
      _
    $region31: #{bilstm_model_forward.1} parent=1 // pred_check_branch
      %62 = sbr.rel (0) target = $region33
    $region32: #{bilstm_model_forward.1} parent=1 // pred_region
      %s64 = ssub.s32 1024, 1024
      %65 = vsyncadd [#allocation7], %s64
      %s66 = sshll.u32 [#allocation8], 4
      %s67 = int_to_ptr.vmem [resolvable:$true] %s66
      %72 = dma.hbm_to_vmem [thread:$0]  %s7, 1024, %s67, [#allocation7], 128, 128, 8
    $region33: #{bilstm_model_forward.1} parent=1 // pred_fallthru
      _
    // Predicated region
    $region34: #{bilstm_model_forward.1} parent=1 // pred_check
      _
    $region35: #{bilstm_model_forward.1} parent=1 // pred_check_branch
      %74 = sbr.rel (0) target = $region37
    $region36: #{bilstm_model_forward.1} parent=1 // pred_region
      %s76 = ssub.s32 16, 16
      %77 = vsyncadd [#allocation10], %s76
      %s79 = sshll.u32 [#allocation9], 4
      %s80 = int_to_ptr.vmem [resolvable:$true] %s79
      %82 = dma.hbm_to_vmem [thread:$0]  %s8, 16, %s80, [#allocation10]
    $region37: #{bilstm_model_forward.1} parent=1 // pred_fallthru
      _
    // Predicated region
    $region38: #{bilstm_model_forward.1} parent=1 // pred_check
      _
    $region39: #{bilstm_model_forward.1} parent=1 // pred_check_branch
      %84 = sbr.rel (0) target = $region41
    $region40: #{bilstm_model_forward.1} parent=1 // pred_region
      %s86 = ssub.s32 1024, 1024
      %87 = vsyncadd [#allocation10], %s86
      %s88 = sshll.u32 [#allocation11], 4
      %s89 = int_to_ptr.vmem [resolvable:$true] %s88
      %94 = dma.hbm_to_vmem [thread:$0]  %s9, 1024, %s89, [#allocation10], 128, 128, 8
    $region41: #{bilstm_model_forward.1} parent=1 // pred_fallthru
      _
    // Predicated region
    $region42: #{bilstm_model_forward.1} parent=1 // pred_check
      _
    $region43: #{bilstm_model_forward.1} parent=1 // pred_check_branch
      %96 = sbr.rel (0) target = $region45
    $region44: #{bilstm_model_forward.1} parent=1 // pred_region
      %s98 = ssub.s32 1024, 1024
      %99 = vsyncadd [#allocation13], %s98
      %s100 = sshll.u32 [#allocation12], 4
      %s101 = int_to_ptr.vmem [resolvable:$true] %s100
      %106 = dma.hbm_to_vmem [thread:$0]  %s10, 1024, %s101, [#allocation13], 128, 128, 8
    $region45: #{bilstm_model_forward.1} parent=1 // pred_fallthru
      _
    // Predicated region
    $region46: #{bilstm_model_forward.1} parent=1 // pred_check
      _
    $region47: #{bilstm_model_forward.1} parent=1 // pred_check_branch
      %108 = sbr.rel (0) target = $region49
    $region48: #{bilstm_model_forward.1} parent=1 // pred_region
      %s110 = ssub.s32 1024, 1024
      %111 = vsyncadd [#allocation13], %s110
      %s112 = sshll.u32 [#allocation14], 4
      %s113 = int_to_ptr.vmem [resolvable:$true] %s112
      %118 = dma.hbm_to_vmem [thread:$0]  %s11, 1024, %s113, [#allocation13], 128, 128, 8
    $region49: #{bilstm_model_forward.1} parent=1 // pred_fallthru
      _
    // Predicated region
    $region50: #{bilstm_model_forward.1} parent=1 // pred_check
      _
    $region51: #{bilstm_model_forward.1} parent=1 // pred_check_branch
      %120 = sbr.rel (0) target = $region53
    $region52: #{bilstm_model_forward.1} parent=1 // pred_region
      %s122 = ssub.s32 2048, 2048
      %123 = vsyncadd [#allocation16], %s122
      %s124 = sshll.u32 [#allocation15], 4
      %s125 = int_to_ptr.vmem [resolvable:$true] %s124
      %130 = dma.hbm_to_vmem [thread:$0]  %s12, 2048, %s125, [#allocation16], 256, 256, 16
    $region53: #{bilstm_model_forward.1} parent=1 // pred_fallthru
      _
    // Predicated region
    $region54: #{bilstm_model_forward.1} parent=1 // pred_check
      _
    $region55: #{bilstm_model_forward.1} parent=1 // pred_check_branch
      %132 = sbr.rel (0) target = $region57
    $region56: #{bilstm_model_forward.1} parent=1 // pred_region
      _
    $region57: #{bilstm_model_forward.1} parent=1 // pred_fallthru
      _
    // Predicated region
    $region58: #{bilstm_model_forward.1} parent=1 // pred_check
      _
    $region59: #{bilstm_model_forward.1} parent=1 // pred_check_branch
      %134 = sbr.rel (0) target = $region61
    $region60: #{bilstm_model_forward.1} parent=1 // pred_region
      %s136 = ssub.s32 1024, 1024
      %137 = vsyncadd [#allocation16], %s136
      %s138 = sshll.u32 [#allocation17], 4
      %s139 = int_to_ptr.vmem [resolvable:$true] %s138
      %144 = dma.hbm_to_vmem [thread:$0]  %s14, 1024, %s139, [#allocation16], 128, 128, 8
    $region61: #{bilstm_model_forward.1} parent=1 // pred_fallthru
      _
    // Predicated region
    $region62: #{bilstm_model_forward.1} parent=1 // pred_check
      _
    $region63: #{bilstm_model_forward.1} parent=1 // pred_check_branch
      %146 = sbr.rel (0) target = $region65
    $region64: #{bilstm_model_forward.1} parent=1 // pred_region
      _
    $region65: #{bilstm_model_forward.1} parent=1 // pred_fallthru
      _
    // Predicated region
    $region66: #{bilstm_model_forward.1} parent=1 // pred_check
      _
    $region67: #{bilstm_model_forward.1} parent=1 // pred_check_branch
      %148 = sbr.rel (0) target = $region69
    $region68: #{bilstm_model_forward.1} parent=1 // pred_region
      %149 = dma.done [#allocation4], 32
    $region69: #{bilstm_model_forward.1} parent=1 // pred_fallthru
      _
    // Predicated region
    $region70: #{bilstm_model_forward.1} parent=1 // pred_check
      _
    $region71: #{bilstm_model_forward.1} parent=1 // pred_check_branch
      %151 = sbr.rel (0) target = $region73
    $region72: #{bilstm_model_forward.1} parent=1 // pred_region
      %152 = dma.done [#allocation7], 2048
    $region73: #{bilstm_model_forward.1} parent=1 // pred_fallthru
      _
    // Predicated region
    $region74: #{bilstm_model_forward.1} parent=1 // pred_check
      _
    $region75: #{bilstm_model_forward.1} parent=1 // pred_check_branch
      %154 = sbr.rel (0) target = $region77
    $region76: #{bilstm_model_forward.1} parent=1 // pred_region
      %155 = dma.done [#allocation7], 1024
    $region77: #{bilstm_model_forward.1} parent=1 // pred_fallthru
      _
    // Predicated region
    $region78: #{bilstm_model_forward.1} parent=1 // pred_check
      _
    $region79: #{bilstm_model_forward.1} parent=1 // pred_check_branch
      %157 = sbr.rel (0) target = $region81
    $region80: #{bilstm_model_forward.1} parent=1 // pred_region
      %158 = dma.done [#allocation10], 16
    $region81: #{bilstm_model_forward.1} parent=1 // pred_fallthru
      _
    // Predicated region
    $region82: #{bilstm_model_forward.1} parent=1 // pred_check
      _
    $region83: #{bilstm_model_forward.1} parent=1 // pred_check_branch
      %160 = sbr.rel (0) target = $region85
    $region84: #{bilstm_model_forward.1} parent=1 // pred_region
      %161 = dma.done [#allocation10], 1024
    $region85: #{bilstm_model_forward.1} parent=1 // pred_fallthru
      _
    // Predicated region
    $region86: #{bilstm_model_forward.1} parent=1 // pred_check
      _
    $region87: #{bilstm_model_forward.1} parent=1 // pred_check_branch
      %163 = sbr.rel (0) target = $region89
    $region88: #{bilstm_model_forward.1} parent=1 // pred_region
      %164 = dma.done [#allocation13], 1024
    $region89: #{bilstm_model_forward.1} parent=1 // pred_fallthru
      _
    // Predicated region
    $region90: #{bilstm_model_forward.1} parent=1 // pred_check
      _
    $region91: #{bilstm_model_forward.1} parent=1 // pred_check_branch
      %166 = sbr.rel (0) target = $region93
    $region92: #{bilstm_model_forward.1} parent=1 // pred_region
      %167 = dma.done [#allocation13], 1024
    $region93: #{bilstm_model_forward.1} parent=1 // pred_fallthru
      _
    // Predicated region
    $region94: #{bilstm_model_forward.1} parent=1 // pred_check
      _
    $region95: #{bilstm_model_forward.1} parent=1 // pred_check_branch
      %169 = sbr.rel (0) target = $region97
    $region96: #{bilstm_model_forward.1} parent=1 // pred_region
      %170 = dma.done [#allocation16], 2048
    $region97: #{bilstm_model_forward.1} parent=1 // pred_fallthru
      _
    // Predicated region
    $region98: #{bilstm_model_forward.1} parent=1 // pred_check
      _
    $region99: #{bilstm_model_forward.1} parent=1 // pred_check_branch
      %172 = sbr.rel (0) target = $region101
    $region100: #{bilstm_model_forward.1} parent=1 // pred_region
      %173 = dma.done [#allocation16], 1024
    $region101: #{bilstm_model_forward.1} parent=1 // pred_fallthru
      _
    %v174 = vld [vmem:[%s0] sm:$0xff]
    %v175 = vld [vmem:[%s0 + $0x8] sm:$0xff]
    %v176 = vld [vmem:[%s0 + $0x10] sm:$0xff]
    %v177 = vld [vmem:[%s0 + $0x18] sm:$0xff]
    %v178 = vld [vmem:[%s4] sm:$0xff]
    %v179 = vld [vmem:[%s4 + $0x8] sm:$0xff]
    %v180 = vld [vmem:[%s4 + $0x10] sm:$0xff]
    %v181 = vld [vmem:[%s4 + $0x18] sm:$0xff]
    %v182 = vld [vmem:[%s4 + $0x20] sm:$0xff]
    %v183 = vld [vmem:[%s4 + $0x28] sm:$0xff]
    %v184 = vld [vmem:[%s4 + $0x30] sm:$0xff]
    %v185 = vld [vmem:[%s4 + $0x38] sm:$0xff]
    %v186 = vld [vmem:[%s4 + $0x40] sm:$0xff]
    %v187 = vld [vmem:[%s4 + $0x48] sm:$0xff]
    %v188 = vld [vmem:[%s4 + $0x50] sm:$0xff]
    %v189 = vld [vmem:[%s4 + $0x58] sm:$0xff]
    %v190 = vld [vmem:[%s4 + $0x60] sm:$0xff]
    %v191 = vld [vmem:[%s4 + $0x68] sm:$0xff]
    %v192 = vld [vmem:[%s4 + $0x70] sm:$0xff]
    %v193 = vld [vmem:[%s4 + $0x78] sm:$0xff]
    %v194 = vld [vmem:[%s4 + $0x80] sm:$0xff]
    %v195 = vld [vmem:[%s4 + $0x88] sm:$0xff]
    %v196 = vld [vmem:[%s4 + $0x90] sm:$0xff]
    %v197 = vld [vmem:[%s4 + $0x98] sm:$0xff]
    %v198 = vld [vmem:[%s4 + $0xa0] sm:$0xff]
    %v199 = vld [vmem:[%s4 + $0xa8] sm:$0xff]
    %v200 = vld [vmem:[%s4 + $0xb0] sm:$0xff]
    %v201 = vld [vmem:[%s4 + $0xb8] sm:$0xff]
    %v202 = vld [vmem:[%s4 + $0xc0] sm:$0xff]
    %v203 = vld [vmem:[%s4 + $0xc8] sm:$0xff]
    %v204 = vld [vmem:[%s4 + $0xd0] sm:$0xff]
    %v205 = vld [vmem:[%s4 + $0xd8] sm:$0xff]
    %v206 = vld [vmem:[%s4 + $0xe0] sm:$0xff]
    %v207 = vld [vmem:[%s4 + $0xe8] sm:$0xff]
    %v208 = vld [vmem:[%s4 + $0xf0] sm:$0xff]
    %v209 = vld [vmem:[%s4 + $0xf8] sm:$0xff]
    %v210 = vld [vmem:[%s4 + $0x100] sm:$0xff]
    %v211 = vld [vmem:[%s4 + $0x108] sm:$0xff]
    %v212 = vld [vmem:[%s4 + $0x110] sm:$0xff]
    %v213 = vld [vmem:[%s4 + $0x118] sm:$0xff]
    %v214 = vld [vmem:[%s4 + $0x120] sm:$0xff]
    %v215 = vld [vmem:[%s4 + $0x128] sm:$0xff]
    %v216 = vld [vmem:[%s4 + $0x130] sm:$0xff]
    %v217 = vld [vmem:[%s4 + $0x138] sm:$0xff]
    %v218 = vld [vmem:[%s4 + $0x140] sm:$0xff]
    %v219 = vld [vmem:[%s4 + $0x148] sm:$0xff]
    %v220 = vld [vmem:[%s4 + $0x150] sm:$0xff]
    %v221 = vld [vmem:[%s4 + $0x158] sm:$0xff]
    %v222 = vld [vmem:[%s4 + $0x160] sm:$0xff]
    %v223 = vld [vmem:[%s4 + $0x168] sm:$0xff]
    %v224 = vld [vmem:[%s4 + $0x170] sm:$0xff]
    %v225 = vld [vmem:[%s4 + $0x178] sm:$0xff]
    %v226 = vld [vmem:[%s4 + $0x180] sm:$0xff]
    %v227 = vld [vmem:[%s4 + $0x188] sm:$0xff]
    %v228 = vld [vmem:[%s4 + $0x190] sm:$0xff]
    %v229 = vld [vmem:[%s4 + $0x198] sm:$0xff]
    %v230 = vld [vmem:[%s4 + $0x1a0] sm:$0xff]
    %v231 = vld [vmem:[%s4 + $0x1a8] sm:$0xff]
    %v232 = vld [vmem:[%s4 + $0x1b0] sm:$0xff]
    %v233 = vld [vmem:[%s4 + $0x1b8] sm:$0xff]
    %v234 = vld [vmem:[%s4 + $0x1c0] sm:$0xff]
    %v235 = vld [vmem:[%s4 + $0x1c8] sm:$0xff]
    %v236 = vld [vmem:[%s4 + $0x1d0] sm:$0xff]
    %v237 = vld [vmem:[%s4 + $0x1d8] sm:$0xff]
    %v238 = vld [vmem:[%s4 + $0x1e0] sm:$0xff]
    %v239 = vld [vmem:[%s4 + $0x1e8] sm:$0xff]
    %v240 = vld [vmem:[%s4 + $0x1f0] sm:$0xff]
    %v241 = vld [vmem:[%s4 + $0x1f8] sm:$0xff]
    %v242 = vld [vmem:[#allocation3] sm:$0x3]
    %v244 = vlaneseq
    %v245 = vshrl.u32 %v244, 7
    %v246 = vsub.s32 0, %v245
    %v247 = vrot.slane %v242, %v246
    %v248 = vlaneseq
    %v249 = vshrl.u32 %v248, 7
    %v250 = vsub.s32 1, %v249
    %v251 = vrot.slane %v242, %v250
    %254 = vmatprep.subr.mxu0 %v179
    %255 = vmatpush1.msra.mxu0 %v178
    %256 = vmatprep.subr.mxu0 %v181
    %257 = vmatpush1.msra.mxu0 %v180
    %258 = vmatprep.subr.mxu0 %v183
    %259 = vmatpush1.msra.mxu0 %v182
    %260 = vmatprep.subr.mxu0 %v185
    %261 = vmatpush1.msra.mxu0 %v184
    %262 = vmatprep.subr.mxu0 %v187
    %263 = vmatpush1.msra.mxu0 %v186
    %264 = vmatprep.subr.mxu0 %v189
    %265 = vmatpush1.msra.mxu0 %v188
    %266 = vmatprep.subr.mxu0 %v191
    %267 = vmatpush1.msra.mxu0 %v190
    %268 = vmatprep.subr.mxu0 %v193
    %269 = vmatpush1.msra.mxu0 %v192
    %270 = vmatprep.subr.mxu0 %v195
    %271 = vmatpush1.msra.mxu0 %v194
    %272 = vmatprep.subr.mxu0 %v197
    %273 = vmatpush1.msra.mxu0 %v196
    %274 = vmatprep.subr.mxu0 %v199
    %275 = vmatpush1.msra.mxu0 %v198
    %276 = vmatprep.subr.mxu0 %v201
    %277 = vmatpush1.msra.mxu0 %v200
    %278 = vmatprep.subr.mxu0 %v203
    %279 = vmatpush1.msra.mxu0 %v202
    %280 = vmatprep.subr.mxu0 %v205
    %281 = vmatpush1.msra.mxu0 %v204
    %282 = vmatprep.subr.mxu0 %v207
    %283 = vmatpush1.msra.mxu0 %v206
    %284 = vmatprep.subr.mxu0 %v209
    %285 = vmatpush1.msra.mxu0 %v208
    %286 = vmatprep.subr.mxu0 %v211
    %287 = vmatpush1.msra.mxu0 %v210
    %288 = vmatprep.subr.mxu0 %v213
    %289 = vmatpush1.msra.mxu0 %v212
    %290 = vmatprep.subr.mxu0 %v215
    %291 = vmatpush1.msra.mxu0 %v214
    %292 = vmatprep.subr.mxu0 %v217
    %293 = vmatpush1.msra.mxu0 %v216
    %294 = vmatprep.subr.mxu0 %v219
    %295 = vmatpush1.msra.mxu0 %v218
    %296 = vmatprep.subr.mxu0 %v221
    %297 = vmatpush1.msra.mxu0 %v220
    %298 = vmatprep.subr.mxu0 %v223
    %299 = vmatpush1.msra.mxu0 %v222
    %300 = vmatprep.subr.mxu0 %v225
    %301 = vmatpush1.msra.mxu0 %v224
    %302 = vmatprep.subr.mxu0 %v227
    %303 = vmatpush1.msra.mxu0 %v226
    %304 = vmatprep.subr.mxu0 %v229
    %305 = vmatpush1.msra.mxu0 %v228
    %306 = vmatprep.subr.mxu0 %v231
    %307 = vmatpush1.msra.mxu0 %v230
    %308 = vmatprep.subr.mxu0 %v233
    %309 = vmatpush1.msra.mxu0 %v232
    %310 = vmatprep.subr.mxu0 %v235
    %311 = vmatpush1.msra.mxu0 %v234
    %312 = vmatprep.subr.mxu0 %v237
    %313 = vmatpush1.msra.mxu0 %v236
    %314 = vmatprep.subr.mxu0 %v239
    %315 = vmatpush1.msra.mxu0 %v238
    %316 = vmatprep.subr.mxu0 %v241
    %317 = vmatpush1.msra.mxu0 %v240
    %318 = vmatprep.mubr.f32.mxu0 %v175
    %319 = vmatmul.mubr.f32.gmra.mrb[0].mxu0 %v174
    %v320 = vpop.f32.mrb[0].mxu0
    %v321 = vadd.f32 %v247, %v320
    %v322 = vpop.f32.mrb[0].mxu0
    %v323 = vadd.f32 %v251, %v322
    %324 = vmatprep.mubr.f32.mxu0 %v177
    %325 = vmatmul.mubr.f32.gmra.mrb[0].mxu0 %v176
    %v326 = vpop.f32.mrb[0].mxu0
    %v327 = vadd.f32 %v247, %v326
    %v328 = vpop.f32.mrb[0].mxu0
    %v329 = vadd.f32 %v251, %v328
    %330 = vdwg.mxu0
    %v331 = vld [vmem:[%s1] sm:$0xff]
    %v332 = vld [vmem:[%s1 + $0x8] sm:$0xff]
    %v333 = vld [vmem:[#allocation6] sm:$0xff]
    %v334 = vld [vmem:[#allocation6 + $0x8] sm:$0xff]
    %v335 = vld [vmem:[#allocation6 + $0x10] sm:$0xff]
    %v336 = vld [vmem:[#allocation6 + $0x18] sm:$0xff]
    %v337 = vld [vmem:[#allocation6 + $0x20] sm:$0xff]
    %v338 = vld [vmem:[#allocation6 + $0x28] sm:$0xff]
    %v339 = vld [vmem:[#allocation6 + $0x30] sm:$0xff]
    %v340 = vld [vmem:[#allocation6 + $0x38] sm:$0xff]
    %v341 = vld [vmem:[#allocation6 + $0x40] sm:$0xff]
    %v342 = vld [vmem:[#allocation6 + $0x48] sm:$0xff]
    %v343 = vld [vmem:[#allocation6 + $0x50] sm:$0xff]
    %v344 = vld [vmem:[#allocation6 + $0x58] sm:$0xff]
    %v345 = vld [vmem:[#allocation6 + $0x60] sm:$0xff]
    %v346 = vld [vmem:[#allocation6 + $0x68] sm:$0xff]
    %v347 = vld [vmem:[#allocation6 + $0x70] sm:$0xff]
    %v348 = vld [vmem:[#allocation6 + $0x78] sm:$0xff]
    %vm349 = vcmask 523264
    %350 = vst.msk [vmem:[#allocation2] sm:$0xff] %vm349, 0.0
    %351 = vst.msk [vmem:[#allocation2 + $0x8] sm:$0xff] %vm349, 0.0
    %v353 = vsel %vm349, 0.0, 0
    %355 = vmatprep.subr.mxu0 %v334
    %356 = vmatpush1.msra.mxu0 %v333
    %357 = vmatprep.subr.mxu0 %v336
    %358 = vmatpush1.msra.mxu0 %v335
    %359 = vmatprep.subr.mxu0 %v338
    %360 = vmatpush1.msra.mxu0 %v337
    %361 = vmatprep.subr.mxu0 %v340
    %362 = vmatpush1.msra.mxu0 %v339
    %363 = vmatprep.subr.mxu0 %v342
    %364 = vmatpush1.msra.mxu0 %v341
    %365 = vmatprep.subr.mxu0 %v344
    %366 = vmatpush1.msra.mxu0 %v343
    %367 = vmatprep.subr.mxu0 %v346
    %368 = vmatpush1.msra.mxu0 %v345
    %369 = vmatprep.subr.mxu0 %v348
    %370 = vmatpush1.msra.mxu0 %v347
    %371 = vmatprep.subr.mxu0 0.0
    %372 = vmatpush1.msra.mxu0 0.0
    %373 = vmatprep.subr.mxu0 0.0
    %374 = vmatpush1.msra.mxu0 0.0
    %375 = vmatprep.subr.mxu0 0.0
    %376 = vmatpush1.msra.mxu0 0.0
    %377 = vmatprep.subr.mxu0 0.0
    %378 = vmatpush1.msra.mxu0 0.0
    %379 = vmatprep.subr.mxu0 0.0
    %380 = vmatpush1.msra.mxu0 0.0
    %381 = vmatprep.subr.mxu0 0.0
    %382 = vmatpush1.msra.mxu0 0.0
    %383 = vmatprep.subr.mxu0 0.0
    %384 = vmatpush1.msra.mxu0 0.0
    %385 = vmatprep.subr.mxu0 0.0
    %386 = vmatpush1.msra.mxu0 0.0
    %387 = vmatprep.subr.mxu0 0.0
    %388 = vmatpush1.msra.mxu0 0.0
    %389 = vmatprep.subr.mxu0 0.0
    %390 = vmatpush1.msra.mxu0 0.0
    %391 = vmatprep.subr.mxu0 0.0
    %392 = vmatpush1.msra.mxu0 0.0
    %393 = vmatprep.subr.mxu0 0.0
    %394 = vmatpush1.msra.mxu0 0.0
    %395 = vmatprep.subr.mxu0 0.0
    %396 = vmatpush1.msra.mxu0 0.0
    %397 = vmatprep.subr.mxu0 0.0
    %398 = vmatpush1.msra.mxu0 0.0
    %399 = vmatprep.subr.mxu0 0.0
    %400 = vmatpush1.msra.mxu0 0.0
    %401 = vmatprep.subr.mxu0 0.0
    %402 = vmatpush1.msra.mxu0 0.0
    %403 = vmatprep.subr.mxu0 0.0
    %404 = vmatpush1.msra.mxu0 0.0
    %405 = vmatprep.subr.mxu0 0.0
    %406 = vmatpush1.msra.mxu0 0.0
    %407 = vmatprep.subr.mxu0 0.0
    %408 = vmatpush1.msra.mxu0 0.0
    %409 = vmatprep.subr.mxu0 0.0
    %410 = vmatpush1.msra.mxu0 0.0
    %411 = vmatprep.subr.mxu0 0.0
    %412 = vmatpush1.msra.mxu0 0.0
    %413 = vmatprep.subr.mxu0 0.0
    %414 = vmatpush1.msra.mxu0 0.0
    %415 = vmatprep.subr.mxu0 0.0
    %416 = vmatpush1.msra.mxu0 0.0
    %417 = vmatprep.subr.mxu0 0.0
    %418 = vmatpush1.msra.mxu0 0.0
    %419 = vmatprep.mubr.f32.mxu0 0.0
    %420 = vmatmul.mubr.f32.gmra.mrb[0].mxu0 %v353
    %v421 = vpop.f32.mrb[0].mxu0
    %v422 = vadd.f32 0.0, %v421
    %v423 = vpop.f32.mrb[0].mxu0
    %v424 = vadd.f32 0.0, %v423
    %425 = vdwg.mxu0
    %v426 = vadd.f32 %v321, %v422
    %v427 = vadd.f32 %v323, %v424
    %v428 = vxor.u32 %v426, 2147483648
    %v429 = vxor.u32 %v427, 2147483648
    %v430 = vmul.f32 %v428, 1.442695
    %v431 = vpow.pop %v430
    %v432 = vmul.f32 %v429, 1.442695
    %v433 = vpow.pop %v432
    %v434 = vadd.f32 %v431, 1.0
    %v435 = vadd.f32 %v433, 1.0
    %v436 = vrcp.pop %v434
    %v437 = vmul.f32 1.0, %v436
    %v438 = vrcp.pop %v435
    %v439 = vmul.f32 1.0, %v438
    %v440 = vtanh.pop %v427
    %v441 = vmul.f32 %v437, 0.0
    %443 = vrot.lane.b32.xlu0 %v440, 64
    %v444 = vpop.permute.xlu0 %443
    %v446 = vmul.f32 %v437, %v444
    %448 = vrot.lane.b32.xlu0 %v446, 64
    %v449 = vpop.permute.xlu0 %448
    %v451 = vadd.f32 %v441, %v449
    %v452 = vtanh.pop %v451
    %454 = vrot.lane.b32.xlu0 %v452, 64
    %v455 = vpop.permute.xlu0 %454
    %v457 = vmul.f32 %v439, %v455
    %v458 = vmul.f32 %v331, %v457
    %v459 = vsub.f32 1.0, %v331
    %v460 = vmul.f32 %v459, 0.0
    %v461 = vadd.f32 %v458, %v460
    %463 = vrot.lane.b32.xlu0 %v451, 64
    %v464 = vpop.permute.xlu0 %463
    %v466 = vmul.f32 %v331, %v464
    %v467 = vadd.f32 %v466, %v460
    %vm468 = vcmask 253952
    %469 = vst.msk [vmem:[#allocation2] sm:$0x1] %vm468, %v458
    %vm470 = vcmask 516352
    %471 = vst.msk [vmem:[#allocation2 + $0x7] sm:$0x1] %vm470, %v458
    %vm472 = vcmask 254977
    %473 = vst.msk [vmem:[#allocation2 + $0x7] sm:$0x2] %vm472, %v458
    %vm474 = vcmask 517377
    %475 = vst.msk [vmem:[#allocation2 + $0xe] sm:$0x2] %vm474, %v458
    %v477 = vsel %vm349, %v461, 0
    %479 = vmatprep.subr.mxu0 %v334
    %480 = vmatpush1.msra.mxu0 %v333
    %481 = vmatprep.subr.mxu0 %v336
    %482 = vmatpush1.msra.mxu0 %v335
    %483 = vmatprep.subr.mxu0 %v338
    %484 = vmatpush1.msra.mxu0 %v337
    %485 = vmatprep.subr.mxu0 %v340
    %486 = vmatpush1.msra.mxu0 %v339
    %487 = vmatprep.subr.mxu0 %v342
    %488 = vmatpush1.msra.mxu0 %v341
    %489 = vmatprep.subr.mxu0 %v344
    %490 = vmatpush1.msra.mxu0 %v343
    %491 = vmatprep.subr.mxu0 %v346
    %492 = vmatpush1.msra.mxu0 %v345
    %493 = vmatprep.subr.mxu0 %v348
    %494 = vmatpush1.msra.mxu0 %v347
    %495 = vmatprep.subr.mxu0 0.0
    %496 = vmatpush1.msra.mxu0 0.0
    %497 = vmatprep.subr.mxu0 0.0
    %498 = vmatpush1.msra.mxu0 0.0
    %499 = vmatprep.subr.mxu0 0.0
    %500 = vmatpush1.msra.mxu0 0.0
    %501 = vmatprep.subr.mxu0 0.0
    %502 = vmatpush1.msra.mxu0 0.0
    %503 = vmatprep.subr.mxu0 0.0
    %504 = vmatpush1.msra.mxu0 0.0
    %505 = vmatprep.subr.mxu0 0.0
    %506 = vmatpush1.msra.mxu0 0.0
    %507 = vmatprep.subr.mxu0 0.0
    %508 = vmatpush1.msra.mxu0 0.0
    %509 = vmatprep.subr.mxu0 0.0
    %510 = vmatpush1.msra.mxu0 0.0
    %511 = vmatprep.subr.mxu0 0.0
    %512 = vmatpush1.msra.mxu0 0.0
    %513 = vmatprep.subr.mxu0 0.0
    %514 = vmatpush1.msra.mxu0 0.0
    %515 = vmatprep.subr.mxu0 0.0
    %516 = vmatpush1.msra.mxu0 0.0
    %517 = vmatprep.subr.mxu0 0.0
    %518 = vmatpush1.msra.mxu0 0.0
    %519 = vmatprep.subr.mxu0 0.0
    %520 = vmatpush1.msra.mxu0 0.0
    %521 = vmatprep.subr.mxu0 0.0
    %522 = vmatpush1.msra.mxu0 0.0
    %523 = vmatprep.subr.mxu0 0.0
    %524 = vmatpush1.msra.mxu0 0.0
    %525 = vmatprep.subr.mxu0 0.0
    %526 = vmatpush1.msra.mxu0 0.0
    %527 = vmatprep.subr.mxu0 0.0
    %528 = vmatpush1.msra.mxu0 0.0
    %529 = vmatprep.subr.mxu0 0.0
    %530 = vmatpush1.msra.mxu0 0.0
    %531 = vmatprep.subr.mxu0 0.0
    %532 = vmatpush1.msra.mxu0 0.0
    %533 = vmatprep.subr.mxu0 0.0
    %534 = vmatpush1.msra.mxu0 0.0
    %535 = vmatprep.subr.mxu0 0.0
    %536 = vmatpush1.msra.mxu0 0.0
    %537 = vmatprep.subr.mxu0 0.0
    %538 = vmatpush1.msra.mxu0 0.0
    %539 = vmatprep.subr.mxu0 0.0
    %540 = vmatpush1.msra.mxu0 0.0
    %541 = vmatprep.subr.mxu0 0.0
    %542 = vmatpush1.msra.mxu0 0.0
    %543 = vmatprep.mubr.f32.mxu0 0.0
    %544 = vmatmul.mubr.f32.gmra.mrb[0].mxu0 %v477
    %v545 = vpop.f32.mrb[0].mxu0
    %v546 = vadd.f32 0.0, %v545
    %v547 = vpop.f32.mrb[0].mxu0
    %v548 = vadd.f32 0.0, %v547
    %549 = vdwg.mxu0
    %v552 = vrot.slane %v546, 6
    %v553 = vrot.slane %v548, 6
    %v556 = vadd.f32 %v321, %v552
    %v557 = vadd.f32 %v323, %v553
    %v558 = vxor.u32 %v556, 2147483648
    %v559 = vxor.u32 %v557, 2147483648
    %v560 = vmul.f32 %v558, 1.442695
    %v561 = vpow.pop %v560
    %v562 = vmul.f32 %v559, 1.442695
    %v563 = vpow.pop %v562
    %v564 = vadd.f32 %v561, 1.0
    %v565 = vadd.f32 %v563, 1.0
    %v566 = vrcp.pop %v564
    %v567 = vmul.f32 1.0, %v566
    %v568 = vrcp.pop %v565
    %v569 = vmul.f32 1.0, %v568
    %v570 = vtanh.pop %v557
    %v572 = vrot.slane %v467, 6
    %573 = vrot.lane.b32.xlu0 %v572, 64
    %v574 = vpop.permute.xlu0 %573
    %v576 = vmul.f32 %v567, %v574
    %578 = vrot.lane.b32.xlu0 %v570, 64
    %v579 = vpop.permute.xlu0 %578
    %v581 = vmul.f32 %v567, %v579
    %583 = vrot.lane.b32.xlu0 %v581, 64
    %v584 = vpop.permute.xlu0 %583
    %v586 = vadd.f32 %v576, %v584
    %v587 = vtanh.pop %v586
    %589 = vrot.lane.b32.xlu0 %v587, 64
    %v590 = vpop.permute.xlu0 %589
    %v592 = vmul.f32 %v569, %v590
    %v593 = vmul.f32 %v331, %v592
    %v594 = vrot.slane %v461, 6
    %v596 = vmul.f32 %v459, %v594
    %v597 = vadd.f32 %v593, %v596
    %599 = vrot.lane.b32.xlu0 %v586, 64
    %v600 = vpop.permute.xlu0 %599
    %v602 = vmul.f32 %v331, %v600
    %v604 = vmul.f32 %v459, %v572
    %v605 = vadd.f32 %v602, %v604
    %vm606 = vcmask 256002
    %607 = vst.msk [vmem:[#allocation2 - $0x1] sm:$0x4] %vm606, %v593
    %vm608 = vcmask 518402
    %609 = vst.msk [vmem:[#allocation2 + $0x4] sm:$0x4] %vm608, %v593
    %vm610 = vcmask 257027
    %611 = vst.msk [vmem:[#allocation2 + $0x6] sm:$0x8] %vm610, %v593
    %vm612 = vcmask 519427
    %613 = vst.msk [vmem:[#allocation2 + $0xb] sm:$0x8] %vm612, %v593
    %v615 = vrot.slane %v597, 2
    %v616 = vsel %vm349, %v615, 0
    %618 = vmatprep.subr.mxu0 %v334
    %619 = vmatpush1.msra.mxu0 %v333
    %620 = vmatprep.subr.mxu0 %v336
    %621 = vmatpush1.msra.mxu0 %v335
    %622 = vmatprep.subr.mxu0 %v338
    %623 = vmatpush1.msra.mxu0 %v337
    %624 = vmatprep.subr.mxu0 %v340
    %625 = vmatpush1.msra.mxu0 %v339
    %626 = vmatprep.subr.mxu0 %v342
    %627 = vmatpush1.msra.mxu0 %v341
    %628 = vmatprep.subr.mxu0 %v344
    %629 = vmatpush1.msra.mxu0 %v343
    %630 = vmatprep.subr.mxu0 %v346
    %631 = vmatpush1.msra.mxu0 %v345
    %632 = vmatprep.subr.mxu0 %v348
    %633 = vmatpush1.msra.mxu0 %v347
    %634 = vmatprep.subr.mxu0 0.0
    %635 = vmatpush1.msra.mxu0 0.0
    %636 = vmatprep.subr.mxu0 0.0
    %637 = vmatpush1.msra.mxu0 0.0
    %638 = vmatprep.subr.mxu0 0.0
    %639 = vmatpush1.msra.mxu0 0.0
    %640 = vmatprep.subr.mxu0 0.0
    %641 = vmatpush1.msra.mxu0 0.0
    %642 = vmatprep.subr.mxu0 0.0
    %643 = vmatpush1.msra.mxu0 0.0
    %644 = vmatprep.subr.mxu0 0.0
    %645 = vmatpush1.msra.mxu0 0.0
    %646 = vmatprep.subr.mxu0 0.0
    %647 = vmatpush1.msra.mxu0 0.0
    %648 = vmatprep.subr.mxu0 0.0
    %649 = vmatpush1.msra.mxu0 0.0
    %650 = vmatprep.subr.mxu0 0.0
    %651 = vmatpush1.msra.mxu0 0.0
    %652 = vmatprep.subr.mxu0 0.0
    %653 = vmatpush1.msra.mxu0 0.0
    %654 = vmatprep.subr.mxu0 0.0
    %655 = vmatpush1.msra.mxu0 0.0
    %656 = vmatprep.subr.mxu0 0.0
    %657 = vmatpush1.msra.mxu0 0.0
    %658 = vmatprep.subr.mxu0 0.0
    %659 = vmatpush1.msra.mxu0 0.0
    %660 = vmatprep.subr.mxu0 0.0
    %661 = vmatpush1.msra.mxu0 0.0
    %662 = vmatprep.subr.mxu0 0.0
    %663 = vmatpush1.msra.mxu0 0.0
    %664 = vmatprep.subr.mxu0 0.0
    %665 = vmatpush1.msra.mxu0 0.0
    %666 = vmatprep.subr.mxu0 0.0
    %667 = vmatpush1.msra.mxu0 0.0
    %668 = vmatprep.subr.mxu0 0.0
    %669 = vmatpush1.msra.mxu0 0.0
    %670 = vmatprep.subr.mxu0 0.0
    %671 = vmatpush1.msra.mxu0 0.0
    %672 = vmatprep.subr.mxu0 0.0
    %673 = vmatpush1.msra.mxu0 0.0
    %674 = vmatprep.subr.mxu0 0.0
    %675 = vmatpush1.msra.mxu0 0.0
    %676 = vmatprep.subr.mxu0 0.0
    %677 = vmatpush1.msra.mxu0 0.0
    %678 = vmatprep.subr.mxu0 0.0
    %679 = vmatpush1.msra.mxu0 0.0
    %680 = vmatprep.subr.mxu0 0.0
    %681 = vmatpush1.msra.mxu0 0.0
    %682 = vmatprep.mubr.f32.mxu0 0.0
    %683 = vmatmul.mubr.f32.gmra.mrb[0].mxu0 %v616
    %v684 = vpop.f32.mrb[0].mxu0
    %v685 = vadd.f32 0.0, %v684
    %v686 = vpop.f32.mrb[0].mxu0
    %v687 = vadd.f32 0.0, %v686
    %688 = vdwg.mxu0
    %v691 = vrot.slane %v685, 4
    %v692 = vrot.slane %v687, 4
    %v695 = vadd.f32 %v321, %v691
    %v696 = vadd.f32 %v323, %v692
    %v697 = vxor.u32 %v695, 2147483648
    %v698 = vxor.u32 %v696, 2147483648
    %v699 = vmul.f32 %v697, 1.442695
    %v700 = vpow.pop %v699
    %v701 = vmul.f32 %v698, 1.442695
    %v702 = vpow.pop %v701
    %v703 = vadd.f32 %v700, 1.0
    %v704 = vadd.f32 %v702, 1.0
    %v705 = vrcp.pop %v703
    %v706 = vmul.f32 1.0, %v705
    %v707 = vrcp.pop %v704
    %v708 = vmul.f32 1.0, %v707
    %v709 = vtanh.pop %v696
    %v711 = vrot.slane %v605, 6
    %712 = vrot.lane.b32.xlu0 %v711, 64
    %v713 = vpop.permute.xlu0 %712
    %v715 = vmul.f32 %v706, %v713
    %717 = vrot.lane.b32.xlu0 %v709, 64
    %v718 = vpop.permute.xlu0 %717
    %v720 = vmul.f32 %v706, %v718
    %722 = vrot.lane.b32.xlu0 %v720, 64
    %v723 = vpop.permute.xlu0 %722
    %v725 = vadd.f32 %v715, %v723
    %v726 = vtanh.pop %v725
    %728 = vrot.lane.b32.xlu0 %v726, 64
    %v729 = vpop.permute.xlu0 %728
    %v731 = vmul.f32 %v708, %v729
    %v732 = vmul.f32 %v331, %v731
    %v733 = vrot.slane %v597, 6
    %v735 = vmul.f32 %v459, %v733
    %v736 = vadd.f32 %v732, %v735
    %738 = vrot.lane.b32.xlu0 %v725, 64
    %v739 = vpop.permute.xlu0 %738
    %v741 = vmul.f32 %v331, %v739
    %v743 = vmul.f32 %v459, %v711
    %v744 = vadd.f32 %v741, %v743
    %vm745 = vcmask 258052
    %746 = vst.msk [vmem:[#allocation2 - $0x2] sm:$0x10] %vm745, %v732
    %vm747 = vcmask 520452
    %748 = vst.msk [vmem:[#allocation2 + $0x1] sm:$0x10] %vm747, %v732
    %vm749 = vcmask 259077
    %750 = vst.msk [vmem:[#allocation2 + $0x5] sm:$0x20] %vm749, %v732
    %vm751 = vcmask 521477
    %752 = vst.msk [vmem:[#allocation2 + $0x8] sm:$0x20] %vm751, %v732
    %v754 = vrot.slane %v736, 4
    %v755 = vsel %vm349, %v754, 0
    %757 = vmatprep.subr.mxu0 %v334
    %758 = vmatpush1.msra.mxu0 %v333
    %759 = vmatprep.subr.mxu0 %v336
    %760 = vmatpush1.msra.mxu0 %v335
    %761 = vmatprep.subr.mxu0 %v338
    %762 = vmatpush1.msra.mxu0 %v337
    %763 = vmatprep.subr.mxu0 %v340
    %764 = vmatpush1.msra.mxu0 %v339
    %765 = vmatprep.subr.mxu0 %v342
    %766 = vmatpush1.msra.mxu0 %v341
    %767 = vmatprep.subr.mxu0 %v344
    %768 = vmatpush1.msra.mxu0 %v343
    %769 = vmatprep.subr.mxu0 %v346
    %770 = vmatpush1.msra.mxu0 %v345
    %771 = vmatprep.subr.mxu0 %v348
    %772 = vmatpush1.msra.mxu0 %v347
    %773 = vmatprep.subr.mxu0 0.0
    %774 = vmatpush1.msra.mxu0 0.0
    %775 = vmatprep.subr.mxu0 0.0
    %776 = vmatpush1.msra.mxu0 0.0
    %777 = vmatprep.subr.mxu0 0.0
    %778 = vmatpush1.msra.mxu0 0.0
    %779 = vmatprep.subr.mxu0 0.0
    %780 = vmatpush1.msra.mxu0 0.0
    %781 = vmatprep.subr.mxu0 0.0
    %782 = vmatpush1.msra.mxu0 0.0
    %783 = vmatprep.subr.mxu0 0.0
    %784 = vmatpush1.msra.mxu0 0.0
    %785 = vmatprep.subr.mxu0 0.0
    %786 = vmatpush1.msra.mxu0 0.0
    %787 = vmatprep.subr.mxu0 0.0
    %788 = vmatpush1.msra.mxu0 0.0
    %789 = vmatprep.subr.mxu0 0.0
    %790 = vmatpush1.msra.mxu0 0.0
    %791 = vmatprep.subr.mxu0 0.0
    %792 = vmatpush1.msra.mxu0 0.0
    %793 = vmatprep.subr.mxu0 0.0
    %794 = vmatpush1.msra.mxu0 0.0
    %795 = vmatprep.subr.mxu0 0.0
    %796 = vmatpush1.msra.mxu0 0.0
    %797 = vmatprep.subr.mxu0 0.0
    %798 = vmatpush1.msra.mxu0 0.0
    %799 = vmatprep.subr.mxu0 0.0
    %800 = vmatpush1.msra.mxu0 0.0
    %801 = vmatprep.subr.mxu0 0.0
    %802 = vmatpush1.msra.mxu0 0.0
    %803 = vmatprep.subr.mxu0 0.0
    %804 = vmatpush1.msra.mxu0 0.0
    %805 = vmatprep.subr.mxu0 0.0
    %806 = vmatpush1.msra.mxu0 0.0
    %807 = vmatprep.subr.mxu0 0.0
    %808 = vmatpush1.msra.mxu0 0.0
    %809 = vmatprep.subr.mxu0 0.0
    %810 = vmatpush1.msra.mxu0 0.0
    %811 = vmatprep.subr.mxu0 0.0
    %812 = vmatpush1.msra.mxu0 0.0
    %813 = vmatprep.subr.mxu0 0.0
    %814 = vmatpush1.msra.mxu0 0.0
    %815 = vmatprep.subr.mxu0 0.0
    %816 = vmatpush1.msra.mxu0 0.0
    %817 = vmatprep.subr.mxu0 0.0
    %818 = vmatpush1.msra.mxu0 0.0
    %819 = vmatprep.subr.mxu0 0.0
    %820 = vmatpush1.msra.mxu0 0.0
    %821 = vmatprep.mubr.f32.mxu0 0.0
    %822 = vmatmul.mubr.f32.gmra.mrb[0].mxu0 %v755
    %v823 = vpop.f32.mrb[0].mxu0
    %v824 = vadd.f32 0.0, %v823
    %v825 = vpop.f32.mrb[0].mxu0
    %v826 = vadd.f32 0.0, %v825
    %827 = vdwg.mxu0
    %v830 = vrot.slane %v824, 2
    %v831 = vrot.slane %v826, 2
    %v834 = vadd.f32 %v321, %v830
    %v835 = vadd.f32 %v323, %v831
    %v836 = vxor.u32 %v834, 2147483648
    %v837 = vxor.u32 %v835, 2147483648
    %v838 = vmul.f32 %v836, 1.442695
    %v839 = vpow.pop %v838
    %v840 = vmul.f32 %v837, 1.442695
    %v841 = vpow.pop %v840
    %v842 = vadd.f32 %v839, 1.0
    %v843 = vadd.f32 %v841, 1.0
    %v844 = vrcp.pop %v842
    %v845 = vmul.f32 1.0, %v844
    %v846 = vrcp.pop %v843
    %v847 = vmul.f32 1.0, %v846
    %v848 = vtanh.pop %v835
    %v850 = vrot.slane %v744, 6
    %851 = vrot.lane.b32.xlu0 %v850, 64
    %v852 = vpop.permute.xlu0 %851
    %v854 = vmul.f32 %v845, %v852
    %856 = vrot.lane.b32.xlu0 %v848, 64
    %v857 = vpop.permute.xlu0 %856
    %v859 = vmul.f32 %v845, %v857
    %861 = vrot.lane.b32.xlu0 %v859, 64
    %v862 = vpop.permute.xlu0 %861
    %v864 = vadd.f32 %v854, %v862
    %v865 = vtanh.pop %v864
    %867 = vrot.lane.b32.xlu0 %v865, 64
    %v868 = vpop.permute.xlu0 %867
    %v870 = vmul.f32 %v847, %v868
    %v871 = vmul.f32 %v331, %v870
    %v872 = vrot.slane %v736, 6
    %v874 = vmul.f32 %v459, %v872
    %v875 = vadd.f32 %v871, %v874
    %877 = vrot.lane.b32.xlu0 %v864, 64
    %v878 = vpop.permute.xlu0 %877
    %v880 = vmul.f32 %v331, %v878
    %v882 = vmul.f32 %v459, %v850
    %v883 = vadd.f32 %v880, %v882
    %vm884 = vcmask 260102
    %885 = vst.msk [vmem:[#allocation2 - $0x3] sm:$0x40] %vm884, %v871
    %vm886 = vcmask 522502
    %887 = vst.msk [vmem:[#allocation2 - $0x2] sm:$0x40] %vm886, %v871
    %vm888 = vcmask 261127
    %889 = vst.msk [vmem:[#allocation2 + $0x4] sm:$0x80] %vm888, %v871
    %vm890 = vcmask 523527
    %891 = vst.msk [vmem:[#allocation2 + $0x5] sm:$0x80] %vm890, %v871
    %v893 = vrot.slane %v875, 6
    %v894 = vsel %vm349, %v893, 0
    %896 = vmatprep.subr.mxu0 %v334
    %897 = vmatpush1.msra.mxu0 %v333
    %898 = vmatprep.subr.mxu0 %v336
    %899 = vmatpush1.msra.mxu0 %v335
    %900 = vmatprep.subr.mxu0 %v338
    %901 = vmatpush1.msra.mxu0 %v337
    %902 = vmatprep.subr.mxu0 %v340
    %903 = vmatpush1.msra.mxu0 %v339
    %904 = vmatprep.subr.mxu0 %v342
    %905 = vmatpush1.msra.mxu0 %v341
    %906 = vmatprep.subr.mxu0 %v344
    %907 = vmatpush1.msra.mxu0 %v343
    %908 = vmatprep.subr.mxu0 %v346
    %909 = vmatpush1.msra.mxu0 %v345
    %910 = vmatprep.subr.mxu0 %v348
    %911 = vmatpush1.msra.mxu0 %v347
    %912 = vmatprep.subr.mxu0 0.0
    %913 = vmatpush1.msra.mxu0 0.0
    %914 = vmatprep.subr.mxu0 0.0
    %915 = vmatpush1.msra.mxu0 0.0
    %916 = vmatprep.subr.mxu0 0.0
    %917 = vmatpush1.msra.mxu0 0.0
    %918 = vmatprep.subr.mxu0 0.0
    %919 = vmatpush1.msra.mxu0 0.0
    %920 = vmatprep.subr.mxu0 0.0
    %921 = vmatpush1.msra.mxu0 0.0
    %922 = vmatprep.subr.mxu0 0.0
    %923 = vmatpush1.msra.mxu0 0.0
    %924 = vmatprep.subr.mxu0 0.0
    %925 = vmatpush1.msra.mxu0 0.0
    %926 = vmatprep.subr.mxu0 0.0
    %927 = vmatpush1.msra.mxu0 0.0
    %928 = vmatprep.subr.mxu0 0.0
    %929 = vmatpush1.msra.mxu0 0.0
    %930 = vmatprep.subr.mxu0 0.0
    %931 = vmatpush1.msra.mxu0 0.0
    %932 = vmatprep.subr.mxu0 0.0
    %933 = vmatpush1.msra.mxu0 0.0
    %934 = vmatprep.subr.mxu0 0.0
    %935 = vmatpush1.msra.mxu0 0.0
    %936 = vmatprep.subr.mxu0 0.0
    %937 = vmatpush1.msra.mxu0 0.0
    %938 = vmatprep.subr.mxu0 0.0
    %939 = vmatpush1.msra.mxu0 0.0
    %940 = vmatprep.subr.mxu0 0.0
    %941 = vmatpush1.msra.mxu0 0.0
    %942 = vmatprep.subr.mxu0 0.0
    %943 = vmatpush1.msra.mxu0 0.0
    %944 = vmatprep.subr.mxu0 0.0
    %945 = vmatpush1.msra.mxu0 0.0
    %946 = vmatprep.subr.mxu0 0.0
    %947 = vmatpush1.msra.mxu0 0.0
    %948 = vmatprep.subr.mxu0 0.0
    %949 = vmatpush1.msra.mxu0 0.0
    %950 = vmatprep.subr.mxu0 0.0
    %951 = vmatpush1.msra.mxu0 0.0
    %952 = vmatprep.subr.mxu0 0.0
    %953 = vmatpush1.msra.mxu0 0.0
    %954 = vmatprep.subr.mxu0 0.0
    %955 = vmatpush1.msra.mxu0 0.0
    %956 = vmatprep.subr.mxu0 0.0
    %957 = vmatpush1.msra.mxu0 0.0
    %958 = vmatprep.subr.mxu0 0.0
    %959 = vmatpush1.msra.mxu0 0.0
    %960 = vmatprep.mubr.f32.mxu0 0.0
    %961 = vmatmul.mubr.f32.gmra.mrb[0].mxu0 %v894
    %v962 = vpop.f32.mrb[0].mxu0
    %v963 = vadd.f32 0.0, %v962
    %v964 = vpop.f32.mrb[0].mxu0
    %v965 = vadd.f32 0.0, %v964
    %966 = vdwg.mxu0
    %v967 = vadd.f32 %v327, %v963
    %v968 = vadd.f32 %v329, %v965
    %v969 = vxor.u32 %v967, 2147483648
    %v970 = vxor.u32 %v968, 2147483648
    %v971 = vmul.f32 %v969, 1.442695
    %v972 = vpow.pop %v971
    %v973 = vmul.f32 %v970, 1.442695
    %v974 = vpow.pop %v973
    %v975 = vadd.f32 %v972, 1.0
    %v976 = vadd.f32 %v974, 1.0
    %v977 = vrcp.pop %v975
    %v978 = vmul.f32 1.0, %v977
    %v979 = vrcp.pop %v976
    %v980 = vmul.f32 1.0, %v979
    %v981 = vtanh.pop %v968
    %v983 = vrot.slane %v883, 6
    %984 = vrot.lane.b32.xlu0 %v983, 64
    %v985 = vpop.permute.xlu0 %984
    %v987 = vmul.f32 %v978, %v985
    %989 = vrot.lane.b32.xlu0 %v981, 64
    %v990 = vpop.permute.xlu0 %989
    %v992 = vmul.f32 %v978, %v990
    %994 = vrot.lane.b32.xlu0 %v992, 64
    %v995 = vpop.permute.xlu0 %994
    %v997 = vadd.f32 %v987, %v995
    %v998 = vtanh.pop %v997
    %1000 = vrot.lane.b32.xlu0 %v998, 64
    %v1001 = vpop.permute.xlu0 %1000
    %v1003 = vmul.f32 %v980, %v1001
    %v1004 = vmul.f32 %v332, %v1003
    %v1005 = vsub.f32 1.0, %v332
    %v1007 = vmul.f32 %v1005, %v893
    %v1008 = vadd.f32 %v1004, %v1007
    %1010 = vrot.lane.b32.xlu0 %v997, 64
    %v1011 = vpop.permute.xlu0 %1010
    %v1013 = vmul.f32 %v332, %v1011
    %v1015 = vmul.f32 %v1005, %v983
    %v1016 = vadd.f32 %v1013, %v1015
    %1017 = vst.msk [vmem:[#allocation2 + $0x4] sm:$0x1] %vm468, %v1004
    %1018 = vst.msk [vmem:[#allocation2 + $0x3] sm:$0x1] %vm470, %v1004
    %1019 = vst.msk [vmem:[#allocation2 + $0xb] sm:$0x2] %vm472, %v1004
    %1020 = vst.msk [vmem:[#allocation2 + $0xa] sm:$0x2] %vm474, %v1004
    %v1022 = vsel %vm349, %v1008, 0
    %1024 = vmatprep.subr.mxu0 %v334
    %1025 = vmatpush1.msra.mxu0 %v333
    %1026 = vmatprep.subr.mxu0 %v336
    %1027 = vmatpush1.msra.mxu0 %v335
    %1028 = vmatprep.subr.mxu0 %v338
    %1029 = vmatpush1.msra.mxu0 %v337
    %1030 = vmatprep.subr.mxu0 %v340
    %1031 = vmatpush1.msra.mxu0 %v339
    %1032 = vmatprep.subr.mxu0 %v342
    %1033 = vmatpush1.msra.mxu0 %v341
    %1034 = vmatprep.subr.mxu0 %v344
    %1035 = vmatpush1.msra.mxu0 %v343
    %1036 = vmatprep.subr.mxu0 %v346
    %1037 = vmatpush1.msra.mxu0 %v345
    %1038 = vmatprep.subr.mxu0 %v348
    %1039 = vmatpush1.msra.mxu0 %v347
    %1040 = vmatprep.subr.mxu0 0.0
    %1041 = vmatpush1.msra.mxu0 0.0
    %1042 = vmatprep.subr.mxu0 0.0
    %1043 = vmatpush1.msra.mxu0 0.0
    %1044 = vmatprep.subr.mxu0 0.0
    %1045 = vmatpush1.msra.mxu0 0.0
    %1046 = vmatprep.subr.mxu0 0.0
    %1047 = vmatpush1.msra.mxu0 0.0
    %1048 = vmatprep.subr.mxu0 0.0
    %1049 = vmatpush1.msra.mxu0 0.0
    %1050 = vmatprep.subr.mxu0 0.0
    %1051 = vmatpush1.msra.mxu0 0.0
    %1052 = vmatprep.subr.mxu0 0.0
    %1053 = vmatpush1.msra.mxu0 0.0
    %1054 = vmatprep.subr.mxu0 0.0
    %1055 = vmatpush1.msra.mxu0 0.0
    %1056 = vmatprep.subr.mxu0 0.0
    %1057 = vmatpush1.msra.mxu0 0.0
    %1058 = vmatprep.subr.mxu0 0.0
    %1059 = vmatpush1.msra.mxu0 0.0
    %1060 = vmatprep.subr.mxu0 0.0
    %1061 = vmatpush1.msra.mxu0 0.0
    %1062 = vmatprep.subr.mxu0 0.0
    %1063 = vmatpush1.msra.mxu0 0.0
    %1064 = vmatprep.subr.mxu0 0.0
    %1065 = vmatpush1.msra.mxu0 0.0
    %1066 = vmatprep.subr.mxu0 0.0
    %1067 = vmatpush1.msra.mxu0 0.0
    %1068 = vmatprep.subr.mxu0 0.0
    %1069 = vmatpush1.msra.mxu0 0.0
    %1070 = vmatprep.subr.mxu0 0.0
    %1071 = vmatpush1.msra.mxu0 0.0
    %1072 = vmatprep.subr.mxu0 0.0
    %1073 = vmatpush1.msra.mxu0 0.0
    %1074 = vmatprep.subr.mxu0 0.0
    %1075 = vmatpush1.msra.mxu0 0.0
    %1076 = vmatprep.subr.mxu0 0.0
    %1077 = vmatpush1.msra.mxu0 0.0
    %1078 = vmatprep.subr.mxu0 0.0
    %1079 = vmatpush1.msra.mxu0 0.0
    %1080 = vmatprep.subr.mxu0 0.0
    %1081 = vmatpush1.msra.mxu0 0.0
    %1082 = vmatprep.subr.mxu0 0.0
    %1083 = vmatpush1.msra.mxu0 0.0
    %1084 = vmatprep.subr.mxu0 0.0
    %1085 = vmatpush1.msra.mxu0 0.0
    %1086 = vmatprep.subr.mxu0 0.0
    %1087 = vmatpush1.msra.mxu0 0.0
    %1088 = vmatprep.mubr.f32.mxu0 0.0
    %1089 = vmatmul.mubr.f32.gmra.mrb[0].mxu0 %v1022
    %v1090 = vpop.f32.mrb[0].mxu0
    %v1091 = vadd.f32 0.0, %v1090
    %v1092 = vpop.f32.mrb[0].mxu0
    %v1093 = vadd.f32 0.0, %v1092
    %1094 = vdwg.mxu0
    %v1097 = vrot.slane %v1091, 6
    %v1098 = vrot.slane %v1093, 6
    %v1101 = vadd.f32 %v327, %v1097
    %v1102 = vadd.f32 %v329, %v1098
    %v1103 = vxor.u32 %v1101, 2147483648
    %v1104 = vxor.u32 %v1102, 2147483648
    %v1105 = vmul.f32 %v1103, 1.442695
    %v1106 = vpow.pop %v1105
    %v1107 = vmul.f32 %v1104, 1.442695
    %v1108 = vpow.pop %v1107
    %v1109 = vadd.f32 %v1106, 1.0
    %v1110 = vadd.f32 %v1108, 1.0
    %v1111 = vrcp.pop %v1109
    %v1112 = vmul.f32 1.0, %v1111
    %v1113 = vrcp.pop %v1110
    %v1114 = vmul.f32 1.0, %v1113
    %v1115 = vtanh.pop %v1102
    %v1117 = vrot.slane %v1016, 6
    %1118 = vrot.lane.b32.xlu0 %v1117, 64
    %v1119 = vpop.permute.xlu0 %1118
    %v1121 = vmul.f32 %v1112, %v1119
    %1123 = vrot.lane.b32.xlu0 %v1115, 64
    %v1124 = vpop.permute.xlu0 %1123
    %v1126 = vmul.f32 %v1112, %v1124
    %1128 = vrot.lane.b32.xlu0 %v1126, 64
    %v1129 = vpop.permute.xlu0 %1128
    %v1131 = vadd.f32 %v1121, %v1129
    %v1132 = vtanh.pop %v1131
    %1134 = vrot.lane.b32.xlu0 %v1132, 64
    %v1135 = vpop.permute.xlu0 %1134
    %v1137 = vmul.f32 %v1114, %v1135
    %v1138 = vmul.f32 %v332, %v1137
    %v1139 = vrot.slane %v1008, 6
    %v1141 = vmul.f32 %v1005, %v1139
    %v1142 = vadd.f32 %v1138, %v1141
    %1144 = vrot.lane.b32.xlu0 %v1131, 64
    %v1145 = vpop.permute.xlu0 %1144
    %v1147 = vmul.f32 %v332, %v1145
    %v1149 = vmul.f32 %v1005, %v1117
    %v1150 = vadd.f32 %v1147, %v1149
    %1151 = vst.msk [vmem:[#allocation2 + $0x3] sm:$0x4] %vm606, %v1138
    %1152 = vst.msk [vmem:[#allocation2] sm:$0x4] %vm608, %v1138
    %1153 = vst.msk [vmem:[#allocation2 + $0xa] sm:$0x8] %vm610, %v1138
    %1154 = vst.msk [vmem:[#allocation2 + $0x7] sm:$0x8] %vm612, %v1138
    %v1156 = vrot.slane %v1142, 2
    %v1157 = vsel %vm349, %v1156, 0
    %1159 = vmatprep.subr.mxu0 %v334
    %1160 = vmatpush1.msra.mxu0 %v333
    %1161 = vmatprep.subr.mxu0 %v336
    %1162 = vmatpush1.msra.mxu0 %v335
    %1163 = vmatprep.subr.mxu0 %v338
    %1164 = vmatpush1.msra.mxu0 %v337
    %1165 = vmatprep.subr.mxu0 %v340
    %1166 = vmatpush1.msra.mxu0 %v339
    %1167 = vmatprep.subr.mxu0 %v342
    %1168 = vmatpush1.msra.mxu0 %v341
    %1169 = vmatprep.subr.mxu0 %v344
    %1170 = vmatpush1.msra.mxu0 %v343
    %1171 = vmatprep.subr.mxu0 %v346
    %1172 = vmatpush1.msra.mxu0 %v345
    %1173 = vmatprep.subr.mxu0 %v348
    %1174 = vmatpush1.msra.mxu0 %v347
    %1175 = vmatprep.subr.mxu0 0.0
    %1176 = vmatpush1.msra.mxu0 0.0
    %1177 = vmatprep.subr.mxu0 0.0
    %1178 = vmatpush1.msra.mxu0 0.0
    %1179 = vmatprep.subr.mxu0 0.0
    %1180 = vmatpush1.msra.mxu0 0.0
    %1181 = vmatprep.subr.mxu0 0.0
    %1182 = vmatpush1.msra.mxu0 0.0
    %1183 = vmatprep.subr.mxu0 0.0
    %1184 = vmatpush1.msra.mxu0 0.0
    %1185 = vmatprep.subr.mxu0 0.0
    %1186 = vmatpush1.msra.mxu0 0.0
    %1187 = vmatprep.subr.mxu0 0.0
    %1188 = vmatpush1.msra.mxu0 0.0
    %1189 = vmatprep.subr.mxu0 0.0
    %1190 = vmatpush1.msra.mxu0 0.0
    %1191 = vmatprep.subr.mxu0 0.0
    %1192 = vmatpush1.msra.mxu0 0.0
    %1193 = vmatprep.subr.mxu0 0.0
    %1194 = vmatpush1.msra.mxu0 0.0
    %1195 = vmatprep.subr.mxu0 0.0
    %1196 = vmatpush1.msra.mxu0 0.0
    %1197 = vmatprep.subr.mxu0 0.0
    %1198 = vmatpush1.msra.mxu0 0.0
    %1199 = vmatprep.subr.mxu0 0.0
    %1200 = vmatpush1.msra.mxu0 0.0
    %1201 = vmatprep.subr.mxu0 0.0
    %1202 = vmatpush1.msra.mxu0 0.0
    %1203 = vmatprep.subr.mxu0 0.0
    %1204 = vmatpush1.msra.mxu0 0.0
    %1205 = vmatprep.subr.mxu0 0.0
    %1206 = vmatpush1.msra.mxu0 0.0
    %1207 = vmatprep.subr.mxu0 0.0
    %1208 = vmatpush1.msra.mxu0 0.0
    %1209 = vmatprep.subr.mxu0 0.0
    %1210 = vmatpush1.msra.mxu0 0.0
    %1211 = vmatprep.subr.mxu0 0.0
    %1212 = vmatpush1.msra.mxu0 0.0
    %1213 = vmatprep.subr.mxu0 0.0
    %1214 = vmatpush1.msra.mxu0 0.0
    %1215 = vmatprep.subr.mxu0 0.0
    %1216 = vmatpush1.msra.mxu0 0.0
    %1217 = vmatprep.subr.mxu0 0.0
    %1218 = vmatpush1.msra.mxu0 0.0
    %1219 = vmatprep.subr.mxu0 0.0
    %1220 = vmatpush1.msra.mxu0 0.0
    %1221 = vmatprep.subr.mxu0 0.0
    %1222 = vmatpush1.msra.mxu0 0.0
    %1223 = vmatprep.mubr.f32.mxu0 0.0
    %1224 = vmatmul.mubr.f32.gmra.mrb[0].mxu0 %v1157
    %v1225 = vpop.f32.mrb[0].mxu0
    %v1226 = vadd.f32 0.0, %v1225
    %v1227 = vpop.f32.mrb[0].mxu0
    %v1228 = vadd.f32 0.0, %v1227
    %1229 = vdwg.mxu0
    %v1232 = vrot.slane %v1226, 4
    %v1233 = vrot.slane %v1228, 4
    %v1236 = vadd.f32 %v327, %v1232
    %v1237 = vadd.f32 %v329, %v1233
    %v1238 = vxor.u32 %v1236, 2147483648
    %v1239 = vxor.u32 %v1237, 2147483648
    %v1240 = vmul.f32 %v1238, 1.442695
    %v1241 = vpow.pop %v1240
    %v1242 = vmul.f32 %v1239, 1.442695
    %v1243 = vpow.pop %v1242
    %v1244 = vadd.f32 %v1241, 1.0
    %v1245 = vadd.f32 %v1243, 1.0
    %v1246 = vrcp.pop %v1244
    %v1247 = vmul.f32 1.0, %v1246
    %v1248 = vrcp.pop %v1245
    %v1249 = vmul.f32 1.0, %v1248
    %v1250 = vtanh.pop %v1237
    %v1252 = vrot.slane %v1150, 6
    %1253 = vrot.lane.b32.xlu0 %v1252, 64
    %v1254 = vpop.permute.xlu0 %1253
    %v1256 = vmul.f32 %v1247, %v1254
    %1258 = vrot.lane.b32.xlu0 %v1250, 64
    %v1259 = vpop.permute.xlu0 %1258
    %v1261 = vmul.f32 %v1247, %v1259
    %1263 = vrot.lane.b32.xlu0 %v1261, 64
    %v1264 = vpop.permute.xlu0 %1263
    %v1266 = vadd.f32 %v1256, %v1264
    %v1267 = vtanh.pop %v1266
    %1269 = vrot.lane.b32.xlu0 %v1267, 64
    %v1270 = vpop.permute.xlu0 %1269
    %v1272 = vmul.f32 %v1249, %v1270
    %v1273 = vmul.f32 %v332, %v1272
    %v1274 = vrot.slane %v1142, 6
    %v1276 = vmul.f32 %v1005, %v1274
    %v1277 = vadd.f32 %v1273, %v1276
    %1279 = vrot.lane.b32.xlu0 %v1266, 64
    %v1280 = vpop.permute.xlu0 %1279
    %v1282 = vmul.f32 %v332, %v1280
    %v1284 = vmul.f32 %v1005, %v1252
    %v1285 = vadd.f32 %v1282, %v1284
    %1286 = vst.msk [vmem:[#allocation2 + $0x2] sm:$0x10] %vm745, %v1273
    %1287 = vst.msk [vmem:[#allocation2 - $0x3] sm:$0x10] %vm747, %v1273
    %1288 = vst.msk [vmem:[#allocation2 + $0x9] sm:$0x20] %vm749, %v1273
    %1289 = vst.msk [vmem:[#allocation2 + $0x4] sm:$0x20] %vm751, %v1273
    %v1291 = vrot.slane %v1277, 4
    %v1292 = vsel %vm349, %v1291, 0
    %1294 = vmatprep.subr.mxu0 %v334
    %1295 = vmatpush1.msra.mxu0 %v333
    %1296 = vmatprep.subr.mxu0 %v336
    %1297 = vmatpush1.msra.mxu0 %v335
    %1298 = vmatprep.subr.mxu0 %v338
    %1299 = vmatpush1.msra.mxu0 %v337
    %1300 = vmatprep.subr.mxu0 %v340
    %1301 = vmatpush1.msra.mxu0 %v339
    %1302 = vmatprep.subr.mxu0 %v342
    %1303 = vmatpush1.msra.mxu0 %v341
    %1304 = vmatprep.subr.mxu0 %v344
    %1305 = vmatpush1.msra.mxu0 %v343
    %1306 = vmatprep.subr.mxu0 %v346
    %1307 = vmatpush1.msra.mxu0 %v345
    %1308 = vmatprep.subr.mxu0 %v348
    %1309 = vmatpush1.msra.mxu0 %v347
    %1310 = vmatprep.subr.mxu0 0.0
    %1311 = vmatpush1.msra.mxu0 0.0
    %1312 = vmatprep.subr.mxu0 0.0
    %1313 = vmatpush1.msra.mxu0 0.0
    %1314 = vmatprep.subr.mxu0 0.0
    %1315 = vmatpush1.msra.mxu0 0.0
    %1316 = vmatprep.subr.mxu0 0.0
    %1317 = vmatpush1.msra.mxu0 0.0
    %1318 = vmatprep.subr.mxu0 0.0
    %1319 = vmatpush1.msra.mxu0 0.0
    %1320 = vmatprep.subr.mxu0 0.0
    %1321 = vmatpush1.msra.mxu0 0.0
    %1322 = vmatprep.subr.mxu0 0.0
    %1323 = vmatpush1.msra.mxu0 0.0
    %1324 = vmatprep.subr.mxu0 0.0
    %1325 = vmatpush1.msra.mxu0 0.0
    %1326 = vmatprep.subr.mxu0 0.0
    %1327 = vmatpush1.msra.mxu0 0.0
    %1328 = vmatprep.subr.mxu0 0.0
    %1329 = vmatpush1.msra.mxu0 0.0
    %1330 = vmatprep.subr.mxu0 0.0
    %1331 = vmatpush1.msra.mxu0 0.0
    %1332 = vmatprep.subr.mxu0 0.0
    %1333 = vmatpush1.msra.mxu0 0.0
    %1334 = vmatprep.subr.mxu0 0.0
    %1335 = vmatpush1.msra.mxu0 0.0
    %1336 = vmatprep.subr.mxu0 0.0
    %1337 = vmatpush1.msra.mxu0 0.0
    %1338 = vmatprep.subr.mxu0 0.0
    %1339 = vmatpush1.msra.mxu0 0.0
    %1340 = vmatprep.subr.mxu0 0.0
    %1341 = vmatpush1.msra.mxu0 0.0
    %1342 = vmatprep.subr.mxu0 0.0
    %1343 = vmatpush1.msra.mxu0 0.0
    %1344 = vmatprep.subr.mxu0 0.0
    %1345 = vmatpush1.msra.mxu0 0.0
    %1346 = vmatprep.subr.mxu0 0.0
    %1347 = vmatpush1.msra.mxu0 0.0
    %1348 = vmatprep.subr.mxu0 0.0
    %1349 = vmatpush1.msra.mxu0 0.0
    %1350 = vmatprep.subr.mxu0 0.0
    %1351 = vmatpush1.msra.mxu0 0.0
    %1352 = vmatprep.subr.mxu0 0.0
    %1353 = vmatpush1.msra.mxu0 0.0
    %1354 = vmatprep.subr.mxu0 0.0
    %1355 = vmatpush1.msra.mxu0 0.0
    %1356 = vmatprep.subr.mxu0 0.0
    %1357 = vmatpush1.msra.mxu0 0.0
    %1358 = vmatprep.mubr.f32.mxu0 0.0
    %1359 = vmatmul.mubr.f32.gmra.mrb[0].mxu0 %v1292
    %v1360 = vpop.f32.mrb[0].mxu0
    %v1361 = vadd.f32 0.0, %v1360
    %v1362 = vpop.f32.mrb[0].mxu0
    %v1363 = vadd.f32 0.0, %v1362
    %1364 = vdwg.mxu0
    %v1367 = vrot.slane %v1361, 2
    %v1368 = vrot.slane %v1363, 2
    %v1371 = vadd.f32 %v327, %v1367
    %v1372 = vadd.f32 %v329, %v1368
    %v1373 = vxor.u32 %v1371, 2147483648
    %v1374 = vxor.u32 %v1372, 2147483648
    %v1375 = vmul.f32 %v1373, 1.442695
    %v1376 = vpow.pop %v1375
    %v1377 = vmul.f32 %v1374, 1.442695
    %v1378 = vpow.pop %v1377
    %v1379 = vadd.f32 %v1376, 1.0
    %v1380 = vadd.f32 %v1378, 1.0
    %v1381 = vrcp.pop %v1379
    %v1382 = vmul.f32 1.0, %v1381
    %v1383 = vrcp.pop %v1380
    %v1384 = vmul.f32 1.0, %v1383
    %v1385 = vtanh.pop %v1372
    %v1387 = vrot.slane %v1285, 6
    %1388 = vrot.lane.b32.xlu0 %v1387, 64
    %v1389 = vpop.permute.xlu0 %1388
    %v1391 = vmul.f32 %v1382, %v1389
    %1393 = vrot.lane.b32.xlu0 %v1385, 64
    %v1394 = vpop.permute.xlu0 %1393
    %v1396 = vmul.f32 %v1382, %v1394
    %1398 = vrot.lane.b32.xlu0 %v1396, 64
    %v1399 = vpop.permute.xlu0 %1398
    %v1401 = vadd.f32 %v1391, %v1399
    %v1402 = vtanh.pop %v1401
    %1404 = vrot.lane.b32.xlu0 %v1402, 64
    %v1405 = vpop.permute.xlu0 %1404
    %v1407 = vmul.f32 %v1384, %v1405
    %v1408 = vmul.f32 %v332, %v1407
    %1409 = vst.msk [vmem:[#allocation2 + $0x1] sm:$0x40] %vm884, %v1408
    %1410 = vst.msk [vmem:[#allocation2 - $0x6] sm:$0x40] %vm886, %v1408
    %1411 = vst.msk [vmem:[#allocation2 + $0x8] sm:$0x80] %vm888, %v1408
    %1412 = vst.msk [vmem:[#allocation2 + $0x1] sm:$0x80] %vm890, %v1408
    %v1413 = vld [vmem:[#allocation2] sm:$0xff]
    %v1414 = vld [vmem:[#allocation2 + $0x8] sm:$0xff]
    %v1415 = vld [vmem:[#allocation8] sm:$0xff]
    %v1416 = vld [vmem:[#allocation8 + $0x8] sm:$0xff]
    %v1417 = vld [vmem:[#allocation8 + $0x10] sm:$0xff]
    %v1418 = vld [vmem:[#allocation8 + $0x18] sm:$0xff]
    %v1419 = vld [vmem:[#allocation8 + $0x20] sm:$0xff]
    %v1420 = vld [vmem:[#allocation8 + $0x28] sm:$0xff]
    %v1421 = vld [vmem:[#allocation8 + $0x30] sm:$0xff]
    %v1422 = vld [vmem:[#allocation8 + $0x38] sm:$0xff]
    %v1424 = vsel %vm349, %v1413, 0
    %v1427 = vsel %vm349, %v1414, 0
    %1429 = vmatprep.subr.mxu0 0.0
    %1430 = vmatpush1.msra.mxu0 %v1415
    %1431 = vmatprep.subr.mxu0 0.0
    %1432 = vmatpush1.msra.mxu0 %v1416
    %1433 = vmatprep.subr.mxu0 0.0
    %1434 = vmatpush1.msra.mxu0 %v1417
    %1435 = vmatprep.subr.mxu0 0.0
    %1436 = vmatpush1.msra.mxu0 %v1418
    %1437 = vmatprep.subr.mxu0 0.0
    %1438 = vmatpush1.msra.mxu0 %v1419
    %1439 = vmatprep.subr.mxu0 0.0
    %1440 = vmatpush1.msra.mxu0 %v1420
    %1441 = vmatprep.subr.mxu0 0.0
    %1442 = vmatpush1.msra.mxu0 %v1421
    %1443 = vmatprep.subr.mxu0 0.0
    %1444 = vmatpush1.msra.mxu0 %v1422
    %1445 = vmatprep.subr.mxu0 0.0
    %1446 = vmatpush1.msra.mxu0 0.0
    %1447 = vmatprep.subr.mxu0 0.0
    %1448 = vmatpush1.msra.mxu0 0.0
    %1449 = vmatprep.subr.mxu0 0.0
    %1450 = vmatpush1.msra.mxu0 0.0
    %1451 = vmatprep.subr.mxu0 0.0
    %1452 = vmatpush1.msra.mxu0 0.0
    %1453 = vmatprep.subr.mxu0 0.0
    %1454 = vmatpush1.msra.mxu0 0.0
    %1455 = vmatprep.subr.mxu0 0.0
    %1456 = vmatpush1.msra.mxu0 0.0
    %1457 = vmatprep.subr.mxu0 0.0
    %1458 = vmatpush1.msra.mxu0 0.0
    %1459 = vmatprep.subr.mxu0 0.0
    %1460 = vmatpush1.msra.mxu0 0.0
    %1461 = vmatprep.subr.mxu0 0.0
    %1462 = vmatpush1.msra.mxu0 0.0
    %1463 = vmatprep.subr.mxu0 0.0
    %1464 = vmatpush1.msra.mxu0 0.0
    %1465 = vmatprep.subr.mxu0 0.0
    %1466 = vmatpush1.msra.mxu0 0.0
    %1467 = vmatprep.subr.mxu0 0.0
    %1468 = vmatpush1.msra.mxu0 0.0
    %1469 = vmatprep.subr.mxu0 0.0
    %1470 = vmatpush1.msra.mxu0 0.0
    %1471 = vmatprep.subr.mxu0 0.0
    %1472 = vmatpush1.msra.mxu0 0.0
    %1473 = vmatprep.subr.mxu0 0.0
    %1474 = vmatpush1.msra.mxu0 0.0
    %1475 = vmatprep.subr.mxu0 0.0
    %1476 = vmatpush1.msra.mxu0 0.0
    %1477 = vmatprep.subr.mxu0 0.0
    %1478 = vmatpush1.msra.mxu0 0.0
    %1479 = vmatprep.subr.mxu0 0.0
    %1480 = vmatpush1.msra.mxu0 0.0
    %1481 = vmatprep.subr.mxu0 0.0
    %1482 = vmatpush1.msra.mxu0 0.0
    %1483 = vmatprep.subr.mxu0 0.0
    %1484 = vmatpush1.msra.mxu0 0.0
    %1485 = vmatprep.subr.mxu0 0.0
    %1486 = vmatpush1.msra.mxu0 0.0
    %1487 = vmatprep.subr.mxu0 0.0
    %1488 = vmatpush1.msra.mxu0 0.0
    %1489 = vmatprep.subr.mxu0 0.0
    %1490 = vmatpush1.msra.mxu0 0.0
    %1491 = vmatprep.subr.mxu0 0.0
    %1492 = vmatpush1.msra.mxu0 0.0
    %1493 = vmatprep.mubr.f32.mxu0 0.0
    %1494 = vmatmul.mubr.f32.gmra.mrb[0].mxu0 %v1424
    %v1495 = vpop.f32.mrb[0].mxu0
    %v1496 = vadd.f32 0.0, %v1495
    %v1497 = vpop.f32.mrb[0].mxu0
    %1498 = vmatprep.mubr.f32.mxu0 0.0
    %1499 = vmatmul.mubr.f32.gmra.mrb[0].mxu0 %v1427
    %v1500 = vpop.f32.mrb[0].mxu0
    %v1501 = vadd.f32 0.0, %v1500
    %v1502 = vpop.f32.mrb[0].mxu0
    %1503 = vdwg.mxu0
    %v1504 = vtanh.pop %v1496
    %v1505 = vtanh.pop %v1501
    %v1506 = vld [vmem:[%s2] sm:$0x1]
    %v1507 = vsub.f32 %v1506, 1.0
    %v1508 = vmul.f32 %v1507, 1e+30
    %v1509 = vld [vmem:[#allocation9] sm:$0x1]
    %1511 = vrot.lane.b32.xlu0 %v1504, 64
    %v1512 = vpop.permute.xlu0 %1511
    %v1514 = vsel %vm349, %v1509, 0
    %v1516 = vsel %vm349, %v1512, 0
    %1518 = vmatprep.subr.mxu0 0.0
    %1519 = vmatpush1.xpose.msra.mxu0 %v1516
    %1520 = vmatprep.subr.mxu0 0.0
    %1521 = vmatpush1.xpose.msra.mxu0 0.0
    %1522 = vmatprep.subr.mxu0 0.0
    %1523 = vmatpush1.xpose.msra.mxu0 0.0
    %1524 = vmatprep.subr.mxu0 0.0
    %1525 = vmatpush1.xpose.msra.mxu0 0.0
    %1526 = vmatprep.subr.mxu0 0.0
    %1527 = vmatpush1.xpose.msra.mxu0 0.0
    %1528 = vmatprep.subr.mxu0 0.0
    %1529 = vmatpush1.xpose.msra.mxu0 0.0
    %1530 = vmatprep.subr.mxu0 0.0
    %1531 = vmatpush1.xpose.msra.mxu0 0.0
    %1532 = vmatprep.subr.mxu0 0.0
    %1533 = vmatpush1.xpose.msra.mxu0 0.0
    %1534 = vmatprep.subr.mxu0 0.0
    %1535 = vmatpush1.xpose.msra.mxu0 0.0
    %1536 = vmatprep.subr.mxu0 0.0
    %1537 = vmatpush1.xpose.msra.mxu0 0.0
    %1538 = vmatprep.subr.mxu0 0.0
    %1539 = vmatpush1.xpose.msra.mxu0 0.0
    %1540 = vmatprep.subr.mxu0 0.0
    %1541 = vmatpush1.xpose.msra.mxu0 0.0
    %1542 = vmatprep.subr.mxu0 0.0
    %1543 = vmatpush1.xpose.msra.mxu0 0.0
    %1544 = vmatprep.subr.mxu0 0.0
    %1545 = vmatpush1.xpose.msra.mxu0 0.0
    %1546 = vmatprep.subr.mxu0 0.0
    %1547 = vmatpush1.xpose.msra.mxu0 0.0
    %1548 = vmatprep.subr.mxu0 0.0
    %1549 = vmatpush1.xpose.msra.mxu0 0.0
    %1550 = vmatprep.subr.mxu0 0.0
    %1551 = vmatpush1.xpose.msra.mxu0 0.0
    %1552 = vmatprep.subr.mxu0 0.0
    %1553 = vmatpush1.xpose.msra.mxu0 0.0
    %1554 = vmatprep.subr.mxu0 0.0
    %1555 = vmatpush1.xpose.msra.mxu0 0.0
    %1556 = vmatprep.subr.mxu0 0.0
    %1557 = vmatpush1.xpose.msra.mxu0 0.0
    %1558 = vmatprep.subr.mxu0 0.0
    %1559 = vmatpush1.xpose.msra.mxu0 0.0
    %1560 = vmatprep.subr.mxu0 0.0
    %1561 = vmatpush1.xpose.msra.mxu0 0.0
    %1562 = vmatprep.subr.mxu0 0.0
    %1563 = vmatpush1.xpose.msra.mxu0 0.0
    %1564 = vmatprep.subr.mxu0 0.0
    %1565 = vmatpush1.xpose.msra.mxu0 0.0
    %1566 = vmatprep.subr.mxu0 0.0
    %1567 = vmatpush1.xpose.msra.mxu0 0.0
    %1568 = vmatprep.subr.mxu0 0.0
    %1569 = vmatpush1.xpose.msra.mxu0 0.0
    %1570 = vmatprep.subr.mxu0 0.0
    %1571 = vmatpush1.xpose.msra.mxu0 0.0
    %1572 = vmatprep.subr.mxu0 0.0
    %1573 = vmatpush1.xpose.msra.mxu0 0.0
    %1574 = vmatprep.subr.mxu0 0.0
    %1575 = vmatpush1.xpose.msra.mxu0 0.0
    %1576 = vmatprep.subr.mxu0 0.0
    %1577 = vmatpush1.xpose.msra.mxu0 0.0
    %1578 = vmatprep.subr.mxu0 0.0
    %1579 = vmatpush1.xpose.msra.mxu0 0.0
    %1580 = vmatprep.subr.mxu0 0.0
    %1581 = vmatpush1.xpose.msra.mxu0 0.0
    %1582 = vmatprep.mubr.f32.mxu0 0.0
    %1583 = vmatmul.mubr.f32.gmra.mrb[0].mxu0 %v1514
    %v1584 = vpop.f32.mrb[0].mxu0
    %v1585 = vadd.f32 %v1508, %v1584
    %v1586 = vpop.f32.mrb[0].mxu0
    %1587 = vdwg.mxu0
    %vm1588 = vcmask 57344
    %v1589 = vsel %vm1588, %v1585, -inf
    %1590 = vmax.xlane.f32.xlu0 %v1589
    %v1591 = vpop.xlane.xlu0 %1590
    %v1592 = vsub.f32 %v1585, %v1591
    %v1593 = vmul.f32 %v1592, 1.442695
    %v1594 = vpow.pop %v1593
    %v1595 = vsel %vm1588, %v1594, 0.0
    %1596 = vadd.xlane.f32.xlu0 %v1595
    %v1597 = vpop.xlane.xlu0 %1596
    %v1598 = vrcp.pop %v1597
    %v1599 = vmul.f32 %v1594, %v1598
    %vm1600 = vcmask 64512
    %v1602 = vsel %vm1600, %v1599, 0
    %1604 = vmatprep.subr.mxu0 0.0
    %1605 = vmatpush1.msra.mxu0 %v1413
    %1606 = vmatprep.subr.mxu0 0.0
    %1607 = vmatpush1.msra.mxu0 0.0
    %1608 = vmatprep.subr.mxu0 0.0
    %1609 = vmatpush1.msra.mxu0 0.0
    %1610 = vmatprep.subr.mxu0 0.0
    %1611 = vmatpush1.msra.mxu0 0.0
    %1612 = vmatprep.subr.mxu0 0.0
    %1613 = vmatpush1.msra.mxu0 0.0
    %1614 = vmatprep.subr.mxu0 0.0
    %1615 = vmatpush1.msra.mxu0 0.0
    %1616 = vmatprep.subr.mxu0 0.0
    %1617 = vmatpush1.msra.mxu0 0.0
    %1618 = vmatprep.subr.mxu0 0.0
    %1619 = vmatpush1.msra.mxu0 0.0
    %1620 = vmatprep.subr.mxu0 0.0
    %1621 = vmatpush1.msra.mxu0 0.0
    %1622 = vmatprep.subr.mxu0 0.0
    %1623 = vmatpush1.msra.mxu0 0.0
    %1624 = vmatprep.subr.mxu0 0.0
    %1625 = vmatpush1.msra.mxu0 0.0
    %1626 = vmatprep.subr.mxu0 0.0
    %1627 = vmatpush1.msra.mxu0 0.0
    %1628 = vmatprep.subr.mxu0 0.0
    %1629 = vmatpush1.msra.mxu0 0.0
    %1630 = vmatprep.subr.mxu0 0.0
    %1631 = vmatpush1.msra.mxu0 0.0
    %1632 = vmatprep.subr.mxu0 0.0
    %1633 = vmatpush1.msra.mxu0 0.0
    %1634 = vmatprep.subr.mxu0 0.0
    %1635 = vmatpush1.msra.mxu0 0.0
    %1636 = vmatprep.subr.mxu0 0.0
    %1637 = vmatpush1.msra.mxu0 0.0
    %1638 = vmatprep.subr.mxu0 0.0
    %1639 = vmatpush1.msra.mxu0 0.0
    %1640 = vmatprep.subr.mxu0 0.0
    %1641 = vmatpush1.msra.mxu0 0.0
    %1642 = vmatprep.subr.mxu0 0.0
    %1643 = vmatpush1.msra.mxu0 0.0
    %1644 = vmatprep.subr.mxu0 0.0
    %1645 = vmatpush1.msra.mxu0 0.0
    %1646 = vmatprep.subr.mxu0 0.0
    %1647 = vmatpush1.msra.mxu0 0.0
    %1648 = vmatprep.subr.mxu0 0.0
    %1649 = vmatpush1.msra.mxu0 0.0
    %1650 = vmatprep.subr.mxu0 0.0
    %1651 = vmatpush1.msra.mxu0 0.0
    %1652 = vmatprep.subr.mxu0 0.0
    %1653 = vmatpush1.msra.mxu0 0.0
    %1654 = vmatprep.subr.mxu0 0.0
    %1655 = vmatpush1.msra.mxu0 0.0
    %1656 = vmatprep.subr.mxu0 0.0
    %1657 = vmatpush1.msra.mxu0 0.0
    %1658 = vmatprep.subr.mxu0 0.0
    %1659 = vmatpush1.msra.mxu0 0.0
    %1660 = vmatprep.subr.mxu0 0.0
    %1661 = vmatpush1.msra.mxu0 0.0
    %1662 = vmatprep.subr.mxu0 0.0
    %1663 = vmatpush1.msra.mxu0 0.0
    %1664 = vmatprep.subr.mxu0 0.0
    %1665 = vmatpush1.msra.mxu0 0.0
    %1666 = vmatprep.subr.mxu0 0.0
    %1667 = vmatpush1.msra.mxu0 0.0
    %1668 = vmatprep.mubr.f32.mxu0 0.0
    %1669 = vmatmul.mubr.f32.gmra.mrb[0].mxu0 %v1602
    %v1670 = vpop.f32.mrb[0].mxu0
    %v1671 = vadd.f32 0.0, %v1670
    %v1672 = vpop.f32.mrb[0].mxu0
    %1673 = vdwg.mxu0
    %v1675 = vsel %vm349, %v1496, 0
    %1677 = vmatprep.subr.mxu0 0.0
    %1678 = vmatpush1.xpose.msra.mxu0 %v1424
    %1679 = vmatprep.subr.mxu0 0.0
    %1680 = vmatpush1.xpose.msra.mxu0 0.0
    %1681 = vmatprep.subr.mxu0 0.0
    %1682 = vmatpush1.xpose.msra.mxu0 0.0
    %1683 = vmatprep.subr.mxu0 0.0
    %1684 = vmatpush1.xpose.msra.mxu0 0.0
    %1685 = vmatprep.subr.mxu0 0.0
    %1686 = vmatpush1.xpose.msra.mxu0 0.0
    %1687 = vmatprep.subr.mxu0 0.0
    %1688 = vmatpush1.xpose.msra.mxu0 0.0
    %1689 = vmatprep.subr.mxu0 0.0
    %1690 = vmatpush1.xpose.msra.mxu0 0.0
    %1691 = vmatprep.subr.mxu0 0.0
    %1692 = vmatpush1.xpose.msra.mxu0 0.0
    %1693 = vmatprep.subr.mxu0 0.0
    %1694 = vmatpush1.xpose.msra.mxu0 0.0
    %1695 = vmatprep.subr.mxu0 0.0
    %1696 = vmatpush1.xpose.msra.mxu0 0.0
    %1697 = vmatprep.subr.mxu0 0.0
    %1698 = vmatpush1.xpose.msra.mxu0 0.0
    %1699 = vmatprep.subr.mxu0 0.0
    %1700 = vmatpush1.xpose.msra.mxu0 0.0
    %1701 = vmatprep.subr.mxu0 0.0
    %1702 = vmatpush1.xpose.msra.mxu0 0.0
    %1703 = vmatprep.subr.mxu0 0.0
    %1704 = vmatpush1.xpose.msra.mxu0 0.0
    %1705 = vmatprep.subr.mxu0 0.0
    %1706 = vmatpush1.xpose.msra.mxu0 0.0
    %1707 = vmatprep.subr.mxu0 0.0
    %1708 = vmatpush1.xpose.msra.mxu0 0.0
    %1709 = vmatprep.subr.mxu0 0.0
    %1710 = vmatpush1.xpose.msra.mxu0 0.0
    %1711 = vmatprep.subr.mxu0 0.0
    %1712 = vmatpush1.xpose.msra.mxu0 0.0
    %1713 = vmatprep.subr.mxu0 0.0
    %1714 = vmatpush1.xpose.msra.mxu0 0.0
    %1715 = vmatprep.subr.mxu0 0.0
    %1716 = vmatpush1.xpose.msra.mxu0 0.0
    %1717 = vmatprep.subr.mxu0 0.0
    %1718 = vmatpush1.xpose.msra.mxu0 0.0
    %1719 = vmatprep.subr.mxu0 0.0
    %1720 = vmatpush1.xpose.msra.mxu0 0.0
    %1721 = vmatprep.subr.mxu0 0.0
    %1722 = vmatpush1.xpose.msra.mxu0 0.0
    %1723 = vmatprep.subr.mxu0 0.0
    %1724 = vmatpush1.xpose.msra.mxu0 0.0
    %1725 = vmatprep.subr.mxu0 0.0
    %1726 = vmatpush1.xpose.msra.mxu0 0.0
    %1727 = vmatprep.subr.mxu0 0.0
    %1728 = vmatpush1.xpose.msra.mxu0 0.0
    %1729 = vmatprep.subr.mxu0 0.0
    %1730 = vmatpush1.xpose.msra.mxu0 0.0
    %1731 = vmatprep.subr.mxu0 0.0
    %1732 = vmatpush1.xpose.msra.mxu0 0.0
    %1733 = vmatprep.subr.mxu0 0.0
    %1734 = vmatpush1.xpose.msra.mxu0 0.0
    %1735 = vmatprep.subr.mxu0 0.0
    %1736 = vmatpush1.xpose.msra.mxu0 0.0
    %1737 = vmatprep.subr.mxu0 0.0
    %1738 = vmatpush1.xpose.msra.mxu0 0.0
    %1739 = vmatprep.subr.mxu0 0.0
    %1740 = vmatpush1.xpose.msra.mxu0 0.0
    %1741 = vmatprep.mubr.f32.mxu0 0.0
    %1742 = vmatmul.mubr.f32.gmra.mrb[0].mxu0 %v1675
    %v1743 = vpop.f32.mrb[0].mxu0
    %v1744 = vadd.f32 0.0, %v1743
    %v1745 = vpop.f32.mrb[0].mxu0
    %1746 = vdwg.mxu0
    %v1747 = vmul.f32 %v1744, 0.125
    %v1748 = vlaneseq
    %v1749 = vshrl.u32 %v1748, 7
    %v1750 = vsub.s32 0, %v1749
    %v1751 = vrot.slane %v1508, %v1750
    %v1752 = vadd.f32 %v1747, %v1751
    %v1753 = vsel %vm1600, %v1752, -inf
    %1754 = vmax.xlane.f32.xlu0 %v1753
    %v1755 = vpop.xlane.xlu0 %1754
    %v1756 = vsub.f32 %v1752, %v1755
    %v1757 = vmul.f32 %v1756, 1.442695
    %v1758 = vpow.pop %v1757
    %v1759 = vsel %vm1600, %v1758, 0.0
    %1760 = vadd.xlane.f32.xlu0 %v1759
    %v1761 = vpop.xlane.xlu0 %1760
    %v1762 = vrcp.pop %v1761
    %v1763 = vmul.f32 %v1758, %v1762
    %v1765 = vsel %vm1600, %v1763, 0
    %1767 = vmatprep.subr.mxu0 0.0
    %1768 = vmatpush1.msra.mxu0 %v1413
    %1769 = vmatprep.subr.mxu0 0.0
    %1770 = vmatpush1.msra.mxu0 0.0
    %1771 = vmatprep.subr.mxu0 0.0
    %1772 = vmatpush1.msra.mxu0 0.0
    %1773 = vmatprep.subr.mxu0 0.0
    %1774 = vmatpush1.msra.mxu0 0.0
    %1775 = vmatprep.subr.mxu0 0.0
    %1776 = vmatpush1.msra.mxu0 0.0
    %1777 = vmatprep.subr.mxu0 0.0
    %1778 = vmatpush1.msra.mxu0 0.0
    %1779 = vmatprep.subr.mxu0 0.0
    %1780 = vmatpush1.msra.mxu0 0.0
    %1781 = vmatprep.subr.mxu0 0.0
    %1782 = vmatpush1.msra.mxu0 0.0
    %1783 = vmatprep.subr.mxu0 0.0
    %1784 = vmatpush1.msra.mxu0 0.0
    %1785 = vmatprep.subr.mxu0 0.0
    %1786 = vmatpush1.msra.mxu0 0.0
    %1787 = vmatprep.subr.mxu0 0.0
    %1788 = vmatpush1.msra.mxu0 0.0
    %1789 = vmatprep.subr.mxu0 0.0
    %1790 = vmatpush1.msra.mxu0 0.0
    %1791 = vmatprep.subr.mxu0 0.0
    %1792 = vmatpush1.msra.mxu0 0.0
    %1793 = vmatprep.subr.mxu0 0.0
    %1794 = vmatpush1.msra.mxu0 0.0
    %1795 = vmatprep.subr.mxu0 0.0
    %1796 = vmatpush1.msra.mxu0 0.0
    %1797 = vmatprep.subr.mxu0 0.0
    %1798 = vmatpush1.msra.mxu0 0.0
    %1799 = vmatprep.subr.mxu0 0.0
    %1800 = vmatpush1.msra.mxu0 0.0
    %1801 = vmatprep.subr.mxu0 0.0
    %1802 = vmatpush1.msra.mxu0 0.0
    %1803 = vmatprep.subr.mxu0 0.0
    %1804 = vmatpush1.msra.mxu0 0.0
    %1805 = vmatprep.subr.mxu0 0.0
    %1806 = vmatpush1.msra.mxu0 0.0
    %1807 = vmatprep.subr.mxu0 0.0
    %1808 = vmatpush1.msra.mxu0 0.0
    %1809 = vmatprep.subr.mxu0 0.0
    %1810 = vmatpush1.msra.mxu0 0.0
    %1811 = vmatprep.subr.mxu0 0.0
    %1812 = vmatpush1.msra.mxu0 0.0
    %1813 = vmatprep.subr.mxu0 0.0
    %1814 = vmatpush1.msra.mxu0 0.0
    %1815 = vmatprep.subr.mxu0 0.0
    %1816 = vmatpush1.msra.mxu0 0.0
    %1817 = vmatprep.subr.mxu0 0.0
    %1818 = vmatpush1.msra.mxu0 0.0
    %1819 = vmatprep.subr.mxu0 0.0
    %1820 = vmatpush1.msra.mxu0 0.0
    %1821 = vmatprep.subr.mxu0 0.0
    %1822 = vmatpush1.msra.mxu0 0.0
    %1823 = vmatprep.subr.mxu0 0.0
    %1824 = vmatpush1.msra.mxu0 0.0
    %1825 = vmatprep.subr.mxu0 0.0
    %1826 = vmatpush1.msra.mxu0 0.0
    %1827 = vmatprep.subr.mxu0 0.0
    %1828 = vmatpush1.msra.mxu0 0.0
    %1829 = vmatprep.subr.mxu0 0.0
    %1830 = vmatpush1.msra.mxu0 0.0
    %1831 = vmatprep.mubr.f32.mxu0 0.0
    %1832 = vmatmul.mubr.f32.gmra.mrb[0].mxu0 %v1765
    %v1833 = vpop.f32.mrb[0].mxu0
    %v1834 = vadd.f32 0.0, %v1833
    %v1835 = vpop.f32.mrb[0].mxu0
    %1836 = vdwg.mxu0
    %v1837 = vld [vmem:[#allocation12] sm:$0xff]
    %v1838 = vld [vmem:[#allocation12 + $0x8] sm:$0xff]
    %v1839 = vld [vmem:[#allocation12 + $0x10] sm:$0xff]
    %v1840 = vld [vmem:[#allocation12 + $0x18] sm:$0xff]
    %v1841 = vld [vmem:[#allocation12 + $0x20] sm:$0xff]
    %v1842 = vld [vmem:[#allocation12 + $0x28] sm:$0xff]
    %v1843 = vld [vmem:[#allocation12 + $0x30] sm:$0xff]
    %v1844 = vld [vmem:[#allocation12 + $0x38] sm:$0xff]
    %v1846 = vsel %vm349, %v1671, 0
    %1848 = vmatprep.subr.mxu0 0.0
    %1849 = vmatpush1.msra.mxu0 %v1837
    %1850 = vmatprep.subr.mxu0 0.0
    %1851 = vmatpush1.msra.mxu0 %v1838
    %1852 = vmatprep.subr.mxu0 0.0
    %1853 = vmatpush1.msra.mxu0 %v1839
    %1854 = vmatprep.subr.mxu0 0.0
    %1855 = vmatpush1.msra.mxu0 %v1840
    %1856 = vmatprep.subr.mxu0 0.0
    %1857 = vmatpush1.msra.mxu0 %v1841
    %1858 = vmatprep.subr.mxu0 0.0
    %1859 = vmatpush1.msra.mxu0 %v1842
    %1860 = vmatprep.subr.mxu0 0.0
    %1861 = vmatpush1.msra.mxu0 %v1843
    %1862 = vmatprep.subr.mxu0 0.0
    %1863 = vmatpush1.msra.mxu0 %v1844
    %1864 = vmatprep.subr.mxu0 0.0
    %1865 = vmatpush1.msra.mxu0 0.0
    %1866 = vmatprep.subr.mxu0 0.0
    %1867 = vmatpush1.msra.mxu0 0.0
    %1868 = vmatprep.subr.mxu0 0.0
    %1869 = vmatpush1.msra.mxu0 0.0
    %1870 = vmatprep.subr.mxu0 0.0
    %1871 = vmatpush1.msra.mxu0 0.0
    %1872 = vmatprep.subr.mxu0 0.0
    %1873 = vmatpush1.msra.mxu0 0.0
    %1874 = vmatprep.subr.mxu0 0.0
    %1875 = vmatpush1.msra.mxu0 0.0
    %1876 = vmatprep.subr.mxu0 0.0
    %1877 = vmatpush1.msra.mxu0 0.0
    %1878 = vmatprep.subr.mxu0 0.0
    %1879 = vmatpush1.msra.mxu0 0.0
    %1880 = vmatprep.subr.mxu0 0.0
    %1881 = vmatpush1.msra.mxu0 0.0
    %1882 = vmatprep.subr.mxu0 0.0
    %1883 = vmatpush1.msra.mxu0 0.0
    %1884 = vmatprep.subr.mxu0 0.0
    %1885 = vmatpush1.msra.mxu0 0.0
    %1886 = vmatprep.subr.mxu0 0.0
    %1887 = vmatpush1.msra.mxu0 0.0
    %1888 = vmatprep.subr.mxu0 0.0
    %1889 = vmatpush1.msra.mxu0 0.0
    %1890 = vmatprep.subr.mxu0 0.0
    %1891 = vmatpush1.msra.mxu0 0.0
    %1892 = vmatprep.subr.mxu0 0.0
    %1893 = vmatpush1.msra.mxu0 0.0
    %1894 = vmatprep.subr.mxu0 0.0
    %1895 = vmatpush1.msra.mxu0 0.0
    %1896 = vmatprep.subr.mxu0 0.0
    %1897 = vmatpush1.msra.mxu0 0.0
    %1898 = vmatprep.subr.mxu0 0.0
    %1899 = vmatpush1.msra.mxu0 0.0
    %1900 = vmatprep.subr.mxu0 0.0
    %1901 = vmatpush1.msra.mxu0 0.0
    %1902 = vmatprep.subr.mxu0 0.0
    %1903 = vmatpush1.msra.mxu0 0.0
    %1904 = vmatprep.subr.mxu0 0.0
    %1905 = vmatpush1.msra.mxu0 0.0
    %1906 = vmatprep.subr.mxu0 0.0
    %1907 = vmatpush1.msra.mxu0 0.0
    %1908 = vmatprep.subr.mxu0 0.0
    %1909 = vmatpush1.msra.mxu0 0.0
    %1910 = vmatprep.subr.mxu0 0.0
    %1911 = vmatpush1.msra.mxu0 0.0
    %1912 = vmatprep.mubr.f32.mxu0 0.0
    %1913 = vmatmul.mubr.f32.gmra.mrb[0].mxu0 %v1846
    %v1914 = vpop.f32.mrb[0].mxu0
    %v1915 = vadd.f32 0.0, %v1914
    %v1916 = vpop.f32.mrb[0].mxu0
    %1917 = vdwg.mxu0
    %v1918 = vld [vmem:[#allocation11] sm:$0xff]
    %v1919 = vld [vmem:[#allocation11 + $0x8] sm:$0xff]
    %v1920 = vld [vmem:[#allocation11 + $0x10] sm:$0xff]
    %v1921 = vld [vmem:[#allocation11 + $0x18] sm:$0xff]
    %v1922 = vld [vmem:[#allocation11 + $0x20] sm:$0xff]
    %v1923 = vld [vmem:[#allocation11 + $0x28] sm:$0xff]
    %v1924 = vld [vmem:[#allocation11 + $0x30] sm:$0xff]
    %v1925 = vld [vmem:[#allocation11 + $0x38] sm:$0xff]
    %v1926 = vlaneseq
    %v1927 = vshrl.u32 %v1926, 7
    %v1928 = vsub.s32 0, %v1927
    %v1929 = vrot.slane %v1915, %v1928
    %v1931 = vsel %vm349, %v1834, 0
    %1933 = vmatprep.subr.mxu0 0.0
    %1934 = vmatpush1.msra.mxu0 %v1918
    %1935 = vmatprep.subr.mxu0 0.0
    %1936 = vmatpush1.msra.mxu0 %v1919
    %1937 = vmatprep.subr.mxu0 0.0
    %1938 = vmatpush1.msra.mxu0 %v1920
    %1939 = vmatprep.subr.mxu0 0.0
    %1940 = vmatpush1.msra.mxu0 %v1921
    %1941 = vmatprep.subr.mxu0 0.0
    %1942 = vmatpush1.msra.mxu0 %v1922
    %1943 = vmatprep.subr.mxu0 0.0
    %1944 = vmatpush1.msra.mxu0 %v1923
    %1945 = vmatprep.subr.mxu0 0.0
    %1946 = vmatpush1.msra.mxu0 %v1924
    %1947 = vmatprep.subr.mxu0 0.0
    %1948 = vmatpush1.msra.mxu0 %v1925
    %1949 = vmatprep.subr.mxu0 0.0
    %1950 = vmatpush1.msra.mxu0 0.0
    %1951 = vmatprep.subr.mxu0 0.0
    %1952 = vmatpush1.msra.mxu0 0.0
    %1953 = vmatprep.subr.mxu0 0.0
    %1954 = vmatpush1.msra.mxu0 0.0
    %1955 = vmatprep.subr.mxu0 0.0
    %1956 = vmatpush1.msra.mxu0 0.0
    %1957 = vmatprep.subr.mxu0 0.0
    %1958 = vmatpush1.msra.mxu0 0.0
    %1959 = vmatprep.subr.mxu0 0.0
    %1960 = vmatpush1.msra.mxu0 0.0
    %1961 = vmatprep.subr.mxu0 0.0
    %1962 = vmatpush1.msra.mxu0 0.0
    %1963 = vmatprep.subr.mxu0 0.0
    %1964 = vmatpush1.msra.mxu0 0.0
    %1965 = vmatprep.subr.mxu0 0.0
    %1966 = vmatpush1.msra.mxu0 0.0
    %1967 = vmatprep.subr.mxu0 0.0
    %1968 = vmatpush1.msra.mxu0 0.0
    %1969 = vmatprep.subr.mxu0 0.0
    %1970 = vmatpush1.msra.mxu0 0.0
    %1971 = vmatprep.subr.mxu0 0.0
    %1972 = vmatpush1.msra.mxu0 0.0
    %1973 = vmatprep.subr.mxu0 0.0
    %1974 = vmatpush1.msra.mxu0 0.0
    %1975 = vmatprep.subr.mxu0 0.0
    %1976 = vmatpush1.msra.mxu0 0.0
    %1977 = vmatprep.subr.mxu0 0.0
    %1978 = vmatpush1.msra.mxu0 0.0
    %1979 = vmatprep.subr.mxu0 0.0
    %1980 = vmatpush1.msra.mxu0 0.0
    %1981 = vmatprep.subr.mxu0 0.0
    %1982 = vmatpush1.msra.mxu0 0.0
    %1983 = vmatprep.subr.mxu0 0.0
    %1984 = vmatpush1.msra.mxu0 0.0
    %1985 = vmatprep.subr.mxu0 0.0
    %1986 = vmatpush1.msra.mxu0 0.0
    %1987 = vmatprep.subr.mxu0 0.0
    %1988 = vmatpush1.msra.mxu0 0.0
    %1989 = vmatprep.subr.mxu0 0.0
    %1990 = vmatpush1.msra.mxu0 0.0
    %1991 = vmatprep.subr.mxu0 0.0
    %1992 = vmatpush1.msra.mxu0 0.0
    %1993 = vmatprep.subr.mxu0 0.0
    %1994 = vmatpush1.msra.mxu0 0.0
    %1995 = vmatprep.subr.mxu0 0.0
    %1996 = vmatpush1.msra.mxu0 0.0
    %1997 = vmatprep.mubr.f32.mxu0 0.0
    %1998 = vmatmul.mubr.f32.gmra.mrb[0].mxu0 %v1931
    %v1999 = vpop.f32.mrb[0].mxu0
    %v2000 = vadd.f32 %v1929, %v1999
    %v2001 = vpop.f32.mrb[0].mxu0
    %2002 = vdwg.mxu0
    %v2003 = vmax.f32 %v2000, 0.0
    %v2004 = vld [vmem:[#allocation15] sm:$0xff]
    %v2005 = vld [vmem:[#allocation15 + $0x8] sm:$0xff]
    %v2006 = vld [vmem:[#allocation15 + $0x10] sm:$0xff]
    %v2007 = vld [vmem:[#allocation15 + $0x18] sm:$0xff]
    %v2008 = vld [vmem:[#allocation15 + $0x20] sm:$0xff]
    %v2009 = vld [vmem:[#allocation15 + $0x28] sm:$0xff]
    %v2010 = vld [vmem:[#allocation15 + $0x30] sm:$0xff]
    %v2011 = vld [vmem:[#allocation15 + $0x38] sm:$0xff]
    %v2012 = vld [vmem:[#allocation15 + $0x40] sm:$0xff]
    %v2013 = vld [vmem:[#allocation15 + $0x48] sm:$0xff]
    %v2014 = vld [vmem:[#allocation15 + $0x50] sm:$0xff]
    %v2015 = vld [vmem:[#allocation15 + $0x58] sm:$0xff]
    %v2016 = vld [vmem:[#allocation15 + $0x60] sm:$0xff]
    %v2017 = vld [vmem:[#allocation15 + $0x68] sm:$0xff]
    %v2018 = vld [vmem:[#allocation15 + $0x70] sm:$0xff]
    %v2019 = vld [vmem:[#allocation15 + $0x78] sm:$0xff]
    %v2020 = vld [vmem:[%s13] sm:$0x3]
    %v2022 = vlaneseq
    %v2023 = vshrl.u32 %v2022, 7
    %v2024 = vsub.s32 0, %v2023
    %v2025 = vrot.slane %v2020, %v2024
    %v2026 = vlaneseq
    %v2027 = vshrl.u32 %v2026, 7
    %v2028 = vsub.s32 1, %v2027
    %v2029 = vrot.slane %v2020, %v2028
    %v2033 = vsel %vm349, %v2003, 0
    %2035 = vmatprep.subr.mxu0 %v2005
    %2036 = vmatpush1.msra.mxu0 %v2004
    %2037 = vmatprep.subr.mxu0 %v2007
    %2038 = vmatpush1.msra.mxu0 %v2006
    %2039 = vmatprep.subr.mxu0 %v2009
    %2040 = vmatpush1.msra.mxu0 %v2008
    %2041 = vmatprep.subr.mxu0 %v2011
    %2042 = vmatpush1.msra.mxu0 %v2010
    %2043 = vmatprep.subr.mxu0 %v2013
    %2044 = vmatpush1.msra.mxu0 %v2012
    %2045 = vmatprep.subr.mxu0 %v2015
    %2046 = vmatpush1.msra.mxu0 %v2014
    %2047 = vmatprep.subr.mxu0 %v2017
    %2048 = vmatpush1.msra.mxu0 %v2016
    %2049 = vmatprep.subr.mxu0 %v2019
    %2050 = vmatpush1.msra.mxu0 %v2018
    %2051 = vmatprep.subr.mxu0 0.0
    %2052 = vmatpush1.msra.mxu0 0.0
    %2053 = vmatprep.subr.mxu0 0.0
    %2054 = vmatpush1.msra.mxu0 0.0
    %2055 = vmatprep.subr.mxu0 0.0
    %2056 = vmatpush1.msra.mxu0 0.0
    %2057 = vmatprep.subr.mxu0 0.0
    %2058 = vmatpush1.msra.mxu0 0.0
    %2059 = vmatprep.subr.mxu0 0.0
    %2060 = vmatpush1.msra.mxu0 0.0
    %2061 = vmatprep.subr.mxu0 0.0
    %2062 = vmatpush1.msra.mxu0 0.0
    %2063 = vmatprep.subr.mxu0 0.0
    %2064 = vmatpush1.msra.mxu0 0.0
    %2065 = vmatprep.subr.mxu0 0.0
    %2066 = vmatpush1.msra.mxu0 0.0
    %2067 = vmatprep.subr.mxu0 0.0
    %2068 = vmatpush1.msra.mxu0 0.0
    %2069 = vmatprep.subr.mxu0 0.0
    %2070 = vmatpush1.msra.mxu0 0.0
    %2071 = vmatprep.subr.mxu0 0.0
    %2072 = vmatpush1.msra.mxu0 0.0
    %2073 = vmatprep.subr.mxu0 0.0
    %2074 = vmatpush1.msra.mxu0 0.0
    %2075 = vmatprep.subr.mxu0 0.0
    %2076 = vmatpush1.msra.mxu0 0.0
    %2077 = vmatprep.subr.mxu0 0.0
    %2078 = vmatpush1.msra.mxu0 0.0
    %2079 = vmatprep.subr.mxu0 0.0
    %2080 = vmatpush1.msra.mxu0 0.0
    %2081 = vmatprep.subr.mxu0 0.0
    %2082 = vmatpush1.msra.mxu0 0.0
    %2083 = vmatprep.subr.mxu0 0.0
    %2084 = vmatpush1.msra.mxu0 0.0
    %2085 = vmatprep.subr.mxu0 0.0
    %2086 = vmatpush1.msra.mxu0 0.0
    %2087 = vmatprep.subr.mxu0 0.0
    %2088 = vmatpush1.msra.mxu0 0.0
    %2089 = vmatprep.subr.mxu0 0.0
    %2090 = vmatpush1.msra.mxu0 0.0
    %2091 = vmatprep.subr.mxu0 0.0
    %2092 = vmatpush1.msra.mxu0 0.0
    %2093 = vmatprep.subr.mxu0 0.0
    %2094 = vmatpush1.msra.mxu0 0.0
    %2095 = vmatprep.subr.mxu0 0.0
    %2096 = vmatpush1.msra.mxu0 0.0
    %2097 = vmatprep.subr.mxu0 0.0
    %2098 = vmatpush1.msra.mxu0 0.0
    %2099 = vmatprep.mubr.f32.mxu0 0.0
    %2100 = vmatmul.mubr.f32.gmra.mrb[0].mxu0 %v2033
    %v2101 = vpop.f32.mrb[0].mxu0
    %v2102 = vadd.f32 %v2025, %v2101
    %v2103 = vpop.f32.mrb[0].mxu0
    %v2104 = vadd.f32 %v2029, %v2103
    %2105 = vdwg.mxu0
    %2106 = vst [vmem:[%s16] sm:$0xff] %v2102
    %2107 = vst [vmem:[%s16 + $0x8] sm:$0xff] %v2104
    %v2108 = vld [vmem:[%s3] sm:$0x1]
    %v2110 = vsel %vm1600, %v2108, 0
    %2112 = vmatprep.subr.mxu0 0.0
    %2113 = vmatpush1.msra.mxu0 %v1834
    %2114 = vmatprep.subr.mxu0 0.0
    %2115 = vmatpush1.msra.mxu0 0.0
    %2116 = vmatprep.subr.mxu0 0.0
    %2117 = vmatpush1.msra.mxu0 0.0
    %2118 = vmatprep.subr.mxu0 0.0
    %2119 = vmatpush1.msra.mxu0 0.0
    %2120 = vmatprep.subr.mxu0 0.0
    %2121 = vmatpush1.msra.mxu0 0.0
    %2122 = vmatprep.subr.mxu0 0.0
    %2123 = vmatpush1.msra.mxu0 0.0
    %2124 = vmatprep.subr.mxu0 0.0
    %2125 = vmatpush1.msra.mxu0 0.0
    %2126 = vmatprep.subr.mxu0 0.0
    %2127 = vmatpush1.msra.mxu0 0.0
    %2128 = vmatprep.subr.mxu0 0.0
    %2129 = vmatpush1.msra.mxu0 0.0
    %2130 = vmatprep.subr.mxu0 0.0
    %2131 = vmatpush1.msra.mxu0 0.0
    %2132 = vmatprep.subr.mxu0 0.0
    %2133 = vmatpush1.msra.mxu0 0.0
    %2134 = vmatprep.subr.mxu0 0.0
    %2135 = vmatpush1.msra.mxu0 0.0
    %2136 = vmatprep.subr.mxu0 0.0
    %2137 = vmatpush1.msra.mxu0 0.0
    %2138 = vmatprep.subr.mxu0 0.0
    %2139 = vmatpush1.msra.mxu0 0.0
    %2140 = vmatprep.subr.mxu0 0.0
    %2141 = vmatpush1.msra.mxu0 0.0
    %2142 = vmatprep.subr.mxu0 0.0
    %2143 = vmatpush1.msra.mxu0 0.0
    %2144 = vmatprep.subr.mxu0 0.0
    %2145 = vmatpush1.msra.mxu0 0.0
    %2146 = vmatprep.subr.mxu0 0.0
    %2147 = vmatpush1.msra.mxu0 0.0
    %2148 = vmatprep.subr.mxu0 0.0
    %2149 = vmatpush1.msra.mxu0 0.0
    %2150 = vmatprep.subr.mxu0 0.0
    %2151 = vmatpush1.msra.mxu0 0.0
    %2152 = vmatprep.subr.mxu0 0.0
    %2153 = vmatpush1.msra.mxu0 0.0
    %2154 = vmatprep.subr.mxu0 0.0
    %2155 = vmatpush1.msra.mxu0 0.0
    %2156 = vmatprep.subr.mxu0 0.0
    %2157 = vmatpush1.msra.mxu0 0.0
    %2158 = vmatprep.subr.mxu0 0.0
    %2159 = vmatpush1.msra.mxu0 0.0
    %2160 = vmatprep.subr.mxu0 0.0
    %2161 = vmatpush1.msra.mxu0 0.0
    %2162 = vmatprep.subr.mxu0 0.0
    %2163 = vmatpush1.msra.mxu0 0.0
    %2164 = vmatprep.subr.mxu0 0.0
    %2165 = vmatpush1.msra.mxu0 0.0
    %2166 = vmatprep.subr.mxu0 0.0
    %2167 = vmatpush1.msra.mxu0 0.0
    %2168 = vmatprep.subr.mxu0 0.0
    %2169 = vmatpush1.msra.mxu0 0.0
    %2170 = vmatprep.subr.mxu0 0.0
    %2171 = vmatpush1.msra.mxu0 0.0
    %2172 = vmatprep.subr.mxu0 0.0
    %2173 = vmatpush1.msra.mxu0 0.0
    %2174 = vmatprep.subr.mxu0 0.0
    %2175 = vmatpush1.msra.mxu0 0.0
    %2176 = vmatprep.mubr.f32.mxu0 0.0
    %2177 = vmatmul.mubr.f32.gmra.mrb[0].mxu0 %v2110
    %v2178 = vpop.f32.mrb[0].mxu0
    %v2179 = vadd.f32 0.0, %v2178
    %v2180 = vpop.f32.mrb[0].mxu0
    %2181 = vdwg.mxu0
    %v2182 = vld [vmem:[#allocation14] sm:$0xff]
    %v2183 = vld [vmem:[#allocation14 + $0x8] sm:$0xff]
    %v2184 = vld [vmem:[#allocation14 + $0x10] sm:$0xff]
    %v2185 = vld [vmem:[#allocation14 + $0x18] sm:$0xff]
    %v2186 = vld [vmem:[#allocation14 + $0x20] sm:$0xff]
    %v2187 = vld [vmem:[#allocation14 + $0x28] sm:$0xff]
    %v2188 = vld [vmem:[#allocation14 + $0x30] sm:$0xff]
    %v2189 = vld [vmem:[#allocation14 + $0x38] sm:$0xff]
    %v2191 = vsel %vm349, %v2179, 0
    %2193 = vmatprep.subr.mxu0 0.0
    %2194 = vmatpush1.msra.mxu0 %v2182
    %2195 = vmatprep.subr.mxu0 0.0
    %2196 = vmatpush1.msra.mxu0 %v2183
    %2197 = vmatprep.subr.mxu0 0.0
    %2198 = vmatpush1.msra.mxu0 %v2184
    %2199 = vmatprep.subr.mxu0 0.0
    %2200 = vmatpush1.msra.mxu0 %v2185
    %2201 = vmatprep.subr.mxu0 0.0
    %2202 = vmatpush1.msra.mxu0 %v2186
    %2203 = vmatprep.subr.mxu0 0.0
    %2204 = vmatpush1.msra.mxu0 %v2187
    %2205 = vmatprep.subr.mxu0 0.0
    %2206 = vmatpush1.msra.mxu0 %v2188
    %2207 = vmatprep.subr.mxu0 0.0
    %2208 = vmatpush1.msra.mxu0 %v2189
    %2209 = vmatprep.subr.mxu0 0.0
    %2210 = vmatpush1.msra.mxu0 0.0
    %2211 = vmatprep.subr.mxu0 0.0
    %2212 = vmatpush1.msra.mxu0 0.0
    %2213 = vmatprep.subr.mxu0 0.0
    %2214 = vmatpush1.msra.mxu0 0.0
    %2215 = vmatprep.subr.mxu0 0.0
    %2216 = vmatpush1.msra.mxu0 0.0
    %2217 = vmatprep.subr.mxu0 0.0
    %2218 = vmatpush1.msra.mxu0 0.0
    %2219 = vmatprep.subr.mxu0 0.0
    %2220 = vmatpush1.msra.mxu0 0.0
    %2221 = vmatprep.subr.mxu0 0.0
    %2222 = vmatpush1.msra.mxu0 0.0
    %2223 = vmatprep.subr.mxu0 0.0
    %2224 = vmatpush1.msra.mxu0 0.0
    %2225 = vmatprep.subr.mxu0 0.0
    %2226 = vmatpush1.msra.mxu0 0.0
    %2227 = vmatprep.subr.mxu0 0.0
    %2228 = vmatpush1.msra.mxu0 0.0
    %2229 = vmatprep.subr.mxu0 0.0
    %2230 = vmatpush1.msra.mxu0 0.0
    %2231 = vmatprep.subr.mxu0 0.0
    %2232 = vmatpush1.msra.mxu0 0.0
    %2233 = vmatprep.subr.mxu0 0.0
    %2234 = vmatpush1.msra.mxu0 0.0
    %2235 = vmatprep.subr.mxu0 0.0
    %2236 = vmatpush1.msra.mxu0 0.0
    %2237 = vmatprep.subr.mxu0 0.0
    %2238 = vmatpush1.msra.mxu0 0.0
    %2239 = vmatprep.subr.mxu0 0.0
    %2240 = vmatpush1.msra.mxu0 0.0
    %2241 = vmatprep.subr.mxu0 0.0
    %2242 = vmatpush1.msra.mxu0 0.0
    %2243 = vmatprep.subr.mxu0 0.0
    %2244 = vmatpush1.msra.mxu0 0.0
    %2245 = vmatprep.subr.mxu0 0.0
    %2246 = vmatpush1.msra.mxu0 0.0
    %2247 = vmatprep.subr.mxu0 0.0
    %2248 = vmatpush1.msra.mxu0 0.0
    %2249 = vmatprep.subr.mxu0 0.0
    %2250 = vmatpush1.msra.mxu0 0.0
    %2251 = vmatprep.subr.mxu0 0.0
    %2252 = vmatpush1.msra.mxu0 0.0
    %2253 = vmatprep.subr.mxu0 0.0
    %2254 = vmatpush1.msra.mxu0 0.0
    %2255 = vmatprep.subr.mxu0 0.0
    %2256 = vmatpush1.msra.mxu0 0.0
    %2257 = vmatprep.mubr.f32.mxu0 0.0
    %2258 = vmatmul.mubr.f32.gmra.mrb[0].mxu0 %v2191
    %v2259 = vpop.f32.mrb[0].mxu0
    %v2260 = vadd.f32 0.0, %v2259
    %v2261 = vpop.f32.mrb[0].mxu0
    %2262 = vdwg.mxu0
    %2264 = vrot.lane.b32.xlu0 %v2260, 64
    %v2265 = vpop.permute.xlu0 %2264
    %v2267 = vadd.f32 %v1915, %v2265
    %v2268 = vmax.f32 %v2267, 0.0
    %v2269 = vld [vmem:[#allocation17] sm:$0xff]
    %v2270 = vld [vmem:[#allocation17 + $0x8] sm:$0xff]
    %v2271 = vld [vmem:[#allocation17 + $0x10] sm:$0xff]
    %v2272 = vld [vmem:[#allocation17 + $0x18] sm:$0xff]
    %v2273 = vld [vmem:[#allocation17 + $0x20] sm:$0xff]
    %v2274 = vld [vmem:[#allocation17 + $0x28] sm:$0xff]
    %v2275 = vld [vmem:[#allocation17 + $0x30] sm:$0xff]
    %v2276 = vld [vmem:[#allocation17 + $0x38] sm:$0xff]
    %v2277 = vld [vmem:[%s15] sm:$0x1]
    %2279 = vrot.lane.b32.xlu0 %v2268, 64
    %v2280 = vpop.permute.xlu0 %2279
    %v2281 = vsel %vm349, %v2280, 0
    %2283 = vmatprep.subr.mxu0 0.0
    %2284 = vmatpush1.msra.mxu0 %v2269
    %2285 = vmatprep.subr.mxu0 0.0
    %2286 = vmatpush1.msra.mxu0 %v2270
    %2287 = vmatprep.subr.mxu0 0.0
    %2288 = vmatpush1.msra.mxu0 %v2271
    %2289 = vmatprep.subr.mxu0 0.0
    %2290 = vmatpush1.msra.mxu0 %v2272
    %2291 = vmatprep.subr.mxu0 0.0
    %2292 = vmatpush1.msra.mxu0 %v2273
    %2293 = vmatprep.subr.mxu0 0.0
    %2294 = vmatpush1.msra.mxu0 %v2274
    %2295 = vmatprep.subr.mxu0 0.0
    %2296 = vmatpush1.msra.mxu0 %v2275
    %2297 = vmatprep.subr.mxu0 0.0
    %2298 = vmatpush1.msra.mxu0 %v2276
    %2299 = vmatprep.subr.mxu0 0.0
    %2300 = vmatpush1.msra.mxu0 0.0
    %2301 = vmatprep.subr.mxu0 0.0
    %2302 = vmatpush1.msra.mxu0 0.0
    %2303 = vmatprep.subr.mxu0 0.0
    %2304 = vmatpush1.msra.mxu0 0.0
    %2305 = vmatprep.subr.mxu0 0.0
    %2306 = vmatpush1.msra.mxu0 0.0
    %2307 = vmatprep.subr.mxu0 0.0
    %2308 = vmatpush1.msra.mxu0 0.0
    %2309 = vmatprep.subr.mxu0 0.0
    %2310 = vmatpush1.msra.mxu0 0.0
    %2311 = vmatprep.subr.mxu0 0.0
    %2312 = vmatpush1.msra.mxu0 0.0
    %2313 = vmatprep.subr.mxu0 0.0
    %2314 = vmatpush1.msra.mxu0 0.0
    %2315 = vmatprep.subr.mxu0 0.0
    %2316 = vmatpush1.msra.mxu0 0.0
    %2317 = vmatprep.subr.mxu0 0.0
    %2318 = vmatpush1.msra.mxu0 0.0
    %2319 = vmatprep.subr.mxu0 0.0
    %2320 = vmatpush1.msra.mxu0 0.0
    %2321 = vmatprep.subr.mxu0 0.0
    %2322 = vmatpush1.msra.mxu0 0.0
    %2323 = vmatprep.subr.mxu0 0.0
    %2324 = vmatpush1.msra.mxu0 0.0
    %2325 = vmatprep.subr.mxu0 0.0
    %2326 = vmatpush1.msra.mxu0 0.0
    %2327 = vmatprep.subr.mxu0 0.0
    %2328 = vmatpush1.msra.mxu0 0.0
    %2329 = vmatprep.subr.mxu0 0.0
    %2330 = vmatpush1.msra.mxu0 0.0
    %2331 = vmatprep.subr.mxu0 0.0
    %2332 = vmatpush1.msra.mxu0 0.0
    %2333 = vmatprep.subr.mxu0 0.0
    %2334 = vmatpush1.msra.mxu0 0.0
    %2335 = vmatprep.subr.mxu0 0.0
    %2336 = vmatpush1.msra.mxu0 0.0
    %2337 = vmatprep.subr.mxu0 0.0
    %2338 = vmatpush1.msra.mxu0 0.0
    %2339 = vmatprep.subr.mxu0 0.0
    %2340 = vmatpush1.msra.mxu0 0.0
    %2341 = vmatprep.subr.mxu0 0.0
    %2342 = vmatpush1.msra.mxu0 0.0
    %2343 = vmatprep.subr.mxu0 0.0
    %2344 = vmatpush1.msra.mxu0 0.0
    %2345 = vmatprep.subr.mxu0 0.0
    %2346 = vmatpush1.msra.mxu0 0.0
    %2347 = vmatprep.mubr.f32.mxu0 0.0
    %2348 = vmatmul.mubr.f32.gmra.mrb[0].mxu0 %v2281
    %v2349 = vpop.f32.mrb[0].mxu0
    %v2350 = vadd.f32 %v2277, %v2349
    %v2351 = vpop.f32.mrb[0].mxu0
    %2352 = vdwg.mxu0
    %2353 = vst [vmem:[#allocation18] sm:$0x1] %v2350
    %v2354 = vld [vmem:[%s2 + $0x1] sm:$0x1]
    %v2355 = vsub.f32 %v2354, 1.0
    %v2356 = vmul.f32 %v2355, 1e+30
    %v2357 = vld [vmem:[#allocation9] sm:$0x1]
    %2359 = vrot.lane.b32.xlu0 %v1505, 64
    %v2360 = vpop.permute.xlu0 %2359
    %v2362 = vsel %vm349, %v2357, 0
    %v2364 = vsel %vm349, %v2360, 0
    %2366 = vmatprep.subr.mxu0 0.0
    %2367 = vmatpush1.xpose.msra.mxu0 %v2364
    %2368 = vmatprep.subr.mxu0 0.0
    %2369 = vmatpush1.xpose.msra.mxu0 0.0
    %2370 = vmatprep.subr.mxu0 0.0
    %2371 = vmatpush1.xpose.msra.mxu0 0.0
    %2372 = vmatprep.subr.mxu0 0.0
    %2373 = vmatpush1.xpose.msra.mxu0 0.0
    %2374 = vmatprep.subr.mxu0 0.0
    %2375 = vmatpush1.xpose.msra.mxu0 0.0
    %2376 = vmatprep.subr.mxu0 0.0
    %2377 = vmatpush1.xpose.msra.mxu0 0.0
    %2378 = vmatprep.subr.mxu0 0.0
    %2379 = vmatpush1.xpose.msra.mxu0 0.0
    %2380 = vmatprep.subr.mxu0 0.0
    %2381 = vmatpush1.xpose.msra.mxu0 0.0
    %2382 = vmatprep.subr.mxu0 0.0
    %2383 = vmatpush1.xpose.msra.mxu0 0.0
    %2384 = vmatprep.subr.mxu0 0.0
    %2385 = vmatpush1.xpose.msra.mxu0 0.0
    %2386 = vmatprep.subr.mxu0 0.0
    %2387 = vmatpush1.xpose.msra.mxu0 0.0
    %2388 = vmatprep.subr.mxu0 0.0
    %2389 = vmatpush1.xpose.msra.mxu0 0.0
    %2390 = vmatprep.subr.mxu0 0.0
    %2391 = vmatpush1.xpose.msra.mxu0 0.0
    %2392 = vmatprep.subr.mxu0 0.0
    %2393 = vmatpush1.xpose.msra.mxu0 0.0
    %2394 = vmatprep.subr.mxu0 0.0
    %2395 = vmatpush1.xpose.msra.mxu0 0.0
    %2396 = vmatprep.subr.mxu0 0.0
    %2397 = vmatpush1.xpose.msra.mxu0 0.0
    %2398 = vmatprep.subr.mxu0 0.0
    %2399 = vmatpush1.xpose.msra.mxu0 0.0
    %2400 = vmatprep.subr.mxu0 0.0
    %2401 = vmatpush1.xpose.msra.mxu0 0.0
    %2402 = vmatprep.subr.mxu0 0.0
    %2403 = vmatpush1.xpose.msra.mxu0 0.0
    %2404 = vmatprep.subr.mxu0 0.0
    %2405 = vmatpush1.xpose.msra.mxu0 0.0
    %2406 = vmatprep.subr.mxu0 0.0
    %2407 = vmatpush1.xpose.msra.mxu0 0.0
    %2408 = vmatprep.subr.mxu0 0.0
    %2409 = vmatpush1.xpose.msra.mxu0 0.0
    %2410 = vmatprep.subr.mxu0 0.0
    %2411 = vmatpush1.xpose.msra.mxu0 0.0
    %2412 = vmatprep.subr.mxu0 0.0
    %2413 = vmatpush1.xpose.msra.mxu0 0.0
    %2414 = vmatprep.subr.mxu0 0.0
    %2415 = vmatpush1.xpose.msra.mxu0 0.0
    %2416 = vmatprep.subr.mxu0 0.0
    %2417 = vmatpush1.xpose.msra.mxu0 0.0
    %2418 = vmatprep.subr.mxu0 0.0
    %2419 = vmatpush1.xpose.msra.mxu0 0.0
    %2420 = vmatprep.subr.mxu0 0.0
    %2421 = vmatpush1.xpose.msra.mxu0 0.0
    %2422 = vmatprep.subr.mxu0 0.0
    %2423 = vmatpush1.xpose.msra.mxu0 0.0
    %2424 = vmatprep.subr.mxu0 0.0
    %2425 = vmatpush1.xpose.msra.mxu0 0.0
    %2426 = vmatprep.subr.mxu0 0.0
    %2427 = vmatpush1.xpose.msra.mxu0 0.0
    %2428 = vmatprep.subr.mxu0 0.0
    %2429 = vmatpush1.xpose.msra.mxu0 0.0
    %2430 = vmatprep.mubr.f32.mxu0 0.0
    %2431 = vmatmul.mubr.f32.gmra.mrb[0].mxu0 %v2362
    %v2432 = vpop.f32.mrb[0].mxu0
    %v2433 = vadd.f32 %v2356, %v2432
    %v2434 = vpop.f32.mrb[0].mxu0
    %2435 = vdwg.mxu0
    %v2436 = vsel %vm1588, %v2433, -inf
    %2437 = vmax.xlane.f32.xlu0 %v2436
    %v2438 = vpop.xlane.xlu0 %2437
    %v2439 = vsub.f32 %v2433, %v2438
    %v2440 = vmul.f32 %v2439, 1.442695
    %v2441 = vpow.pop %v2440
    %v2442 = vsel %vm1588, %v2441, 0.0
    %2443 = vadd.xlane.f32.xlu0 %v2442
    %v2444 = vpop.xlane.xlu0 %2443
    %v2445 = vrcp.pop %v2444
    %v2446 = vmul.f32 %v2441, %v2445
    %v2448 = vsel %vm1600, %v2446, 0
    %2450 = vmatprep.subr.mxu0 0.0
    %2451 = vmatpush1.msra.mxu0 %v1414
    %2452 = vmatprep.subr.mxu0 0.0
    %2453 = vmatpush1.msra.mxu0 0.0
    %2454 = vmatprep.subr.mxu0 0.0
    %2455 = vmatpush1.msra.mxu0 0.0
    %2456 = vmatprep.subr.mxu0 0.0
    %2457 = vmatpush1.msra.mxu0 0.0
    %2458 = vmatprep.subr.mxu0 0.0
    %2459 = vmatpush1.msra.mxu0 0.0
    %2460 = vmatprep.subr.mxu0 0.0
    %2461 = vmatpush1.msra.mxu0 0.0
    %2462 = vmatprep.subr.mxu0 0.0
    %2463 = vmatpush1.msra.mxu0 0.0
    %2464 = vmatprep.subr.mxu0 0.0
    %2465 = vmatpush1.msra.mxu0 0.0
    %2466 = vmatprep.subr.mxu0 0.0
    %2467 = vmatpush1.msra.mxu0 0.0
    %2468 = vmatprep.subr.mxu0 0.0
    %2469 = vmatpush1.msra.mxu0 0.0
    %2470 = vmatprep.subr.mxu0 0.0
    %2471 = vmatpush1.msra.mxu0 0.0
    %2472 = vmatprep.subr.mxu0 0.0
    %2473 = vmatpush1.msra.mxu0 0.0
    %2474 = vmatprep.subr.mxu0 0.0
    %2475 = vmatpush1.msra.mxu0 0.0
    %2476 = vmatprep.subr.mxu0 0.0
    %2477 = vmatpush1.msra.mxu0 0.0
    %2478 = vmatprep.subr.mxu0 0.0
    %2479 = vmatpush1.msra.mxu0 0.0
    %2480 = vmatprep.subr.mxu0 0.0
    %2481 = vmatpush1.msra.mxu0 0.0
    %2482 = vmatprep.subr.mxu0 0.0
    %2483 = vmatpush1.msra.mxu0 0.0
    %2484 = vmatprep.subr.mxu0 0.0
    %2485 = vmatpush1.msra.mxu0 0.0
    %2486 = vmatprep.subr.mxu0 0.0
    %2487 = vmatpush1.msra.mxu0 0.0
    %2488 = vmatprep.subr.mxu0 0.0
    %2489 = vmatpush1.msra.mxu0 0.0
    %2490 = vmatprep.subr.mxu0 0.0
    %2491 = vmatpush1.msra.mxu0 0.0
    %2492 = vmatprep.subr.mxu0 0.0
    %2493 = vmatpush1.msra.mxu0 0.0
    %2494 = vmatprep.subr.mxu0 0.0
    %2495 = vmatpush1.msra.mxu0 0.0
    %2496 = vmatprep.subr.mxu0 0.0
    %2497 = vmatpush1.msra.mxu0 0.0
    %2498 = vmatprep.subr.mxu0 0.0
    %2499 = vmatpush1.msra.mxu0 0.0
    %2500 = vmatprep.subr.mxu0 0.0
    %2501 = vmatpush1.msra.mxu0 0.0
    %2502 = vmatprep.subr.mxu0 0.0
    %2503 = vmatpush1.msra.mxu0 0.0
    %2504 = vmatprep.subr.mxu0 0.0
    %2505 = vmatpush1.msra.mxu0 0.0
    %2506 = vmatprep.subr.mxu0 0.0
    %2507 = vmatpush1.msra.mxu0 0.0
    %2508 = vmatprep.subr.mxu0 0.0
    %2509 = vmatpush1.msra.mxu0 0.0
    %2510 = vmatprep.subr.mxu0 0.0
    %2511 = vmatpush1.msra.mxu0 0.0
    %2512 = vmatprep.subr.mxu0 0.0
    %2513 = vmatpush1.msra.mxu0 0.0
    %2514 = vmatprep.mubr.f32.mxu0 0.0
    %2515 = vmatmul.mubr.f32.gmra.mrb[0].mxu0 %v2448
    %v2516 = vpop.f32.mrb[0].mxu0
    %v2517 = vadd.f32 0.0, %v2516
    %v2518 = vpop.f32.mrb[0].mxu0
    %2519 = vdwg.mxu0
    %v2521 = vsel %vm349, %v1501, 0
    %2523 = vmatprep.subr.mxu0 0.0
    %2524 = vmatpush1.xpose.msra.mxu0 %v1427
    %2525 = vmatprep.subr.mxu0 0.0
    %2526 = vmatpush1.xpose.msra.mxu0 0.0
    %2527 = vmatprep.subr.mxu0 0.0
    %2528 = vmatpush1.xpose.msra.mxu0 0.0
    %2529 = vmatprep.subr.mxu0 0.0
    %2530 = vmatpush1.xpose.msra.mxu0 0.0
    %2531 = vmatprep.subr.mxu0 0.0
    %2532 = vmatpush1.xpose.msra.mxu0 0.0
    %2533 = vmatprep.subr.mxu0 0.0
    %2534 = vmatpush1.xpose.msra.mxu0 0.0
    %2535 = vmatprep.subr.mxu0 0.0
    %2536 = vmatpush1.xpose.msra.mxu0 0.0
    %2537 = vmatprep.subr.mxu0 0.0
    %2538 = vmatpush1.xpose.msra.mxu0 0.0
    %2539 = vmatprep.subr.mxu0 0.0
    %2540 = vmatpush1.xpose.msra.mxu0 0.0
    %2541 = vmatprep.subr.mxu0 0.0
    %2542 = vmatpush1.xpose.msra.mxu0 0.0
    %2543 = vmatprep.subr.mxu0 0.0
    %2544 = vmatpush1.xpose.msra.mxu0 0.0
    %2545 = vmatprep.subr.mxu0 0.0
    %2546 = vmatpush1.xpose.msra.mxu0 0.0
    %2547 = vmatprep.subr.mxu0 0.0
    %2548 = vmatpush1.xpose.msra.mxu0 0.0
    %2549 = vmatprep.subr.mxu0 0.0
    %2550 = vmatpush1.xpose.msra.mxu0 0.0
    %2551 = vmatprep.subr.mxu0 0.0
    %2552 = vmatpush1.xpose.msra.mxu0 0.0
    %2553 = vmatprep.subr.mxu0 0.0
    %2554 = vmatpush1.xpose.msra.mxu0 0.0
    %2555 = vmatprep.subr.mxu0 0.0
    %2556 = vmatpush1.xpose.msra.mxu0 0.0
    %2557 = vmatprep.subr.mxu0 0.0
    %2558 = vmatpush1.xpose.msra.mxu0 0.0
    %2559 = vmatprep.subr.mxu0 0.0
    %2560 = vmatpush1.xpose.msra.mxu0 0.0
    %2561 = vmatprep.subr.mxu0 0.0
    %2562 = vmatpush1.xpose.msra.mxu0 0.0
    %2563 = vmatprep.subr.mxu0 0.0
    %2564 = vmatpush1.xpose.msra.mxu0 0.0
    %2565 = vmatprep.subr.mxu0 0.0
    %2566 = vmatpush1.xpose.msra.mxu0 0.0
    %2567 = vmatprep.subr.mxu0 0.0
    %2568 = vmatpush1.xpose.msra.mxu0 0.0
    %2569 = vmatprep.subr.mxu0 0.0
    %2570 = vmatpush1.xpose.msra.mxu0 0.0
    %2571 = vmatprep.subr.mxu0 0.0
    %2572 = vmatpush1.xpose.msra.mxu0 0.0
    %2573 = vmatprep.subr.mxu0 0.0
    %2574 = vmatpush1.xpose.msra.mxu0 0.0
    %2575 = vmatprep.subr.mxu0 0.0
    %2576 = vmatpush1.xpose.msra.mxu0 0.0
    %2577 = vmatprep.subr.mxu0 0.0
    %2578 = vmatpush1.xpose.msra.mxu0 0.0
    %2579 = vmatprep.subr.mxu0 0.0
    %2580 = vmatpush1.xpose.msra.mxu0 0.0
    %2581 = vmatprep.subr.mxu0 0.0
    %2582 = vmatpush1.xpose.msra.mxu0 0.0
    %2583 = vmatprep.subr.mxu0 0.0
    %2584 = vmatpush1.xpose.msra.mxu0 0.0
    %2585 = vmatprep.subr.mxu0 0.0
    %2586 = vmatpush1.xpose.msra.mxu0 0.0
    %2587 = vmatprep.mubr.f32.mxu0 0.0
    %2588 = vmatmul.mubr.f32.gmra.mrb[0].mxu0 %v2521
    %v2589 = vpop.f32.mrb[0].mxu0
    %v2590 = vadd.f32 0.0, %v2589
    %v2591 = vpop.f32.mrb[0].mxu0
    %2592 = vdwg.mxu0
    %v2593 = vmul.f32 %v2590, 0.125
    %v2594 = vlaneseq
    %v2595 = vshrl.u32 %v2594, 7
    %v2596 = vsub.s32 0, %v2595
    %v2597 = vrot.slane %v2356, %v2596
    %v2598 = vadd.f32 %v2593, %v2597
    %v2599 = vsel %vm1600, %v2598, -inf
    %2600 = vmax.xlane.f32.xlu0 %v2599
    %v2601 = vpop.xlane.xlu0 %2600
    %v2602 = vsub.f32 %v2598, %v2601
    %v2603 = vmul.f32 %v2602, 1.442695
    %v2604 = vpow.pop %v2603
    %v2605 = vsel %vm1600, %v2604, 0.0
    %2606 = vadd.xlane.f32.xlu0 %v2605
    %v2607 = vpop.xlane.xlu0 %2606
    %v2608 = vrcp.pop %v2607
    %v2609 = vmul.f32 %v2604, %v2608
    %v2611 = vsel %vm1600, %v2609, 0
    %2613 = vmatprep.subr.mxu0 0.0
    %2614 = vmatpush1.msra.mxu0 %v1414
    %2615 = vmatprep.subr.mxu0 0.0
    %2616 = vmatpush1.msra.mxu0 0.0
    %2617 = vmatprep.subr.mxu0 0.0
    %2618 = vmatpush1.msra.mxu0 0.0
    %2619 = vmatprep.subr.mxu0 0.0
    %2620 = vmatpush1.msra.mxu0 0.0
    %2621 = vmatprep.subr.mxu0 0.0
    %2622 = vmatpush1.msra.mxu0 0.0
    %2623 = vmatprep.subr.mxu0 0.0
    %2624 = vmatpush1.msra.mxu0 0.0
    %2625 = vmatprep.subr.mxu0 0.0
    %2626 = vmatpush1.msra.mxu0 0.0
    %2627 = vmatprep.subr.mxu0 0.0
    %2628 = vmatpush1.msra.mxu0 0.0
    %2629 = vmatprep.subr.mxu0 0.0
    %2630 = vmatpush1.msra.mxu0 0.0
    %2631 = vmatprep.subr.mxu0 0.0
    %2632 = vmatpush1.msra.mxu0 0.0
    %2633 = vmatprep.subr.mxu0 0.0
    %2634 = vmatpush1.msra.mxu0 0.0
    %2635 = vmatprep.subr.mxu0 0.0
    %2636 = vmatpush1.msra.mxu0 0.0
    %2637 = vmatprep.subr.mxu0 0.0
    %2638 = vmatpush1.msra.mxu0 0.0
    %2639 = vmatprep.subr.mxu0 0.0
    %2640 = vmatpush1.msra.mxu0 0.0
    %2641 = vmatprep.subr.mxu0 0.0
    %2642 = vmatpush1.msra.mxu0 0.0
    %2643 = vmatprep.subr.mxu0 0.0
    %2644 = vmatpush1.msra.mxu0 0.0
    %2645 = vmatprep.subr.mxu0 0.0
    %2646 = vmatpush1.msra.mxu0 0.0
    %2647 = vmatprep.subr.mxu0 0.0
    %2648 = vmatpush1.msra.mxu0 0.0
    %2649 = vmatprep.subr.mxu0 0.0
    %2650 = vmatpush1.msra.mxu0 0.0
    %2651 = vmatprep.subr.mxu0 0.0
    %2652 = vmatpush1.msra.mxu0 0.0
    %2653 = vmatprep.subr.mxu0 0.0
    %2654 = vmatpush1.msra.mxu0 0.0
    %2655 = vmatprep.subr.mxu0 0.0
    %2656 = vmatpush1.msra.mxu0 0.0
    %2657 = vmatprep.subr.mxu0 0.0
    %2658 = vmatpush1.msra.mxu0 0.0
    %2659 = vmatprep.subr.mxu0 0.0
    %2660 = vmatpush1.msra.mxu0 0.0
    %2661 = vmatprep.subr.mxu0 0.0
    %2662 = vmatpush1.msra.mxu0 0.0
    %2663 = vmatprep.subr.mxu0 0.0
    %2664 = vmatpush1.msra.mxu0 0.0
    %2665 = vmatprep.subr.mxu0 0.0
    %2666 = vmatpush1.msra.mxu0 0.0
    %2667 = vmatprep.subr.mxu0 0.0
    %2668 = vmatpush1.msra.mxu0 0.0
    %2669 = vmatprep.subr.mxu0 0.0
    %2670 = vmatpush1.msra.mxu0 0.0
    %2671 = vmatprep.subr.mxu0 0.0
    %2672 = vmatpush1.msra.mxu0 0.0
    %2673 = vmatprep.subr.mxu0 0.0
    %2674 = vmatpush1.msra.mxu0 0.0
    %2675 = vmatprep.subr.mxu0 0.0
    %2676 = vmatpush1.msra.mxu0 0.0
    %2677 = vmatprep.mubr.f32.mxu0 0.0
    %2678 = vmatmul.mubr.f32.gmra.mrb[0].mxu0 %v2611
    %v2679 = vpop.f32.mrb[0].mxu0
    %v2680 = vadd.f32 0.0, %v2679
    %v2681 = vpop.f32.mrb[0].mxu0
    %2682 = vdwg.mxu0
    %v2683 = vld [vmem:[#allocation12] sm:$0xff]
    %v2684 = vld [vmem:[#allocation12 + $0x8] sm:$0xff]
    %v2685 = vld [vmem:[#allocation12 + $0x10] sm:$0xff]
    %v2686 = vld [vmem:[#allocation12 + $0x18] sm:$0xff]
    %v2687 = vld [vmem:[#allocation12 + $0x20] sm:$0xff]
    %v2688 = vld [vmem:[#allocation12 + $0x28] sm:$0xff]
    %v2689 = vld [vmem:[#allocation12 + $0x30] sm:$0xff]
    %v2690 = vld [vmem:[#allocation12 + $0x38] sm:$0xff]
    %v2692 = vsel %vm349, %v2517, 0
    %2694 = vmatprep.subr.mxu0 0.0
    %2695 = vmatpush1.msra.mxu0 %v2683
    %2696 = vmatprep.subr.mxu0 0.0
    %2697 = vmatpush1.msra.mxu0 %v2684
    %2698 = vmatprep.subr.mxu0 0.0
    %2699 = vmatpush1.msra.mxu0 %v2685
    %2700 = vmatprep.subr.mxu0 0.0
    %2701 = vmatpush1.msra.mxu0 %v2686
    %2702 = vmatprep.subr.mxu0 0.0
    %2703 = vmatpush1.msra.mxu0 %v2687
    %2704 = vmatprep.subr.mxu0 0.0
    %2705 = vmatpush1.msra.mxu0 %v2688
    %2706 = vmatprep.subr.mxu0 0.0
    %2707 = vmatpush1.msra.mxu0 %v2689
    %2708 = vmatprep.subr.mxu0 0.0
    %2709 = vmatpush1.msra.mxu0 %v2690
    %2710 = vmatprep.subr.mxu0 0.0
    %2711 = vmatpush1.msra.mxu0 0.0
    %2712 = vmatprep.subr.mxu0 0.0
    %2713 = vmatpush1.msra.mxu0 0.0
    %2714 = vmatprep.subr.mxu0 0.0
    %2715 = vmatpush1.msra.mxu0 0.0
    %2716 = vmatprep.subr.mxu0 0.0
    %2717 = vmatpush1.msra.mxu0 0.0
    %2718 = vmatprep.subr.mxu0 0.0
    %2719 = vmatpush1.msra.mxu0 0.0
    %2720 = vmatprep.subr.mxu0 0.0
    %2721 = vmatpush1.msra.mxu0 0.0
    %2722 = vmatprep.subr.mxu0 0.0
    %2723 = vmatpush1.msra.mxu0 0.0
    %2724 = vmatprep.subr.mxu0 0.0
    %2725 = vmatpush1.msra.mxu0 0.0
    %2726 = vmatprep.subr.mxu0 0.0
    %2727 = vmatpush1.msra.mxu0 0.0
    %2728 = vmatprep.subr.mxu0 0.0
    %2729 = vmatpush1.msra.mxu0 0.0
    %2730 = vmatprep.subr.mxu0 0.0
    %2731 = vmatpush1.msra.mxu0 0.0
    %2732 = vmatprep.subr.mxu0 0.0
    %2733 = vmatpush1.msra.mxu0 0.0
    %2734 = vmatprep.subr.mxu0 0.0
    %2735 = vmatpush1.msra.mxu0 0.0
    %2736 = vmatprep.subr.mxu0 0.0
    %2737 = vmatpush1.msra.mxu0 0.0
    %2738 = vmatprep.subr.mxu0 0.0
    %2739 = vmatpush1.msra.mxu0 0.0
    %2740 = vmatprep.subr.mxu0 0.0
    %2741 = vmatpush1.msra.mxu0 0.0
    %2742 = vmatprep.subr.mxu0 0.0
    %2743 = vmatpush1.msra.mxu0 0.0
    %2744 = vmatprep.subr.mxu0 0.0
    %2745 = vmatpush1.msra.mxu0 0.0
    %2746 = vmatprep.subr.mxu0 0.0
    %2747 = vmatpush1.msra.mxu0 0.0
    %2748 = vmatprep.subr.mxu0 0.0
    %2749 = vmatpush1.msra.mxu0 0.0
    %2750 = vmatprep.subr.mxu0 0.0
    %2751 = vmatpush1.msra.mxu0 0.0
    %2752 = vmatprep.subr.mxu0 0.0
    %2753 = vmatpush1.msra.mxu0 0.0
    %2754 = vmatprep.subr.mxu0 0.0
    %2755 = vmatpush1.msra.mxu0 0.0
    %2756 = vmatprep.subr.mxu0 0.0
    %2757 = vmatpush1.msra.mxu0 0.0
    %2758 = vmatprep.mubr.f32.mxu0 0.0
    %2759 = vmatmul.mubr.f32.gmra.mrb[0].mxu0 %v2692
    %v2760 = vpop.f32.mrb[0].mxu0
    %v2761 = vadd.f32 0.0, %v2760
    %v2762 = vpop.f32.mrb[0].mxu0
    %2763 = vdwg.mxu0
    %v2764 = vld [vmem:[#allocation11] sm:$0xff]
    %v2765 = vld [vmem:[#allocation11 + $0x8] sm:$0xff]
    %v2766 = vld [vmem:[#allocation11 + $0x10] sm:$0xff]
    %v2767 = vld [vmem:[#allocation11 + $0x18] sm:$0xff]
    %v2768 = vld [vmem:[#allocation11 + $0x20] sm:$0xff]
    %v2769 = vld [vmem:[#allocation11 + $0x28] sm:$0xff]
    %v2770 = vld [vmem:[#allocation11 + $0x30] sm:$0xff]
    %v2771 = vld [vmem:[#allocation11 + $0x38] sm:$0xff]
    %v2772 = vlaneseq
    %v2773 = vshrl.u32 %v2772, 7
    %v2774 = vsub.s32 0, %v2773
    %v2775 = vrot.slane %v2761, %v2774
    %v2777 = vsel %vm349, %v2680, 0
    %2779 = vmatprep.subr.mxu0 0.0
    %2780 = vmatpush1.msra.mxu0 %v2764
    %2781 = vmatprep.subr.mxu0 0.0
    %2782 = vmatpush1.msra.mxu0 %v2765
    %2783 = vmatprep.subr.mxu0 0.0
    %2784 = vmatpush1.msra.mxu0 %v2766
    %2785 = vmatprep.subr.mxu0 0.0
    %2786 = vmatpush1.msra.mxu0 %v2767
    %2787 = vmatprep.subr.mxu0 0.0
    %2788 = vmatpush1.msra.mxu0 %v2768
    %2789 = vmatprep.subr.mxu0 0.0
    %2790 = vmatpush1.msra.mxu0 %v2769
    %2791 = vmatprep.subr.mxu0 0.0
    %2792 = vmatpush1.msra.mxu0 %v2770
    %2793 = vmatprep.subr.mxu0 0.0
    %2794 = vmatpush1.msra.mxu0 %v2771
    %2795 = vmatprep.subr.mxu0 0.0
    %2796 = vmatpush1.msra.mxu0 0.0
    %2797 = vmatprep.subr.mxu0 0.0
    %2798 = vmatpush1.msra.mxu0 0.0
    %2799 = vmatprep.subr.mxu0 0.0
    %2800 = vmatpush1.msra.mxu0 0.0
    %2801 = vmatprep.subr.mxu0 0.0
    %2802 = vmatpush1.msra.mxu0 0.0
    %2803 = vmatprep.subr.mxu0 0.0
    %2804 = vmatpush1.msra.mxu0 0.0
    %2805 = vmatprep.subr.mxu0 0.0
    %2806 = vmatpush1.msra.mxu0 0.0
    %2807 = vmatprep.subr.mxu0 0.0
    %2808 = vmatpush1.msra.mxu0 0.0
    %2809 = vmatprep.subr.mxu0 0.0
    %2810 = vmatpush1.msra.mxu0 0.0
    %2811 = vmatprep.subr.mxu0 0.0
    %2812 = vmatpush1.msra.mxu0 0.0
    %2813 = vmatprep.subr.mxu0 0.0
    %2814 = vmatpush1.msra.mxu0 0.0
    %2815 = vmatprep.subr.mxu0 0.0
    %2816 = vmatpush1.msra.mxu0 0.0
    %2817 = vmatprep.subr.mxu0 0.0
    %2818 = vmatpush1.msra.mxu0 0.0
    %2819 = vmatprep.subr.mxu0 0.0
    %2820 = vmatpush1.msra.mxu0 0.0
    %2821 = vmatprep.subr.mxu0 0.0
    %2822 = vmatpush1.msra.mxu0 0.0
    %2823 = vmatprep.subr.mxu0 0.0
    %2824 = vmatpush1.msra.mxu0 0.0
    %2825 = vmatprep.subr.mxu0 0.0
    %2826 = vmatpush1.msra.mxu0 0.0
    %2827 = vmatprep.subr.mxu0 0.0
    %2828 = vmatpush1.msra.mxu0 0.0
    %2829 = vmatprep.subr.mxu0 0.0
    %2830 = vmatpush1.msra.mxu0 0.0
    %2831 = vmatprep.subr.mxu0 0.0
    %2832 = vmatpush1.msra.mxu0 0.0
    %2833 = vmatprep.subr.mxu0 0.0
    %2834 = vmatpush1.msra.mxu0 0.0
    %2835 = vmatprep.subr.mxu0 0.0
    %2836 = vmatpush1.msra.mxu0 0.0
    %2837 = vmatprep.subr.mxu0 0.0
    %2838 = vmatpush1.msra.mxu0 0.0
    %2839 = vmatprep.subr.mxu0 0.0
    %2840 = vmatpush1.msra.mxu0 0.0
    %2841 = vmatprep.subr.mxu0 0.0
    %2842 = vmatpush1.msra.mxu0 0.0
    %2843 = vmatprep.mubr.f32.mxu0 0.0
    %2844 = vmatmul.mubr.f32.gmra.mrb[0].mxu0 %v2777
    %v2845 = vpop.f32.mrb[0].mxu0
    %v2846 = vadd.f32 %v2775, %v2845
    %v2847 = vpop.f32.mrb[0].mxu0
    %2848 = vdwg.mxu0
    %v2849 = vmax.f32 %v2846, 0.0
    %v2850 = vld [vmem:[#allocation15] sm:$0xff]
    %v2851 = vld [vmem:[#allocation15 + $0x8] sm:$0xff]
    %v2852 = vld [vmem:[#allocation15 + $0x10] sm:$0xff]
    %v2853 = vld [vmem:[#allocation15 + $0x18] sm:$0xff]
    %v2854 = vld [vmem:[#allocation15 + $0x20] sm:$0xff]
    %v2855 = vld [vmem:[#allocation15 + $0x28] sm:$0xff]
    %v2856 = vld [vmem:[#allocation15 + $0x30] sm:$0xff]
    %v2857 = vld [vmem:[#allocation15 + $0x38] sm:$0xff]
    %v2858 = vld [vmem:[#allocation15 + $0x40] sm:$0xff]
    %v2859 = vld [vmem:[#allocation15 + $0x48] sm:$0xff]
    %v2860 = vld [vmem:[#allocation15 + $0x50] sm:$0xff]
    %v2861 = vld [vmem:[#allocation15 + $0x58] sm:$0xff]
    %v2862 = vld [vmem:[#allocation15 + $0x60] sm:$0xff]
    %v2863 = vld [vmem:[#allocation15 + $0x68] sm:$0xff]
    %v2864 = vld [vmem:[#allocation15 + $0x70] sm:$0xff]
    %v2865 = vld [vmem:[#allocation15 + $0x78] sm:$0xff]
    %v2866 = vld [vmem:[%s13] sm:$0x3]
    %v2868 = vlaneseq
    %v2869 = vshrl.u32 %v2868, 7
    %v2870 = vsub.s32 0, %v2869
    %v2871 = vrot.slane %v2866, %v2870
    %v2872 = vlaneseq
    %v2873 = vshrl.u32 %v2872, 7
    %v2874 = vsub.s32 1, %v2873
    %v2875 = vrot.slane %v2866, %v2874
    %v2879 = vsel %vm349, %v2849, 0
    %2881 = vmatprep.subr.mxu0 %v2851
    %2882 = vmatpush1.msra.mxu0 %v2850
    %2883 = vmatprep.subr.mxu0 %v2853
    %2884 = vmatpush1.msra.mxu0 %v2852
    %2885 = vmatprep.subr.mxu0 %v2855
    %2886 = vmatpush1.msra.mxu0 %v2854
    %2887 = vmatprep.subr.mxu0 %v2857
    %2888 = vmatpush1.msra.mxu0 %v2856
    %2889 = vmatprep.subr.mxu0 %v2859
    %2890 = vmatpush1.msra.mxu0 %v2858
    %2891 = vmatprep.subr.mxu0 %v2861
    %2892 = vmatpush1.msra.mxu0 %v2860
    %2893 = vmatprep.subr.mxu0 %v2863
    %2894 = vmatpush1.msra.mxu0 %v2862
    %2895 = vmatprep.subr.mxu0 %v2865
    %2896 = vmatpush1.msra.mxu0 %v2864
    %2897 = vmatprep.subr.mxu0 0.0
    %2898 = vmatpush1.msra.mxu0 0.0
    %2899 = vmatprep.subr.mxu0 0.0
    %2900 = vmatpush1.msra.mxu0 0.0
    %2901 = vmatprep.subr.mxu0 0.0
    %2902 = vmatpush1.msra.mxu0 0.0
    %2903 = vmatprep.subr.mxu0 0.0
    %2904 = vmatpush1.msra.mxu0 0.0
    %2905 = vmatprep.subr.mxu0 0.0
    %2906 = vmatpush1.msra.mxu0 0.0
    %2907 = vmatprep.subr.mxu0 0.0
    %2908 = vmatpush1.msra.mxu0 0.0
    %2909 = vmatprep.subr.mxu0 0.0
    %2910 = vmatpush1.msra.mxu0 0.0
    %2911 = vmatprep.subr.mxu0 0.0
    %2912 = vmatpush1.msra.mxu0 0.0
    %2913 = vmatprep.subr.mxu0 0.0
    %2914 = vmatpush1.msra.mxu0 0.0
    %2915 = vmatprep.subr.mxu0 0.0
    %2916 = vmatpush1.msra.mxu0 0.0
    %2917 = vmatprep.subr.mxu0 0.0
    %2918 = vmatpush1.msra.mxu0 0.0
    %2919 = vmatprep.subr.mxu0 0.0
    %2920 = vmatpush1.msra.mxu0 0.0
    %2921 = vmatprep.subr.mxu0 0.0
    %2922 = vmatpush1.msra.mxu0 0.0
    %2923 = vmatprep.subr.mxu0 0.0
    %2924 = vmatpush1.msra.mxu0 0.0
    %2925 = vmatprep.subr.mxu0 0.0
    %2926 = vmatpush1.msra.mxu0 0.0
    %2927 = vmatprep.subr.mxu0 0.0
    %2928 = vmatpush1.msra.mxu0 0.0
    %2929 = vmatprep.subr.mxu0 0.0
    %2930 = vmatpush1.msra.mxu0 0.0
    %2931 = vmatprep.subr.mxu0 0.0
    %2932 = vmatpush1.msra.mxu0 0.0
    %2933 = vmatprep.subr.mxu0 0.0
    %2934 = vmatpush1.msra.mxu0 0.0
    %2935 = vmatprep.subr.mxu0 0.0
    %2936 = vmatpush1.msra.mxu0 0.0
    %2937 = vmatprep.subr.mxu0 0.0
    %2938 = vmatpush1.msra.mxu0 0.0
    %2939 = vmatprep.subr.mxu0 0.0
    %2940 = vmatpush1.msra.mxu0 0.0
    %2941 = vmatprep.subr.mxu0 0.0
    %2942 = vmatpush1.msra.mxu0 0.0
    %2943 = vmatprep.subr.mxu0 0.0
    %2944 = vmatpush1.msra.mxu0 0.0
    %2945 = vmatprep.mubr.f32.mxu0 0.0
    %2946 = vmatmul.mubr.f32.gmra.mrb[0].mxu0 %v2879
    %v2947 = vpop.f32.mrb[0].mxu0
    %v2948 = vadd.f32 %v2871, %v2947
    %v2949 = vpop.f32.mrb[0].mxu0
    %v2950 = vadd.f32 %v2875, %v2949
    %2951 = vdwg.mxu0
    %2952 = vst [vmem:[%s16 + $0x10] sm:$0xff] %v2948
    %2953 = vst [vmem:[%s16 + $0x18] sm:$0xff] %v2950
    %v2954 = vld [vmem:[%s3 + $0x1] sm:$0x1]
    %v2956 = vsel %vm1600, %v2954, 0
    %2958 = vmatprep.subr.mxu0 0.0
    %2959 = vmatpush1.msra.mxu0 %v2680
    %2960 = vmatprep.subr.mxu0 0.0
    %2961 = vmatpush1.msra.mxu0 0.0
    %2962 = vmatprep.subr.mxu0 0.0
    %2963 = vmatpush1.msra.mxu0 0.0
    %2964 = vmatprep.subr.mxu0 0.0
    %2965 = vmatpush1.msra.mxu0 0.0
    %2966 = vmatprep.subr.mxu0 0.0
    %2967 = vmatpush1.msra.mxu0 0.0
    %2968 = vmatprep.subr.mxu0 0.0
    %2969 = vmatpush1.msra.mxu0 0.0
    %2970 = vmatprep.subr.mxu0 0.0
    %2971 = vmatpush1.msra.mxu0 0.0
    %2972 = vmatprep.subr.mxu0 0.0
    %2973 = vmatpush1.msra.mxu0 0.0
    %2974 = vmatprep.subr.mxu0 0.0
    %2975 = vmatpush1.msra.mxu0 0.0
    %2976 = vmatprep.subr.mxu0 0.0
    %2977 = vmatpush1.msra.mxu0 0.0
    %2978 = vmatprep.subr.mxu0 0.0
    %2979 = vmatpush1.msra.mxu0 0.0
    %2980 = vmatprep.subr.mxu0 0.0
    %2981 = vmatpush1.msra.mxu0 0.0
    %2982 = vmatprep.subr.mxu0 0.0
    %2983 = vmatpush1.msra.mxu0 0.0
    %2984 = vmatprep.subr.mxu0 0.0
    %2985 = vmatpush1.msra.mxu0 0.0
    %2986 = vmatprep.subr.mxu0 0.0
    %2987 = vmatpush1.msra.mxu0 0.0
    %2988 = vmatprep.subr.mxu0 0.0
    %2989 = vmatpush1.msra.mxu0 0.0
    %2990 = vmatprep.subr.mxu0 0.0
    %2991 = vmatpush1.msra.mxu0 0.0
    %2992 = vmatprep.subr.mxu0 0.0
    %2993 = vmatpush1.msra.mxu0 0.0
    %2994 = vmatprep.subr.mxu0 0.0
    %2995 = vmatpush1.msra.mxu0 0.0
    %2996 = vmatprep.subr.mxu0 0.0
    %2997 = vmatpush1.msra.mxu0 0.0
    %2998 = vmatprep.subr.mxu0 0.0
    %2999 = vmatpush1.msra.mxu0 0.0
    %3000 = vmatprep.subr.mxu0 0.0
    %3001 = vmatpush1.msra.mxu0 0.0
    %3002 = vmatprep.subr.mxu0 0.0
    %3003 = vmatpush1.msra.mxu0 0.0
    %3004 = vmatprep.subr.mxu0 0.0
    %3005 = vmatpush1.msra.mxu0 0.0
    %3006 = vmatprep.subr.mxu0 0.0
    %3007 = vmatpush1.msra.mxu0 0.0
    %3008 = vmatprep.subr.mxu0 0.0
    %3009 = vmatpush1.msra.mxu0 0.0
    %3010 = vmatprep.subr.mxu0 0.0
    %3011 = vmatpush1.msra.mxu0 0.0
    %3012 = vmatprep.subr.mxu0 0.0
    %3013 = vmatpush1.msra.mxu0 0.0
    %3014 = vmatprep.subr.mxu0 0.0
    %3015 = vmatpush1.msra.mxu0 0.0
    %3016 = vmatprep.subr.mxu0 0.0
    %3017 = vmatpush1.msra.mxu0 0.0
    %3018 = vmatprep.subr.mxu0 0.0
    %3019 = vmatpush1.msra.mxu0 0.0
    %3020 = vmatprep.subr.mxu0 0.0
    %3021 = vmatpush1.msra.mxu0 0.0
    %3022 = vmatprep.mubr.f32.mxu0 0.0
    %3023 = vmatmul.mubr.f32.gmra.mrb[0].mxu0 %v2956
    %v3024 = vpop.f32.mrb[0].mxu0
    %v3025 = vadd.f32 0.0, %v3024
    %v3026 = vpop.f32.mrb[0].mxu0
    %3027 = vdwg.mxu0
    %v3028 = vld [vmem:[#allocation14] sm:$0xff]
    %v3029 = vld [vmem:[#allocation14 + $0x8] sm:$0xff]
    %v3030 = vld [vmem:[#allocation14 + $0x10] sm:$0xff]
    %v3031 = vld [vmem:[#allocation14 + $0x18] sm:$0xff]
    %v3032 = vld [vmem:[#allocation14 + $0x20] sm:$0xff]
    %v3033 = vld [vmem:[#allocation14 + $0x28] sm:$0xff]
    %v3034 = vld [vmem:[#allocation14 + $0x30] sm:$0xff]
    %v3035 = vld [vmem:[#allocation14 + $0x38] sm:$0xff]
    %v3037 = vsel %vm349, %v3025, 0
    %3039 = vmatprep.subr.mxu0 0.0
    %3040 = vmatpush1.msra.mxu0 %v3028
    %3041 = vmatprep.subr.mxu0 0.0
    %3042 = vmatpush1.msra.mxu0 %v3029
    %3043 = vmatprep.subr.mxu0 0.0
    %3044 = vmatpush1.msra.mxu0 %v3030
    %3045 = vmatprep.subr.mxu0 0.0
    %3046 = vmatpush1.msra.mxu0 %v3031
    %3047 = vmatprep.subr.mxu0 0.0
    %3048 = vmatpush1.msra.mxu0 %v3032
    %3049 = vmatprep.subr.mxu0 0.0
    %3050 = vmatpush1.msra.mxu0 %v3033
    %3051 = vmatprep.subr.mxu0 0.0
    %3052 = vmatpush1.msra.mxu0 %v3034
    %3053 = vmatprep.subr.mxu0 0.0
    %3054 = vmatpush1.msra.mxu0 %v3035
    %3055 = vmatprep.subr.mxu0 0.0
    %3056 = vmatpush1.msra.mxu0 0.0
    %3057 = vmatprep.subr.mxu0 0.0
    %3058 = vmatpush1.msra.mxu0 0.0
    %3059 = vmatprep.subr.mxu0 0.0
    %3060 = vmatpush1.msra.mxu0 0.0
    %3061 = vmatprep.subr.mxu0 0.0
    %3062 = vmatpush1.msra.mxu0 0.0
    %3063 = vmatprep.subr.mxu0 0.0
    %3064 = vmatpush1.msra.mxu0 0.0
    %3065 = vmatprep.subr.mxu0 0.0
    %3066 = vmatpush1.msra.mxu0 0.0
    %3067 = vmatprep.subr.mxu0 0.0
    %3068 = vmatpush1.msra.mxu0 0.0
    %3069 = vmatprep.subr.mxu0 0.0
    %3070 = vmatpush1.msra.mxu0 0.0
    %3071 = vmatprep.subr.mxu0 0.0
    %3072 = vmatpush1.msra.mxu0 0.0
    %3073 = vmatprep.subr.mxu0 0.0
    %3074 = vmatpush1.msra.mxu0 0.0
    %3075 = vmatprep.subr.mxu0 0.0
    %3076 = vmatpush1.msra.mxu0 0.0
    %3077 = vmatprep.subr.mxu0 0.0
    %3078 = vmatpush1.msra.mxu0 0.0
    %3079 = vmatprep.subr.mxu0 0.0
    %3080 = vmatpush1.msra.mxu0 0.0
    %3081 = vmatprep.subr.mxu0 0.0
    %3082 = vmatpush1.msra.mxu0 0.0
    %3083 = vmatprep.subr.mxu0 0.0
    %3084 = vmatpush1.msra.mxu0 0.0
    %3085 = vmatprep.subr.mxu0 0.0
    %3086 = vmatpush1.msra.mxu0 0.0
    %3087 = vmatprep.subr.mxu0 0.0
    %3088 = vmatpush1.msra.mxu0 0.0
    %3089 = vmatprep.subr.mxu0 0.0
    %3090 = vmatpush1.msra.mxu0 0.0
    %3091 = vmatprep.subr.mxu0 0.0
    %3092 = vmatpush1.msra.mxu0 0.0
    %3093 = vmatprep.subr.mxu0 0.0
    %3094 = vmatpush1.msra.mxu0 0.0
    %3095 = vmatprep.subr.mxu0 0.0
    %3096 = vmatpush1.msra.mxu0 0.0
    %3097 = vmatprep.subr.mxu0 0.0
    %3098 = vmatpush1.msra.mxu0 0.0
    %3099 = vmatprep.subr.mxu0 0.0
    %3100 = vmatpush1.msra.mxu0 0.0
    %3101 = vmatprep.subr.mxu0 0.0
    %3102 = vmatpush1.msra.mxu0 0.0
    %3103 = vmatprep.mubr.f32.mxu0 0.0
    %3104 = vmatmul.mubr.f32.gmra.mrb[0].mxu0 %v3037
    %v3105 = vpop.f32.mrb[0].mxu0
    %v3106 = vadd.f32 0.0, %v3105
    %v3107 = vpop.f32.mrb[0].mxu0
    %3108 = vdwg.mxu0
    %3110 = vrot.lane.b32.xlu0 %v3106, 64
    %v3111 = vpop.permute.xlu0 %3110
    %v3113 = vadd.f32 %v2761, %v3111
    %v3114 = vmax.f32 %v3113, 0.0
    %v3115 = vld [vmem:[#allocation17] sm:$0xff]
    %v3116 = vld [vmem:[#allocation17 + $0x8] sm:$0xff]
    %v3117 = vld [vmem:[#allocation17 + $0x10] sm:$0xff]
    %v3118 = vld [vmem:[#allocation17 + $0x18] sm:$0xff]
    %v3119 = vld [vmem:[#allocation17 + $0x20] sm:$0xff]
    %v3120 = vld [vmem:[#allocation17 + $0x28] sm:$0xff]
    %v3121 = vld [vmem:[#allocation17 + $0x30] sm:$0xff]
    %v3122 = vld [vmem:[#allocation17 + $0x38] sm:$0xff]
    %v3123 = vld [vmem:[%s15] sm:$0x1]
    %3125 = vrot.lane.b32.xlu0 %v3114, 64
    %v3126 = vpop.permute.xlu0 %3125
    %v3127 = vsel %vm349, %v3126, 0
    %3129 = vmatprep.subr.mxu0 0.0
    %3130 = vmatpush1.msra.mxu0 %v3115
    %3131 = vmatprep.subr.mxu0 0.0
    %3132 = vmatpush1.msra.mxu0 %v3116
    %3133 = vmatprep.subr.mxu0 0.0
    %3134 = vmatpush1.msra.mxu0 %v3117
    %3135 = vmatprep.subr.mxu0 0.0
    %3136 = vmatpush1.msra.mxu0 %v3118
    %3137 = vmatprep.subr.mxu0 0.0
    %3138 = vmatpush1.msra.mxu0 %v3119
    %3139 = vmatprep.subr.mxu0 0.0
    %3140 = vmatpush1.msra.mxu0 %v3120
    %3141 = vmatprep.subr.mxu0 0.0
    %3142 = vmatpush1.msra.mxu0 %v3121
    %3143 = vmatprep.subr.mxu0 0.0
    %3144 = vmatpush1.msra.mxu0 %v3122
    %3145 = vmatprep.subr.mxu0 0.0
    %3146 = vmatpush1.msra.mxu0 0.0
    %3147 = vmatprep.subr.mxu0 0.0
    %3148 = vmatpush1.msra.mxu0 0.0
    %3149 = vmatprep.subr.mxu0 0.0
    %3150 = vmatpush1.msra.mxu0 0.0
    %3151 = vmatprep.subr.mxu0 0.0
    %3152 = vmatpush1.msra.mxu0 0.0
    %3153 = vmatprep.subr.mxu0 0.0
    %3154 = vmatpush1.msra.mxu0 0.0
    %3155 = vmatprep.subr.mxu0 0.0
    %3156 = vmatpush1.msra.mxu0 0.0
    %3157 = vmatprep.subr.mxu0 0.0
    %3158 = vmatpush1.msra.mxu0 0.0
    %3159 = vmatprep.subr.mxu0 0.0
    %3160 = vmatpush1.msra.mxu0 0.0
    %3161 = vmatprep.subr.mxu0 0.0
    %3162 = vmatpush1.msra.mxu0 0.0
    %3163 = vmatprep.subr.mxu0 0.0
    %3164 = vmatpush1.msra.mxu0 0.0
    %3165 = vmatprep.subr.mxu0 0.0
    %3166 = vmatpush1.msra.mxu0 0.0
    %3167 = vmatprep.subr.mxu0 0.0
    %3168 = vmatpush1.msra.mxu0 0.0
    %3169 = vmatprep.subr.mxu0 0.0
    %3170 = vmatpush1.msra.mxu0 0.0
    %3171 = vmatprep.subr.mxu0 0.0
    %3172 = vmatpush1.msra.mxu0 0.0
    %3173 = vmatprep.subr.mxu0 0.0
    %3174 = vmatpush1.msra.mxu0 0.0
    %3175 = vmatprep.subr.mxu0 0.0
    %3176 = vmatpush1.msra.mxu0 0.0
    %3177 = vmatprep.subr.mxu0 0.0
    %3178 = vmatpush1.msra.mxu0 0.0
    %3179 = vmatprep.subr.mxu0 0.0
    %3180 = vmatpush1.msra.mxu0 0.0
    %3181 = vmatprep.subr.mxu0 0.0
    %3182 = vmatpush1.msra.mxu0 0.0
    %3183 = vmatprep.subr.mxu0 0.0
    %3184 = vmatpush1.msra.mxu0 0.0
    %3185 = vmatprep.subr.mxu0 0.0
    %3186 = vmatpush1.msra.mxu0 0.0
    %3187 = vmatprep.subr.mxu0 0.0
    %3188 = vmatpush1.msra.mxu0 0.0
    %3189 = vmatprep.subr.mxu0 0.0
    %3190 = vmatpush1.msra.mxu0 0.0
    %3191 = vmatprep.subr.mxu0 0.0
    %3192 = vmatpush1.msra.mxu0 0.0
    %3193 = vmatprep.mubr.f32.mxu0 0.0
    %3194 = vmatmul.mubr.f32.gmra.mrb[0].mxu0 %v3127
    %v3195 = vpop.f32.mrb[0].mxu0
    %v3196 = vadd.f32 %v3123, %v3195
    %v3197 = vpop.f32.mrb[0].mxu0
    %3198 = vdwg.mxu0
    %3199 = vst [vmem:[#allocation18 + $0x1] sm:$0x1] %v3196
    // Predicated region
    $region102: #{bilstm_model_forward.1} parent=1 // pred_check
      _
    $region103: #{bilstm_model_forward.1} parent=1 // pred_check_branch
      %3201 = sbr.rel (0) target = $region105
    $region104: #{bilstm_model_forward.1} parent=1 // pred_region
      _
    $region105: #{bilstm_model_forward.1} parent=1 // pred_fallthru
      _
    // Predicated region
    $region106: #{bilstm_model_forward.1} parent=1 // pred_check
      _
    $region107: #{bilstm_model_forward.1} parent=1 // pred_check_branch
      %3203 = sbr.rel (0) target = $region109
    $region108: #{bilstm_model_forward.1} parent=1 // pred_region
      %s3205 = ssub.s32 32, 32
      %3206 = vsyncadd [#allocation5], %s3205
      %s3208 = sshll.u32 [#allocation18], 4
      %s3209 = int_to_ptr.vmem [resolvable:$true] %s3208
      %3211 = dma.vmem_to_hbm [thread:$0]  %s3209, 32, %s17, [#allocation5]
    $region109: #{bilstm_model_forward.1} parent=1 // pred_fallthru
      _
    // Predicated region
    $region110: #{bilstm_model_forward.1} parent=1 // pred_check
      _
    $region111: #{bilstm_model_forward.1} parent=1 // pred_check_branch
      %3213 = sbr.rel (0) target = $region113
    $region112: #{bilstm_model_forward.1} parent=1 // pred_region
      _
    $region113: #{bilstm_model_forward.1} parent=1 // pred_fallthru
      _
    // Predicated region
    $region114: #{bilstm_model_forward.1} parent=1 // pred_check
      _
    $region115: #{bilstm_model_forward.1} parent=1 // pred_check_branch
      %3215 = sbr.rel (0) target = $region117
    $region116: #{bilstm_model_forward.1} parent=1 // pred_region
      %3216 = dma.done [#allocation5], 32
    $region117: #{bilstm_model_forward.1} parent=1 // pred_fallthru
      _
    %3217 = vsyncpa [#allocation4], 1
    %3218 = vsyncpa [#allocation7], 1
    %3219 = vsyncpa [#allocation10], 1
    %3220 = vsyncpa [#allocation13], 1
    %3221 = vsyncpa [#allocation16], 1
    %3222 = vsyncpa [#allocation5], 1

</llo_original>
